<compile_context>
chip_gen: v7x
topology: tpu7x:2x2x1
jax: 0.10.0
libtpu: 0.0.40
codegen_flags: <defaults>
</compile_context>

<pallas_src>
import jax
import jax.numpy as jnp
from jax.experimental import pallas as pl
from jax.experimental.pallas import tpu as pltpu


_LANE = 128
_VMEM_LIMIT = 32 * 1024 * 1024  # safe on v5e/v6e (128 MiB phys) and v7x (64 MiB)


def _round_up(n, m):
    return ((n + m - 1) // m) * m


def _m_tile(m, target):
    """Row-tile size: full M if it fits, else `target` rounded to a multiple of 8."""
    if m <= target:
        return m
    return max(8, (target // 8) * 8)


# ----------------------------- Pallas kernels -----------------------------

def _gemm_bias_relu_kernel(x_ref, w_ref, b_ref, o_ref):
    x = x_ref[...].astype(w_ref.dtype)
    acc = jnp.dot(x, w_ref[...], preferred_element_type=jnp.float32)
    o_ref[...] = jnp.maximum(acc + b_ref[...], 0.0)


def _tail_kernel(p_ref, w4_ref, b4_ref, wf1_ref, bf1_ref, wf2_ref, bf2_ref,
                 lo_ref, hi_ref, o_ref):
    """Fused conv4 -> flatten -> fc1 -> ReLU -> fc2 -> tanh -> clamp.

    p_ref: (TB, n_patch * K4): the 2x2 conv4 patches of each batch row,
    concatenated along lanes in (ho, wo) order.  Since the NHWC flatten of
    the conv4 output is [h4_0 | h4_1 | h4_2 | h4_3], fc1 is computed as
    sum_j h4_j @ Wf1[j*C4:(j+1)*C4, :], so the flat vector is never built.
    """
    cd = w4_ref.dtype
    k4 = w4_ref.shape[0]                 # 2*2*128 = 512
    c4 = w4_ref.shape[1]                 # 256
    n_patch = p_ref.shape[1] // k4       # 4

    acc1 = jnp.zeros((p_ref.shape[0], wf1_ref.shape[1]), jnp.float32)
    for j in range(n_patch):
        pj = p_ref[:, j * k4:(j + 1) * k4].astype(cd)
        h4 = jnp.maximum(
            jnp.dot(pj, w4_ref[...], preferred_element_type=jnp.float32)
            + b4_ref[...], 0.0)
        acc1 = acc1 + jnp.dot(h4.astype(cd), wf1_ref[j * c4:(j + 1) * c4, :],
                              preferred_element_type=jnp.float32)
    h = jnp.maximum(acc1 + bf1_ref[...], 0.0)
    out = jnp.tanh(
        jnp.dot(h.astype(cd), wf2_ref[...], preferred_element_type=jnp.float32)
        + bf2_ref[...])
    # torch.min(torch.max(out, lower), upper)
    o_ref[...] = jnp.minimum(jnp.maximum(out, lo_ref[...]), hi_ref[...])


# --------------------------- pallas_call wrappers --------------------------

def conv_gemm_relu(patches, w, b, *, tm=512):
    """patches [M, K] @ w [K, N] + b, ReLU; M-tiled, weights resident in VMEM."""
    m, k = patches.shape
    kw, n = w.shape
    assert k == kw, (k, kw)
    tm = _m_tile(m, tm)
    return pl.pallas_call(
        _gemm_bias_relu_kernel,
        out_shape=jax.ShapeDtypeStruct((m, n), jnp.float32),
        grid=(pl.cdiv(m, tm),),
        in_specs=[
            pl.BlockSpec((tm, k), lambda i: (i, 0)),    # LHS: tiled over M
            pl.BlockSpec((kw, n), lambda i: (0, 0)),    # weights: resident
            pl.BlockSpec((1, n), lambda i: (0, 0)),     # bias
        ],
        out_specs=pl.BlockSpec((tm, n), lambda i: (i, 0)),
        compiler_params=pltpu.CompilerParams(
            dimension_semantics=("parallel",),
            vmem_limit_bytes=_VMEM_LIMIT),
    )(patches, w, b)


def fused_tail(p4, prep):
    """p4: [B, 4 * 2*2*128] conv4 patches -> [B, action_dim] policy output."""
    b, ktot = p4.shape
    a = prep["fc2_b"].shape[-1]
    tb = _m_tile(b, 256)

    def full(shape):
        nd = len(shape)
        return pl.BlockSpec(shape, lambda i, _nd=nd: (0,) * _nd)

    args = (p4, prep["w4"], prep["b4"], prep["fc1_w"], prep["fc1_b"],
            prep["fc2_w"], prep["fc2_b"], prep["lo"], prep["hi"])
    in_specs = [pl.BlockSpec((tb, ktot), lambda i: (i, 0))]
    in_specs += [full(x.shape) for x in args[1:]]
    return pl.pallas_call(
        _tail_kernel,
        out_shape=jax.ShapeDtypeStruct((b, a), jnp.float32),
        grid=(pl.cdiv(b, tb),),
        in_specs=in_specs,
        out_specs=pl.BlockSpec((tb, a), lambda i: (i, 0)),
        compiler_params=pltpu.CompilerParams(
            dimension_semantics=("parallel",),
            vmem_limit_bytes=_VMEM_LIMIT),
    )(*args)


# ------------------------------- JAX glue ----------------------------------

def _im2col_nchw(x, k):
    """x: [B, C, H, W], stride == kernel == k -> [B*Ho*Wo, C*k*k], order (c,kh,kw)."""
    b, c, h, w = x.shape
    ho, wo = h // k, w // k
    p = x.reshape(b, c, ho, k, wo, k)
    p = jnp.transpose(p, (0, 2, 4, 1, 3, 5))        # (B, Ho, Wo, C, kh, kw)
    return p.reshape(b * ho * wo, c * k * k), (b, ho, wo)


def _im2col_nhwc(x, k):
    """x: [B, H, W, C], stride == kernel == k -> [B*Ho*Wo, k*k*C], order (kh,kw,c)."""
    b, h, w, c = x.shape
    ho, wo = h // k, w // k
    p = x.reshape(b, ho, k, wo, k, c)
    p = jnp.transpose(p, (0, 1, 3, 2, 4, 5))        # (B, Ho, Wo, kh, kw, C)
    return p.reshape(b * ho * wo, k * k * c), (b, ho, wo)


def conv_policy_forward(x, prep):
    """x: [B, inpt_chann, 96, 96] float32, raw 0..255 (PyTorch NCHW layout)."""
    # conv1: im2col straight from the NCHW input (single transpose); /255 is
    # already folded into w1.  Output is NHWC, channels zero-padded to 128.
    p, (b, ho, wo) = _im2col_nchw(x, 4)
    h = conv_gemm_relu(p, prep["w1"], prep["b1"]).reshape(b, ho, wo, -1)   # [B,24,24,128]
    p, (_, ho, wo) = _im2col_nhwc(h, 3)
    h = conv_gemm_relu(p, prep["w2"], prep["b2"]).reshape(b, ho, wo, -1)   # [B,8,8,128]
    p, (_, ho, wo) = _im2col_nhwc(h, 2)
    h = conv_gemm_relu(p, prep["w3"], prep["b3"]).reshape(b, ho, wo, -1)   # [B,4,4,128]
    # conv4 patches [B*2*2, 512] -> [B, 2048]; conv4 + flatten + fc1 + fc2 fused.
    p, _ = _im2col_nhwc(h, 2)
    p4 = p.reshape(b, -1)
    return fused_tail(p4, prep)


# ------------------------------ param setup --------------------------------

def init_params(key, inpt_chann, action_dim):
    """Parameters in PyTorch layout: conv [Cout, Cin, kh, kw], linear stored [in, out]."""
    ks = jax.random.split(key, 12)
    f32 = jnp.float32
    scale = 0.05

    def rnd(k, shape):
        return (scale * jax.random.normal(k, shape)).astype(f32)

    return {
        "conv1_w": rnd(ks[0], (32, inpt_chann, 4, 4)),
        "conv1_b": rnd(ks[1], (32,)),
        "conv2_w": rnd(ks[2], (64, 32, 3, 3)),
        "conv2_b": rnd(ks[3], (64,)),
        "conv3_w": rnd(ks[4], (128, 64, 2, 2)),
        "conv3_b": rnd(ks[5], (128,)),
        "conv4_w": rnd(ks[6], (256, 128, 2, 2)),
        "conv4_b": rnd(ks[7], (256,)),
        "fc1_w": rnd(ks[8], (2 * 2 * 256, 256)),   # rows ordered (c, h, w) = NCHW flatten
        "fc1_b": rnd(ks[9], (256,)),
        "fc2_w": rnd(ks[10], (256, action_dim)),
        "fc2_b": rnd(ks[11], (action_dim,)),
    }


def prepare_params(params, lower_bound, upper_bound, compute_dtype=jnp.float32):
    """One-time (outside jit) weight prep: transpose / pad / prescale / permute."""
    cd = compute_dtype
    f32 = jnp.float32

    def conv_w_nhwc(w, cin_pad, cout_pad):
        # [Cout, Cin, kh, kw] -> [kh*kw*cin_pad, cout_pad], matching (kh,kw,c) patches.
        cout, cin, kh, kw = w.shape
        wt = jnp.transpose(w, (2, 3, 1, 0))
        wt = jnp.pad(wt, ((0, 0), (0, 0), (0, cin_pad - cin), (0, cout_pad - cout)))
        return wt.reshape(kh * kw * cin_pad, cout_pad).astype(cd)

    def bias(bvec, cout_pad):
        return jnp.pad(bvec, (0, cout_pad - bvec.shape[0])).reshape(1, cout_pad).astype(f32)

    c1 = _round_up(params["conv1_b"].shape[0], _LANE)   # 32  -> 128 (lane-dense store)
    c2 = _round_up(params["conv2_b"].shape[0], _LANE)   # 64  -> 128
    c3 = _round_up(params["conv3_b"].shape[0], _LANE)   # 128
    c4 = params["conv4_b"].shape[0]                     # 256 (already lane-dense)

    # conv1 uses (c, kh, kw) patch order (im2col straight from NCHW input);
    # fold the x/255 prescale into its weights (bias is NOT scaled).
    cout1, cin1, k1, _ = params["conv1_w"].shape
    w1 = jnp.transpose(params["conv1_w"], (1, 2, 3, 0)) / 255.0   # (c, kh, kw, cout)
    w1 = jnp.pad(w1, ((0, 0), (0, 0), (0, 0), (0, c1 - cout1)))

    prep = {
        "w1": w1.reshape(cin1 * k1 * k1, c1).astype(cd),
        "b1": bias(params["conv1_b"], c1),
        "w2": conv_w_nhwc(params["conv2_w"], c1, c2),
        "b2": bias(params["conv2_b"], c2),
        "w3": conv_w_nhwc(params["conv3_w"], c2, c3),
        "b3": bias(params["conv3_b"], c3),
        "w4": conv_w_nhwc(params["conv4_w"], c3, c4),
        "b4": bias(params["conv4_b"], c4),
    }

    # fc1 rows are ordered (c, h, w) (PyTorch NCHW flatten); permute to the
    # (h, w, c) order produced by the NHWC fused tail.
    fc1_w = params["fc1_w"]                              # [2*2*256, 256]
    n_out = fc1_w.shape[1]
    wf1 = fc1_w.reshape(c4, 2, 2, n_out)                 # (c, h, w, out)
    wf1 = jnp.transpose(wf1, (1, 2, 0, 3)).reshape(2 * 2 * c4, n_out)
    prep["fc1_w"] = wf1.astype(cd)
    prep["fc1_b"] = params["fc1_b"].reshape(1, -1).astype(f32)
    prep["fc2_w"] = params["fc2_w"].astype(cd)
    prep["fc2_b"] = params["fc2_b"].reshape(1, -1).astype(f32)
    prep["lo"] = lower_bound.reshape(1, -1).astype(f32)
    prep["hi"] = upper_bound.reshape(1, -1).astype(f32)
    return prep


# ------------------------- pure-XLA reference check ------------------------

def reference_forward(x, params, lower_bound, upper_bound):
    h = x / 255.0

    def conv(h, w, b, k):
        y = jax.lax.conv_general_dilated(
            h, w, window_strides=(k, k), padding="VALID",
            dimension_numbers=("NCHW", "OIHW", "NCHW"))
        return jax.nn.relu(y + b[None, :, None, None])

    h = conv(h, params["conv1_w"], params["conv1_b"], 4)
    h = conv(h, params["conv2_w"], params["conv2_b"], 3)
    h = conv(h, params["conv3_w"], params["conv3_b"], 2)
    h = conv(h, params["conv4_w"], params["conv4_b"], 2)
    flat = h.reshape(h.shape[0], -1)                     # PyTorch NCHW flatten
    h = jax.nn.relu(flat @ params["fc1_w"] + params["fc1_b"])
    out = jnp.tanh(h @ params["fc2_w"] + params["fc2_b"])
    return jnp.minimum(jnp.maximum(out, lower_bound), upper_bound)


if __name__ == "__main__":
    key = jax.random.PRNGKey(0)
    k_in, k_par = jax.random.split(key)

    B, inpt_chann, action_dim = 2, 4, 4
    # 96x96 spatial is implied by the module (Linear(2*2*256, ...) after 4 convs).
    x = (255.0 * jax.random.uniform(k_in, (B, inpt_chann, 96, 96))).astype(jnp.float32)

    params = init_params(k_par, inpt_chann, action_dim)
    # action_bound row 0 = lower, row 1 = upper (as in the PyTorch module).
    action_bound = jnp.stack([
        -0.5 * jnp.ones((action_dim,), jnp.float32),
        0.5 * jnp.ones((action_dim,), jnp.float32),
    ])
    lower_bound, upper_bound = action_bound[0, :], action_bound[1, :]

    # One-time weight prep outside the jitted forward (use jnp.bfloat16 here
    # for the MXU fast path; float32 keeps exact parity with the reference).
    prep = prepare_params(params, lower_bound, upper_bound,
                          compute_dtype=jnp.float32)
    prep = jax.tree_util.tree_map(jax.block_until_ready, prep)

    fwd = jax.jit(conv_policy_forward)
    out = jax.block_until_ready(fwd(x, prep))

    assert out.shape == (B, action_dim), out.shape
    assert bool(jnp.all(out >= lower_bound - 1e-6))
    assert bool(jnp.all(out <= upper_bound + 1e-6))

    ref = jax.block_until_ready(
        jax.jit(reference_forward)(x, params, lower_bound, upper_bound))
    max_err = float(jnp.max(jnp.abs(out - ref)))
    assert max_err < 5e-2, f"max abs err vs XLA reference: {max_err}"

    print("KERNEL_OK")
</pallas_src>

<mosaic_0001>
module attributes {stable_mosaic.version = 11 : i64} {
  func.func @_gemm_bias_relu_kernel(%arg0: i32, %arg1: memref<512x64xf32, #tpu.memory_space<vmem>>, %arg2: memref<64x128xf32, #tpu.memory_space<vmem>>, %arg3: memref<1x128xf32, #tpu.memory_space<vmem>>, %arg4: memref<512x128xf32, #tpu.memory_space<vmem>>) attributes {dimension_semantics = [#tpu.dimension_semantics<parallel>], iteration_bounds = array<i64: 3>, scalar_prefetch = 0 : i64, scratch_operands = 0 : i64, tpu.core_type = #tpu.core_type<tc>, window_params = [{transform_indices = @transform_0, window_bounds = array<i64: 512, 64>}, {pipeline_mode = #tpu.pipeline_mode<synchronous>, transform_indices = @transform_1, window_bounds = array<i64: 64, 128>}, {pipeline_mode = #tpu.pipeline_mode<synchronous>, transform_indices = @transform_2, window_bounds = array<i64: 1, 128>}, {transform_indices = @transform_3, window_bounds = array<i64: 512, 128>}]} {
    %c0 = arith.constant 0 : index
    %c0_0 = arith.constant 0 : index
    %0 = vector.load %arg1[%c0, %c0_0] : memref<512x64xf32, #tpu.memory_space<vmem>>, vector<512x64xf32>
    %c0_1 = arith.constant 0 : index
    %c0_2 = arith.constant 0 : index
    %1 = vector.load %arg2[%c0_1, %c0_2] : memref<64x128xf32, #tpu.memory_space<vmem>>, vector<64x128xf32>
    %cst = arith.constant dense<0.000000e+00> : vector<512x128xf32>
    %2 = tpu.matmul %0, %1, %cst {dimension_numbers = #tpu.dot_dimension_numbers<[1], [0], [0], [1], [0, 0, 1, 1], [], []>} : vector<512x64xf32>, vector<64x128xf32>, vector<512x128xf32> -> vector<512x128xf32>
    %c0_3 = arith.constant 0 : index
    %c0_4 = arith.constant 0 : index
    %3 = vector.load %arg3[%c0_3, %c0_4] : memref<1x128xf32, #tpu.memory_space<vmem>>, vector<1x128xf32>
    %4 = vector.broadcast %3 : vector<1x128xf32> to vector<512x128xf32>
    %5 = arith.addf %2, %4 : vector<512x128xf32>
    %cst_5 = arith.constant 0.000000e+00 : f32
    %6 = vector.broadcast %cst_5 : f32 to vector<512x128xf32>
    %7 = arith.maximumf %5, %6 : vector<512x128xf32>
    %c0_6 = arith.constant 0 : index
    %c0_7 = arith.constant 0 : index
    %8 = vector.load %arg4[%c0_6, %c0_7] : memref<512x128xf32, #tpu.memory_space<vmem>>, vector<512x128xf32>
    tpu.vector_store %arg4[%c0_6, %c0_7], %7 {strides = array<i32>} : memref<512x128xf32, #tpu.memory_space<vmem>>, vector<512x128xf32>,
    return
  }
  func.func @transform_0(%arg0: i32) -> (i32, i32) {
    %c0_i32 = arith.constant 0 : i32
    %c0_i32_0 = arith.constant 0 : i32
    return %arg0, %c0_i32 : i32, i32
  }
  func.func @transform_1(%arg0: i32) -> (i32, i32) {
    %c0_i32 = arith.constant 0 : i32
    %c0_i32_0 = arith.constant 0 : i32
    %c0_i32_1 = arith.constant 0 : i32
    return %c0_i32, %c0_i32_0 : i32, i32
  }
  func.func @transform_2(%arg0: i32) -> (i32, i32) {
    %c0_i32 = arith.constant 0 : i32
    %c0_i32_0 = arith.constant 0 : i32
    %c0_i32_1 = arith.constant 0 : i32
    return %c0_i32, %c0_i32_0 : i32, i32
  }
  func.func @transform_3(%arg0: i32) -> (i32, i32) {
    %c0_i32 = arith.constant 0 : i32
    %c0_i32_0 = arith.constant 0 : i32
    return %arg0, %c0_i32 : i32, i32
  }
}

module attributes {stable_mosaic.version = 11 : i64} {
  func.func @_gemm_bias_relu_kernel(%arg0: i32, %arg1: memref<128x1152xf32, #tpu.memory_space<vmem>>, %arg2: memref<1152x128xf32, #tpu.memory_space<vmem>>, %arg3: memref<1x128xf32, #tpu.memory_space<vmem>>, %arg4: memref<128x128xf32, #tpu.memory_space<vmem>>) attributes {dimension_semantics = [#tpu.dimension_semantics<parallel>], iteration_bounds = array<i64: 1>, scalar_prefetch = 0 : i64, scratch_operands = 0 : i64, tpu.core_type = #tpu.core_type<tc>, window_params = [{transform_indices = @transform_0, window_bounds = array<i64: 128, 1152>}, {pipeline_mode = #tpu.pipeline_mode<synchronous>, transform_indices = @transform_1, window_bounds = array<i64: 1152, 128>}, {pipeline_mode = #tpu.pipeline_mode<synchronous>, transform_indices = @transform_2, window_bounds = array<i64: 1, 128>}, {transform_indices = @transform_3, window_bounds = array<i64: 128, 128>}]} {
    %c0 = arith.constant 0 : index
    %c0_0 = arith.constant 0 : index
    %0 = vector.load %arg1[%c0, %c0_0] : memref<128x1152xf32, #tpu.memory_space<vmem>>, vector<128x1152xf32>
    %c0_1 = arith.constant 0 : index
    %c0_2 = arith.constant 0 : index
    %1 = vector.load %arg2[%c0_1, %c0_2] : memref<1152x128xf32, #tpu.memory_space<vmem>>, vector<1152x128xf32>
    %cst = arith.constant dense<0.000000e+00> : vector<128x128xf32>
    %2 = tpu.matmul %0, %1, %cst {dimension_numbers = #tpu.dot_dimension_numbers<[1], [0], [0], [1], [0, 0, 1, 1], [], []>} : vector<128x1152xf32>, vector<1152x128xf32>, vector<128x128xf32> -> vector<128x128xf32>
    %c0_3 = arith.constant 0 : index
    %c0_4 = arith.constant 0 : index
    %3 = vector.load %arg3[%c0_3, %c0_4] : memref<1x128xf32, #tpu.memory_space<vmem>>, vector<1x128xf32>
    %4 = vector.broadcast %3 : vector<1x128xf32> to vector<128x128xf32>
    %5 = arith.addf %2, %4 : vector<128x128xf32>
    %cst_5 = arith.constant 0.000000e+00 : f32
    %6 = vector.broadcast %cst_5 : f32 to vector<128x128xf32>
    %7 = arith.maximumf %5, %6 : vector<128x128xf32>
    %c0_6 = arith.constant 0 : index
    %c0_7 = arith.constant 0 : index
    %8 = vector.load %arg4[%c0_6, %c0_7] : memref<128x128xf32, #tpu.memory_space<vmem>>, vector<128x128xf32>
    tpu.vector_store %arg4[%c0_6, %c0_7], %7 {strides = array<i32>} : memref<128x128xf32, #tpu.memory_space<vmem>>, vector<128x128xf32>,
    return
  }
  func.func @transform_0(%arg0: i32) -> (i32, i32) {
    %c0_i32 = arith.constant 0 : i32
    %c0_i32_0 = arith.constant 0 : i32
    return %arg0, %c0_i32 : i32, i32
  }
  func.func @transform_1(%arg0: i32) -> (i32, i32) {
    %c0_i32 = arith.constant 0 : i32
    %c0_i32_0 = arith.constant 0 : i32
    %c0_i32_1 = arith.constant 0 : i32
    return %c0_i32, %c0_i32_0 : i32, i32
  }
  func.func @transform_2(%arg0: i32) -> (i32, i32) {
    %c0_i32 = arith.constant 0 : i32
    %c0_i32_0 = arith.constant 0 : i32
    %c0_i32_1 = arith.constant 0 : i32
    return %c0_i32, %c0_i32_0 : i32, i32
  }
  func.func @transform_3(%arg0: i32) -> (i32, i32) {
    %c0_i32 = arith.constant 0 : i32
    %c0_i32_0 = arith.constant 0 : i32
    return %arg0, %c0_i32 : i32, i32
  }
}

module attributes {stable_mosaic.version = 11 : i64} {
  func.func @_gemm_bias_relu_kernel(%arg0: i32, %arg1: memref<32x512xf32, #tpu.memory_space<vmem>>, %arg2: memref<512x128xf32, #tpu.memory_space<vmem>>, %arg3: memref<1x128xf32, #tpu.memory_space<vmem>>, %arg4: memref<32x128xf32, #tpu.memory_space<vmem>>) attributes {dimension_semantics = [#tpu.dimension_semantics<parallel>], iteration_bounds = array<i64: 1>, scalar_prefetch = 0 : i64, scratch_operands = 0 : i64, tpu.core_type = #tpu.core_type<tc>, window_params = [{transform_indices = @transform_0, window_bounds = array<i64: 32, 512>}, {pipeline_mode = #tpu.pipeline_mode<synchronous>, transform_indices = @transform_1, window_bounds = array<i64: 512, 128>}, {pipeline_mode = #tpu.pipeline_mode<synchronous>, transform_indices = @transform_2, window_bounds = array<i64: 1, 128>}, {transform_indices = @transform_3, window_bounds = array<i64: 32, 128>}]} {
    %c0 = arith.constant 0 : index
    %c0_0 = arith.constant 0 : index
    %0 = vector.load %arg1[%c0, %c0_0] : memref<32x512xf32, #tpu.memory_space<vmem>>, vector<32x512xf32>
    %c0_1 = arith.constant 0 : index
    %c0_2 = arith.constant 0 : index
    %1 = vector.load %arg2[%c0_1, %c0_2] : memref<512x128xf32, #tpu.memory_space<vmem>>, vector<512x128xf32>
    %cst = arith.constant dense<0.000000e+00> : vector<32x128xf32>
    %2 = tpu.matmul %0, %1, %cst {dimension_numbers = #tpu.dot_dimension_numbers<[1], [0], [0], [1], [0, 0, 1, 1], [], []>} : vector<32x512xf32>, vector<512x128xf32>, vector<32x128xf32> -> vector<32x128xf32>
    %c0_3 = arith.constant 0 : index
    %c0_4 = arith.constant 0 : index
    %3 = vector.load %arg3[%c0_3, %c0_4] : memref<1x128xf32, #tpu.memory_space<vmem>>, vector<1x128xf32>
    %4 = vector.broadcast %3 : vector<1x128xf32> to vector<32x128xf32>
    %5 = arith.addf %2, %4 : vector<32x128xf32>
    %cst_5 = arith.constant 0.000000e+00 : f32
    %6 = vector.broadcast %cst_5 : f32 to vector<32x128xf32>
    %7 = arith.maximumf %5, %6 : vector<32x128xf32>
    %c0_6 = arith.constant 0 : index
    %c0_7 = arith.constant 0 : index
    %8 = vector.load %arg4[%c0_6, %c0_7] : memref<32x128xf32, #tpu.memory_space<vmem>>, vector<32x128xf32>
    tpu.vector_store %arg4[%c0_6, %c0_7], %7 {strides = array<i32>} : memref<32x128xf32, #tpu.memory_space<vmem>>, vector<32x128xf32>,
    return
  }
  func.func @transform_0(%arg0: i32) -> (i32, i32) {
    %c0_i32 = arith.constant 0 : i32
    %c0_i32_0 = arith.constant 0 : i32
    return %arg0, %c0_i32 : i32, i32
  }
  func.func @transform_1(%arg0: i32) -> (i32, i32) {
    %c0_i32 = arith.constant 0 : i32
    %c0_i32_0 = arith.constant 0 : i32
    %c0_i32_1 = arith.constant 0 : i32
    return %c0_i32, %c0_i32_0 : i32, i32
  }
  func.func @transform_2(%arg0: i32) -> (i32, i32) {
    %c0_i32 = arith.constant 0 : i32
    %c0_i32_0 = arith.constant 0 : i32
    %c0_i32_1 = arith.constant 0 : i32
    return %c0_i32, %c0_i32_0 : i32, i32
  }
  func.func @transform_3(%arg0: i32) -> (i32, i32) {
    %c0_i32 = arith.constant 0 : i32
    %c0_i32_0 = arith.constant 0 : i32
    return %arg0, %c0_i32 : i32, i32
  }
}

module attributes {stable_mosaic.version = 11 : i64} {
  func.func @_tail_kernel(%arg0: i32, %arg1: memref<2x2048xf32, #tpu.memory_space<vmem>>, %arg2: memref<512x256xf32, #tpu.memory_space<vmem>>, %arg3: memref<1x256xf32, #tpu.memory_space<vmem>>, %arg4: memref<1024x256xf32, #tpu.memory_space<vmem>>, %arg5: memref<1x256xf32, #tpu.memory_space<vmem>>, %arg6: memref<256x4xf32, #tpu.memory_space<vmem>>, %arg7: memref<1x4xf32, #tpu.memory_space<vmem>>, %arg8: memref<1x4xf32, #tpu.memory_space<vmem>>, %arg9: memref<1x4xf32, #tpu.memory_space<vmem>>, %arg10: memref<2x4xf32, #tpu.memory_space<vmem>>) attributes {dimension_semantics = [#tpu.dimension_semantics<parallel>], iteration_bounds = array<i64: 1>, scalar_prefetch = 0 : i64, scratch_operands = 0 : i64, tpu.core_type = #tpu.core_type<tc>, window_params = [{transform_indices = @transform_0, window_bounds = array<i64: 2, 2048>}, {pipeline_mode = #tpu.pipeline_mode<synchronous>, transform_indices = @transform_1, window_bounds = array<i64: 512, 256>}, {pipeline_mode = #tpu.pipeline_mode<synchronous>, transform_indices = @transform_2, window_bounds = array<i64: 1, 256>}, {pipeline_mode = #tpu.pipeline_mode<synchronous>, transform_indices = @transform_3, window_bounds = array<i64: 1024, 256>}, {pipeline_mode = #tpu.pipeline_mode<synchronous>, transform_indices = @transform_4, window_bounds = array<i64: 1, 256>}, {pipeline_mode = #tpu.pipeline_mode<synchronous>, transform_indices = @transform_5, window_bounds = array<i64: 256, 4>}, {pipeline_mode = #tpu.pipeline_mode<synchronous>, transform_indices = @transform_6, window_bounds = array<i64: 1, 4>}, {pipeline_mode = #tpu.pipeline_mode<synchronous>, transform_indices = @transform_7, window_bounds = array<i64: 1, 4>}, {pipeline_mode = #tpu.pipeline_mode<synchronous>, transform_indices = @transform_8, window_bounds = array<i64: 1, 4>}, {transform_indices = @transform_9, window_bounds = array<i64: 2, 4>}]} {
    %cst = arith.constant 0.000000e+00 : f32
    %0 = vector.broadcast %cst : f32 to vector<2x256xf32>
    %c0 = arith.constant 0 : index
    %c0_0 = arith.constant 0 : index
    %1 = vector.load %arg1[%c0, %c0_0] : memref<2x2048xf32, #tpu.memory_space<vmem>>, vector<2x512xf32>
    %c0_1 = arith.constant 0 : index
    %c0_2 = arith.constant 0 : index
    %2 = vector.load %arg2[%c0_1, %c0_2] : memref<512x256xf32, #tpu.memory_space<vmem>>, vector<512x256xf32>
    %cst_3 = arith.constant dense<0.000000e+00> : vector<2x256xf32>
    %3 = tpu.matmul %1, %2, %cst_3 {dimension_numbers = #tpu.dot_dimension_numbers<[1], [0], [0], [1], [0, 0, 1, 1], [], []>} : vector<2x512xf32>, vector<512x256xf32>, vector<2x256xf32> -> vector<2x256xf32>
    %c0_4 = arith.constant 0 : index
    %c0_5 = arith.constant 0 : index
    %4 = vector.load %arg3[%c0_4, %c0_5] : memref<1x256xf32, #tpu.memory_space<vmem>>, vector<1x256xf32>
    %5 = vector.broadcast %4 : vector<1x256xf32> to vector<2x256xf32>
    %6 = arith.addf %3, %5 : vector<2x256xf32>
    %cst_6 = arith.constant 0.000000e+00 : f32
    %7 = vector.broadcast %cst_6 : f32 to vector<2x256xf32>
    %8 = arith.maximumf %6, %7 : vector<2x256xf32>
    %c0_7 = arith.constant 0 : index
    %c0_8 = arith.constant 0 : index
    %9 = vector.load %arg4[%c0_7, %c0_8] : memref<1024x256xf32, #tpu.memory_space<vmem>>, vector<256x256xf32>
    %cst_9 = arith.constant dense<0.000000e+00> : vector<2x256xf32>
    %10 = tpu.matmul %8, %9, %cst_9 {dimension_numbers = #tpu.dot_dimension_numbers<[1], [0], [0], [1], [0, 0, 1, 1], [], []>} : vector<2x256xf32>, vector<256x256xf32>, vector<2x256xf32> -> vector<2x256xf32>
    %11 = arith.addf %0, %10 : vector<2x256xf32>
    %c0_10 = arith.constant 0 : index
    %c512 = arith.constant 512 : index
    %12 = vector.load %arg1[%c0_10, %c512] : memref<2x2048xf32, #tpu.memory_space<vmem>>, vector<2x512xf32>
    %c0_11 = arith.constant 0 : index
    %c0_12 = arith.constant 0 : index
    %13 = vector.load %arg2[%c0_11, %c0_12] : memref<512x256xf32, #tpu.memory_space<vmem>>, vector<512x256xf32>
    %cst_13 = arith.constant dense<0.000000e+00> : vector<2x256xf32>
    %14 = tpu.matmul %12, %13, %cst_13 {dimension_numbers = #tpu.dot_dimension_numbers<[1], [0], [0], [1], [0, 0, 1, 1], [], []>} : vector<2x512xf32>, vector<512x256xf32>, vector<2x256xf32> -> vector<2x256xf32>
    %c0_14 = arith.constant 0 : index
    %c0_15 = arith.constant 0 : index
    %15 = vector.load %arg3[%c0_14, %c0_15] : memref<1x256xf32, #tpu.memory_space<vmem>>, vector<1x256xf32>
    %16 = vector.broadcast %15 : vector<1x256xf32> to vector<2x256xf32>
    %17 = arith.addf %14, %16 : vector<2x256xf32>
    %cst_16 = arith.constant 0.000000e+00 : f32
    %18 = vector.broadcast %cst_16 : f32 to vector<2x256xf32>
    %19 = arith.maximumf %17, %18 : vector<2x256xf32>
    %c256 = arith.constant 256 : index
    %c0_17 = arith.constant 0 : index
    %20 = vector.load %arg4[%c256, %c0_17] : memref<1024x256xf32, #tpu.memory_space<vmem>>, vector<256x256xf32>
    %cst_18 = arith.constant dense<0.000000e+00> : vector<2x256xf32>
    %21 = tpu.matmul %19, %20, %cst_18 {dimension_numbers = #tpu.dot_dimension_numbers<[1], [0], [0], [1], [0, 0, 1, 1], [], []>} : vector<2x256xf32>, vector<256x256xf32>, vector<2x256xf32> -> vector<2x256xf32>
    %22 = arith.addf %11, %21 : vector<2x256xf32>
    %c0_19 = arith.constant 0 : index
    %c1024 = arith.constant 1024 : index
    %23 = vector.load %arg1[%c0_19, %c1024] : memref<2x2048xf32, #tpu.memory_space<vmem>>, vector<2x512xf32>
    %c0_20 = arith.constant 0 : index
    %c0_21 = arith.constant 0 : index
    %24 = vector.load %arg2[%c0_20, %c0_21] : memref<512x256xf32, #tpu.memory_space<vmem>>, vector<512x256xf32>
    %cst_22 = arith.constant dense<0.000000e+00> : vector<2x256xf32>
    %25 = tpu.matmul %23, %24, %cst_22 {dimension_numbers = #tpu.dot_dimension_numbers<[1], [0], [0], [1], [0, 0, 1, 1], [], []>} : vector<2x512xf32>, vector<512x256xf32>, vector<2x256xf32> -> vector<2x256xf32>
    %c0_23 = arith.constant 0 : index
    %c0_24 = arith.constant 0 : index
    %26 = vector.load %arg3[%c0_23, %c0_24] : memref<1x256xf32, #tpu.memory_space<vmem>>, vector<1x256xf32>
    %27 = vector.broadcast %26 : vector<1x256xf32> to vector<2x256xf32>
    %28 = arith.addf %25, %27 : vector<2x256xf32>
    %cst_25 = arith.constant 0.000000e+00 : f32
    %29 = vector.broadcast %cst_25 : f32 to vector<2x256xf32>
    %30 = arith.maximumf %28, %29 : vector<2x256xf32>
    %c512_26 = arith.constant 512 : index
    %c0_27 = arith.constant 0 : index
    %31 = vector.load %arg4[%c512_26, %c0_27] : memref<1024x256xf32, #tpu.memory_space<vmem>>, vector<256x256xf32>
    %cst_28 = arith.constant dense<0.000000e+00> : vector<2x256xf32>
    %32 = tpu.matmul %30, %31, %cst_28 {dimension_numbers = #tpu.dot_dimension_numbers<[1], [0], [0], [1], [0, 0, 1, 1], [], []>} : vector<2x256xf32>, vector<256x256xf32>, vector<2x256xf32> -> vector<2x256xf32>
    %33 = arith.addf %22, %32 : vector<2x256xf32>
    %c0_29 = arith.constant 0 : index
    %c1536 = arith.constant 1536 : index
    %34 = vector.load %arg1[%c0_29, %c1536] : memref<2x2048xf32, #tpu.memory_space<vmem>>, vector<2x512xf32>
    %c0_30 = arith.constant 0 : index
    %c0_31 = arith.constant 0 : index
    %35 = vector.load %arg2[%c0_30, %c0_31] : memref<512x256xf32, #tpu.memory_space<vmem>>, vector<512x256xf32>
    %cst_32 = arith.constant dense<0.000000e+00> : vector<2x256xf32>
    %36 = tpu.matmul %34, %35, %cst_32 {dimension_numbers = #tpu.dot_dimension_numbers<[1], [0], [0], [1], [0, 0, 1, 1], [], []>} : vector<2x512xf32>, vector<512x256xf32>, vector<2x256xf32> -> vector<2x256xf32>
    %c0_33 = arith.constant 0 : index
    %c0_34 = arith.constant 0 : index
    %37 = vector.load %arg3[%c0_33, %c0_34] : memref<1x256xf32, #tpu.memory_space<vmem>>, vector<1x256xf32>
    %38 = vector.broadcast %37 : vector<1x256xf32> to vector<2x256xf32>
    %39 = arith.addf %36, %38 : vector<2x256xf32>
    %cst_35 = arith.constant 0.000000e+00 : f32
    %40 = vector.broadcast %cst_35 : f32 to vector<2x256xf32>
    %41 = arith.maximumf %39, %40 : vector<2x256xf32>
    %c768 = arith.constant 768 : index
    %c0_36 = arith.constant 0 : index
    %42 = vector.load %arg4[%c768, %c0_36] : memref<1024x256xf32, #tpu.memory_space<vmem>>, vector<256x256xf32>
    %cst_37 = arith.constant dense<0.000000e+00> : vector<2x256xf32>
    %43 = tpu.matmul %41, %42, %cst_37 {dimension_numbers = #tpu.dot_dimension_numbers<[1], [0], [0], [1], [0, 0, 1, 1], [], []>} : vector<2x256xf32>, vector<256x256xf32>, vector<2x256xf32> -> vector<2x256xf32>
    %44 = arith.addf %33, %43 : vector<2x256xf32>
    %c0_38 = arith.constant 0 : index
    %c0_39 = arith.constant 0 : index
    %45 = vector.load %arg5[%c0_38, %c0_39] : memref<1x256xf32, #tpu.memory_space<vmem>>, vector<1x256xf32>
    %46 = vector.broadcast %45 : vector<1x256xf32> to vector<2x256xf32>
    %47 = arith.addf %44, %46 : vector<2x256xf32>
    %cst_40 = arith.constant 0.000000e+00 : f32
    %48 = vector.broadcast %cst_40 : f32 to vector<2x256xf32>
    %49 = arith.maximumf %47, %48 : vector<2x256xf32>
    %c0_41 = arith.constant 0 : index
    %c0_42 = arith.constant 0 : index
    %50 = vector.load %arg6[%c0_41, %c0_42] : memref<256x4xf32, #tpu.memory_space<vmem>>, vector<256x4xf32>
    %cst_43 = arith.constant dense<0.000000e+00> : vector<2x4xf32>
    %51 = tpu.matmul %49, %50, %cst_43 {dimension_numbers = #tpu.dot_dimension_numbers<[1], [0], [0], [1], [0, 0, 1, 1], [], []>} : vector<2x256xf32>, vector<256x4xf32>, vector<2x4xf32> -> vector<2x4xf32>
    %c0_44 = arith.constant 0 : index
    %c0_45 = arith.constant 0 : index
    %52 = vector.load %arg7[%c0_44, %c0_45] : memref<1x4xf32, #tpu.memory_space<vmem>>, vector<1x4xf32>
    %53 = vector.broadcast %52 : vector<1x4xf32> to vector<2x4xf32>
    %54 = arith.addf %51, %53 : vector<2x4xf32>
    %55 = math.tanh %54 : vector<2x4xf32>
    %c0_46 = arith.constant 0 : index
    %c0_47 = arith.constant 0 : index
    %56 = vector.load %arg8[%c0_46, %c0_47] : memref<1x4xf32, #tpu.memory_space<vmem>>, vector<1x4xf32>
    %57 = vector.broadcast %56 : vector<1x4xf32> to vector<2x4xf32>
    %58 = arith.maximumf %55, %57 : vector<2x4xf32>
    %c0_48 = arith.constant 0 : index
    %c0_49 = arith.constant 0 : index
    %59 = vector.load %arg9[%c0_48, %c0_49] : memref<1x4xf32, #tpu.memory_space<vmem>>, vector<1x4xf32>
    %60 = vector.broadcast %59 : vector<1x4xf32> to vector<2x4xf32>
    %61 = arith.minimumf %58, %60 : vector<2x4xf32>
    %c0_50 = arith.constant 0 : index
    %c0_51 = arith.constant 0 : index
    %62 = vector.load %arg10[%c0_50, %c0_51] : memref<2x4xf32, #tpu.memory_space<vmem>>, vector<2x4xf32>
    tpu.vector_store %arg10[%c0_50, %c0_51], %61 {strides = array<i32>} : memref<2x4xf32, #tpu.memory_space<vmem>>, vector<2x4xf32>,
    return
  }
  func.func @transform_0(%arg0: i32) -> (i32, i32) {
    %c0_i32 = arith.constant 0 : i32
    %c0_i32_0 = arith.constant 0 : i32
    return %arg0, %c0_i32 : i32, i32
  }
  func.func @transform_1(%arg0: i32) -> (i32, i32) {
    %c0_i32 = arith.constant 0 : i32
    %c0_i32_0 = arith.constant 0 : i32
    %c0_i32_1 = arith.constant 0 : i32
    return %c0_i32, %c0_i32_0 : i32, i32
  }
  func.func @transform_2(%arg0: i32) -> (i32, i32) {
    %c0_i32 = arith.constant 0 : i32
    %c0_i32_0 = arith.constant 0 : i32
    %c0_i32_1 = arith.constant 0 : i32
    return %c0_i32, %c0_i32_0 : i32, i32
  }
  func.func @transform_3(%arg0: i32) -> (i32, i32) {
    %c0_i32 = arith.constant 0 : i32
    %c0_i32_0 = arith.constant 0 : i32
    %c0_i32_1 = arith.constant 0 : i32
    return %c0_i32, %c0_i32_0 : i32, i32
  }
  func.func @transform_4(%arg0: i32) -> (i32, i32) {
    %c0_i32 = arith.constant 0 : i32
    %c0_i32_0 = arith.constant 0 : i32
    %c0_i32_1 = arith.constant 0 : i32
    return %c0_i32, %c0_i32_0 : i32, i32
  }
  func.func @transform_5(%arg0: i32) -> (i32, i32) {
    %c0_i32 = arith.constant 0 : i32
    %c0_i32_0 = arith.constant 0 : i32
    %c0_i32_1 = arith.constant 0 : i32
    return %c0_i32, %c0_i32_0 : i32, i32
  }
  func.func @transform_6(%arg0: i32) -> (i32, i32) {
    %c0_i32 = arith.constant 0 : i32
    %c0_i32_0 = arith.constant 0 : i32
    %c0_i32_1 = arith.constant 0 : i32
    return %c0_i32, %c0_i32_0 : i32, i32
  }
  func.func @transform_7(%arg0: i32) -> (i32, i32) {
    %c0_i32 = arith.constant 0 : i32
    %c0_i32_0 = arith.constant 0 : i32
    %c0_i32_1 = arith.constant 0 : i32
    return %c0_i32, %c0_i32_0 : i32, i32
  }
  func.func @transform_8(%arg0: i32) -> (i32, i32) {
    %c0_i32 = arith.constant 0 : i32
    %c0_i32_0 = arith.constant 0 : i32
    %c0_i32_1 = arith.constant 0 : i32
    return %c0_i32, %c0_i32_0 : i32, i32
  }
  func.func @transform_9(%arg0: i32) -> (i32, i32) {
    %c0_i32 = arith.constant 0 : i32
    %c0_i32_0 = arith.constant 0 : i32
    return %arg0, %c0_i32 : i32, i32
  }
}

</mosaic_0001>

<llo_original>
// kernel: conv_policy_forward.4
$region0: #{conv_policy_forward.4}
  #allocation0 [shape = 'u32[]', space=smem, size = 0x4, offset = 0x4, fixed_abs, tag = 'smem constant byte address 0x4 - core index']
  #allocation1 [shape = 'u32[144,128]{1,0:T(1,128)}', space=vmem, size = 0x12000, scoped, tag = 'internal scratch']
  %s0 = inlined_call_operand.vmem [shape: f32[1152,64], index: 0, kind: input, shape index: {}]
  %s1 = inlined_call_operand.vmem [shape: f32[64,128], index: 1, kind: input, shape index: {}]
  %s2 = inlined_call_operand.vmem [shape: f32[1,128], index: 2, kind: input, shape index: {}]
  %s3 = inlined_call_operand.vmem [shape: f32[1152,128], index: 3, kind: output, shape index: {}]
  %s4 = sld [smem:[#allocation0]]
  $region93: #{conv_policy_forward.4} parent=0
    _
  %s6 = ssub.s32 1, %s4
  %s7 = scalar_select 0, %s6, %s4
  $region1: #{conv_policy_forward.4} parent=0
    #allocation2 [shape = 'u8[524288]{0}', space=vmem, size = 0x80000, scoped, tag = 'output window, operand 0']
    loop: start=0, step=1, limit=5
    $region2: #{conv_policy_forward.4} parent=1 // loop_pre_header
      _
    $region3: #{conv_policy_forward.4} parent=1 // loop_header
      %s9 = sphi 0, %s13
      %p10 = scmp.ge.s32.totalorder %s9, 5
      %s19 = sphi 0, %s21
      %s22 = sphi 0, %s19
      %s23 = sphi 0, %s22
      %s39 = sphi 0, %s23
      %s43 = sphi 0, %s43
      %s45 = sphi 0, %s43
      %s46 = sphi 0, %s45
      %s60 = sphi 0, %s46
      %s64 = sphi 0, %s64
      %s66 = sphi 0, %s64
      %s67 = sphi 0, %s66
      %s81 = sphi 0, %s67
      %s87 = sphi 0, %s89
      %s90 = sphi 0, %s87
      %s91 = sphi 0, %s90
      %s107 = sphi 0, %s91
    $region4: #{conv_policy_forward.4} parent=1 // loop_header_branch
      %12 = sbr.rel (%p10) target = $region8
    $region5: #{conv_policy_forward.4} parent=1 // loop_body
      %s14 = ssub.s32 %s9, 1
      %s15 = ssub.s32 %s9, 2
      %s16 = sadd.s32 %s9, 1
      %s17 = ssub.s32 %s9, %s16
      %p18 = scmp.eq.s32.totalorder %s17, 0
      %s20 = sadd.s32 %s19, 1
      %s21 = scalar_select %p18, %s19, %s20
      %p24 = pneg %p18
      %p25 = scmp.eq.s32.totalorder %s9, 2
      %p26 = por %p24, %p25
      %p27 = scmp.ne.s32.totalorder %s19, %s22
      %p28 = scmp.eq.s32.totalorder %s9, 0
      %p29 = por %p27, %p28
      %p30 = scmp.ne.s32.totalorder %s19, %s22
      %p31 = scmp.eq.s32.totalorder %s14, 2
      %p32 = por %p30, %p31
      %p33 = scmp.ne.s32.totalorder %s22, %s23
      %p34 = scmp.eq.s32.totalorder %s14, 0
      %p35 = por %p33, %p34
      %p36 = scmp.ne.s32.totalorder %s22, %s23
      %p37 = scmp.eq.s32.totalorder %s15, 2
      %p38 = por %p36, %p37
      %p40 = scmp.ne.s32.totalorder %s23, %s39
      %p41 = scmp.eq.s32.totalorder %s15, 0
      %p42 = por %p40, %p41
      %s44 = sadd.s32 %s43, 1
      %p47 = scmp.eq.s32.totalorder %s9, 2
      %p48 = scmp.ne.s32.totalorder %s43, %s45
      %p49 = scmp.eq.s32.totalorder %s9, 0
      %p50 = por %p48, %p49
      %p51 = scmp.ne.s32.totalorder %s43, %s45
      %p52 = scmp.eq.s32.totalorder %s14, 2
      %p53 = por %p51, %p52
      %p54 = scmp.ne.s32.totalorder %s45, %s46
      %p55 = scmp.eq.s32.totalorder %s14, 0
      %p56 = por %p54, %p55
      %p57 = scmp.ne.s32.totalorder %s45, %s46
      %p58 = scmp.eq.s32.totalorder %s15, 2
      %p59 = por %p57, %p58
      %p61 = scmp.ne.s32.totalorder %s46, %s60
      %p62 = scmp.eq.s32.totalorder %s15, 0
      %p63 = por %p61, %p62
      %s65 = sadd.s32 %s64, 1
      %p68 = scmp.eq.s32.totalorder %s9, 2
      %p69 = scmp.ne.s32.totalorder %s64, %s66
      %p70 = scmp.eq.s32.totalorder %s9, 0
      %p71 = por %p69, %p70
      %p72 = scmp.ne.s32.totalorder %s64, %s66
      %p73 = scmp.eq.s32.totalorder %s14, 2
      %p74 = por %p72, %p73
      %p75 = scmp.ne.s32.totalorder %s66, %s67
      %p76 = scmp.eq.s32.totalorder %s14, 0
      %p77 = por %p75, %p76
      %p78 = scmp.ne.s32.totalorder %s66, %s67
      %p79 = scmp.eq.s32.totalorder %s15, 2
      %p80 = por %p78, %p79
      %p82 = scmp.ne.s32.totalorder %s67, %s81
      %p83 = scmp.eq.s32.totalorder %s15, 0
      %p84 = por %p82, %p83
      %s85 = ssub.s32 %s9, %s16
      %p86 = scmp.eq.s32.totalorder %s85, 0
      %s88 = sadd.s32 %s87, 1
      %s89 = scalar_select %p86, %s87, %s88
      %p92 = pneg %p86
      %p93 = scmp.eq.s32.totalorder %s9, 2
      %p94 = por %p92, %p93
      %p95 = scmp.ne.s32.totalorder %s87, %s90
      %p96 = scmp.eq.s32.totalorder %s9, 0
      %p97 = por %p95, %p96
      %p98 = scmp.ne.s32.totalorder %s87, %s90
      %p99 = scmp.eq.s32.totalorder %s14, 2
      %p100 = por %p98, %p99
      %p101 = scmp.ne.s32.totalorder %s90, %s91
      %p102 = scmp.eq.s32.totalorder %s14, 0
      %p103 = por %p101, %p102
      %p104 = scmp.ne.s32.totalorder %s90, %s91
      %p105 = scmp.eq.s32.totalorder %s15, 2
      %p106 = por %p104, %p105
      %p108 = scmp.ne.s32.totalorder %s91, %s107
      %p109 = scmp.eq.s32.totalorder %s15, 0
      %p110 = por %p108, %p109
      %p111 = scmp.le.s32.totalorder 1, %s9
      %p112 = scmp.lt.s32.totalorder %s9, 4
      %p113 = pnand %p111, %p112
      %p114 = pneg %p113
      // Predicated region
      $region9: #{conv_policy_forward.4} parent=5 // pred_check
        _
      $region10: #{conv_policy_forward.4} parent=5 // pred_check_branch
        %116 = sbr.rel (%p113) target = $region12
      $region11: #{conv_policy_forward.4} parent=5 // pred_region
        %s117 = ssub.s32 %s9, 1
        // Predicated region
        $region13: #{conv_policy_forward.4} parent=11 // pred_check
          %p118 = pneg %p56
        $region14: #{conv_policy_forward.4} parent=11 // pred_check_branch
          %120 = sbr.rel (%p118) target = $region16
        $region15: #{conv_policy_forward.4} parent=11 // pred_region
          _
        $region16: #{conv_policy_forward.4} parent=11 // pred_fallthru
          _
        // Predicated region
        $region17: #{conv_policy_forward.4} parent=11 // pred_check
          %p121 = pneg %p77
        $region18: #{conv_policy_forward.4} parent=11 // pred_check_branch
          %123 = sbr.rel (%p121) target = $region20
        $region19: #{conv_policy_forward.4} parent=11 // pred_region
          _
        $region20: #{conv_policy_forward.4} parent=11 // pred_fallthru
          _
      $region12: #{conv_policy_forward.4} parent=5 // pred_fallthru
        _
      %p124 = scmp.lt.s32.totalorder %s9, 3
      // Predicated region
      $region21: #{conv_policy_forward.4} parent=5 // pred_check
        %p125 = pneg %p124
      $region22: #{conv_policy_forward.4} parent=5 // pred_check_branch
        %127 = sbr.rel (%p125) target = $region24
      $region23: #{conv_policy_forward.4} parent=5 // pred_region
        // Predicated region
        $region25: #{conv_policy_forward.4} parent=23 // pred_check
          %p128 = pneg %p29
        $region26: #{conv_policy_forward.4} parent=23 // pred_check_branch
          %130 = sbr.rel (%p128) target = $region28
        $region27: #{conv_policy_forward.4} parent=23 // pred_region
          %s131 = smul.u32 64, %s9
          %s132 = ssub.s32 144, %s131
          %p133 = scmp.lt.s32.totalorder %s132, 64
          %s134 = scalar_select %p133, %s132, 64
          %s135 = smul.u32 128, %s134
          %p136 = scmp.lt.s32.totalorder %s131, 143
          %s137 = scalar_select %p136, %s131, 143
          %s138 = smul.addr %s137, 8
          %s139 = scalar_lea.vmem %s0, %s138
          %s140 = smul.u32 64, %s9
          %s141 = ssub.s32 144, %s140
          %p142 = scmp.lt.s32.totalorder %s141, 64
          %s143 = scalar_select %p142, %s141, 64
          %s144 = smul.u32 128, %s143
        $region28: #{conv_policy_forward.4} parent=23 // pred_fallthru
          _
      $region24: #{conv_policy_forward.4} parent=5 // pred_fallthru
        _
      %p145 = scmp.le.s32.totalorder 1, %s9
      %p146 = scmp.lt.s32.totalorder %s9, 4
      %p147 = pnand %p145, %p146
      %p148 = pneg %p147
      // Predicated region
      $region29: #{conv_policy_forward.4} parent=5 // pred_check
        _
      $region30: #{conv_policy_forward.4} parent=5 // pred_check_branch
        %150 = sbr.rel (%p147) target = $region32
      $region31: #{conv_policy_forward.4} parent=5 // pred_region
        %s151 = ssub.s32 %s9, 1
        %s152 = smul.u32 64, %s14
        %s153 = ssub.s32 144, %s152
        %p154 = scmp.lt.s32.totalorder %s153, 64
        %s155 = scalar_select %p154, %s153, 64
        %s156 = smul.u32 128, %s155
        %p157 = scmp.lt.s32.totalorder %s152, 143
        %s158 = scalar_select %p157, %s152, 143
        %s159 = smul.addr %s158, 8
        %s160 = scalar_lea.vmem %s0, %s159
        %p161 = pneg %p35
        %p162 = pneg %p32
        %p163 = pneg %p56
        %p164 = pneg %p53
        %p165 = pneg %p77
        %p166 = pneg %p74
        %p167 = pneg %p103
        %p168 = pneg %p100
        %s169 = sand.u32 %s90, 1
        %s170 = sand.u32 %s90, 1
        %s171 = smul.addr %s170, 512
        %s172 = scalar_lea.vmem [#allocation2], %s171
        %s173 = smul.u32 64, %s14
        %s174 = ssub.s32 144, %s173
        %p175 = scmp.lt.s32.totalorder %s174, 64
        %s176 = scalar_select %p175, %s174, 64
        %s177 = smul.u32 128, %s176
        %p178 = scmp.lt.s32.totalorder %s173, 143
        %s179 = scalar_select %p178, %s173, 143
        %s180 = smul.addr %s179, 8
        %s181 = scalar_lea.vmem %s0, %s180
        %s182 = smul.u32 64, %s14
        %s183 = ssub.s32 144, %s182
        %p184 = scmp.lt.s32.totalorder %s183, 64
        %s185 = scalar_select %p184, %s183, 64
        %s186 = smul.u32 128, %s185
        %s187 = smul.u32 64, %s14
        %s188 = ssub.s32 144, %s187
        %p189 = scmp.lt.s32.totalorder %s188, 64
        %s190 = scalar_select %p189, %s188, 64
        %s191 = smul.u32 128, %s190
        %v192 = vld [vmem:[%s181] sm:$0xff]
        %v193 = vld [vmem:[%s181 + $0x8] sm:$0xff]
        %v194 = vld [vmem:[%s181 + $0x10] sm:$0xff]
        %v195 = vld [vmem:[%s181 + $0x18] sm:$0xff]
        %v196 = vld [vmem:[%s181 + $0x20] sm:$0xff]
        %v197 = vld [vmem:[%s181 + $0x28] sm:$0xff]
        %v198 = vld [vmem:[%s181 + $0x30] sm:$0xff]
        %v199 = vld [vmem:[%s181 + $0x38] sm:$0xff]
        %v200 = vld [vmem:[%s181 + $0x40] sm:$0xff]
        %v201 = vld [vmem:[%s181 + $0x48] sm:$0xff]
        %v202 = vld [vmem:[%s181 + $0x50] sm:$0xff]
        %v203 = vld [vmem:[%s181 + $0x58] sm:$0xff]
        %v204 = vld [vmem:[%s181 + $0x60] sm:$0xff]
        %v205 = vld [vmem:[%s181 + $0x68] sm:$0xff]
        %v206 = vld [vmem:[%s181 + $0x70] sm:$0xff]
        %v207 = vld [vmem:[%s181 + $0x78] sm:$0xff]
        %v208 = vld [vmem:[%s181 + $0x80] sm:$0xff]
        %v209 = vld [vmem:[%s181 + $0x88] sm:$0xff]
        %v210 = vld [vmem:[%s181 + $0x90] sm:$0xff]
        %v211 = vld [vmem:[%s181 + $0x98] sm:$0xff]
        %v212 = vld [vmem:[%s181 + $0xa0] sm:$0xff]
        %v213 = vld [vmem:[%s181 + $0xa8] sm:$0xff]
        %v214 = vld [vmem:[%s181 + $0xb0] sm:$0xff]
        %v215 = vld [vmem:[%s181 + $0xb8] sm:$0xff]
        %v216 = vld [vmem:[%s181 + $0xc0] sm:$0xff]
        %v217 = vld [vmem:[%s181 + $0xc8] sm:$0xff]
        %v218 = vld [vmem:[%s181 + $0xd0] sm:$0xff]
        %v219 = vld [vmem:[%s181 + $0xd8] sm:$0xff]
        %v220 = vld [vmem:[%s181 + $0xe0] sm:$0xff]
        %v221 = vld [vmem:[%s181 + $0xe8] sm:$0xff]
        %v222 = vld [vmem:[%s181 + $0xf0] sm:$0xff]
        %v223 = vld [vmem:[%s181 + $0xf8] sm:$0xff]
        %v224 = vld [vmem:[%s181 + $0x100] sm:$0xff]
        %v225 = vld [vmem:[%s181 + $0x108] sm:$0xff]
        %v226 = vld [vmem:[%s181 + $0x110] sm:$0xff]
        %v227 = vld [vmem:[%s181 + $0x118] sm:$0xff]
        %v228 = vld [vmem:[%s181 + $0x120] sm:$0xff]
        %v229 = vld [vmem:[%s181 + $0x128] sm:$0xff]
        %v230 = vld [vmem:[%s181 + $0x130] sm:$0xff]
        %v231 = vld [vmem:[%s181 + $0x138] sm:$0xff]
        %v232 = vld [vmem:[%s181 + $0x140] sm:$0xff]
        %v233 = vld [vmem:[%s181 + $0x148] sm:$0xff]
        %v234 = vld [vmem:[%s181 + $0x150] sm:$0xff]
        %v235 = vld [vmem:[%s181 + $0x158] sm:$0xff]
        %v236 = vld [vmem:[%s181 + $0x160] sm:$0xff]
        %v237 = vld [vmem:[%s181 + $0x168] sm:$0xff]
        %v238 = vld [vmem:[%s181 + $0x170] sm:$0xff]
        %v239 = vld [vmem:[%s181 + $0x178] sm:$0xff]
        %v240 = vld [vmem:[%s181 + $0x180] sm:$0xff]
        %v241 = vld [vmem:[%s181 + $0x188] sm:$0xff]
        %v242 = vld [vmem:[%s181 + $0x190] sm:$0xff]
        %v243 = vld [vmem:[%s181 + $0x198] sm:$0xff]
        %v244 = vld [vmem:[%s181 + $0x1a0] sm:$0xff]
        %v245 = vld [vmem:[%s181 + $0x1a8] sm:$0xff]
        %v246 = vld [vmem:[%s181 + $0x1b0] sm:$0xff]
        %v247 = vld [vmem:[%s181 + $0x1b8] sm:$0xff]
        %v248 = vld [vmem:[%s181 + $0x1c0] sm:$0xff]
        %v249 = vld [vmem:[%s181 + $0x1c8] sm:$0xff]
        %v250 = vld [vmem:[%s181 + $0x1d0] sm:$0xff]
        %v251 = vld [vmem:[%s181 + $0x1d8] sm:$0xff]
        %v252 = vld [vmem:[%s181 + $0x1e0] sm:$0xff]
        %v253 = vld [vmem:[%s181 + $0x1e8] sm:$0xff]
        %v254 = vld [vmem:[%s181 + $0x1f0] sm:$0xff]
        %v255 = vld [vmem:[%s181 + $0x1f8] sm:$0xff]
        %v256 = vld [vmem:[%s1] sm:$0xff]
        %v257 = vld [vmem:[%s1 + $0x8] sm:$0xff]
        %v258 = vld [vmem:[%s1 + $0x10] sm:$0xff]
        %v259 = vld [vmem:[%s1 + $0x18] sm:$0xff]
        %v260 = vld [vmem:[%s1 + $0x20] sm:$0xff]
        %v261 = vld [vmem:[%s1 + $0x28] sm:$0xff]
        %v262 = vld [vmem:[%s1 + $0x30] sm:$0xff]
        %v263 = vld [vmem:[%s1 + $0x38] sm:$0xff]
        %v264 = vld [vmem:[%s2] sm:$0x1]
        %v266 = vlaneseq
        %v267 = vshrl.u32 %v266, 7
        %v268 = vsub.s32 0, %v267
        %v269 = vrot.slane %v264, %v268
        %vm271 = vcmask 523264
        %v273 = vsel %vm271, %v192, 0
        %v276 = vsel %vm271, %v193, 0
        %v279 = vsel %vm271, %v194, 0
        %v282 = vsel %vm271, %v195, 0
        %v285 = vsel %vm271, %v196, 0
        %v288 = vsel %vm271, %v197, 0
        %v291 = vsel %vm271, %v198, 0
        %v294 = vsel %vm271, %v199, 0
        %v297 = vsel %vm271, %v200, 0
        %v300 = vsel %vm271, %v201, 0
        %v303 = vsel %vm271, %v202, 0
        %v306 = vsel %vm271, %v203, 0
        %v309 = vsel %vm271, %v204, 0
        %v312 = vsel %vm271, %v205, 0
        %v315 = vsel %vm271, %v206, 0
        %v318 = vsel %vm271, %v207, 0
        %v321 = vsel %vm271, %v208, 0
        %v324 = vsel %vm271, %v209, 0
        %v327 = vsel %vm271, %v210, 0
        %v330 = vsel %vm271, %v211, 0
        %v333 = vsel %vm271, %v212, 0
        %v336 = vsel %vm271, %v213, 0
        %v339 = vsel %vm271, %v214, 0
        %v342 = vsel %vm271, %v215, 0
        %v345 = vsel %vm271, %v216, 0
        %v348 = vsel %vm271, %v217, 0
        %v351 = vsel %vm271, %v218, 0
        %v354 = vsel %vm271, %v219, 0
        %v357 = vsel %vm271, %v220, 0
        %v360 = vsel %vm271, %v221, 0
        %v363 = vsel %vm271, %v222, 0
        %v366 = vsel %vm271, %v223, 0
        %v369 = vsel %vm271, %v224, 0
        %v372 = vsel %vm271, %v225, 0
        %v375 = vsel %vm271, %v226, 0
        %v378 = vsel %vm271, %v227, 0
        %v381 = vsel %vm271, %v228, 0
        %v384 = vsel %vm271, %v229, 0
        %v387 = vsel %vm271, %v230, 0
        %v390 = vsel %vm271, %v231, 0
        %v393 = vsel %vm271, %v232, 0
        %v396 = vsel %vm271, %v233, 0
        %v399 = vsel %vm271, %v234, 0
        %v402 = vsel %vm271, %v235, 0
        %v405 = vsel %vm271, %v236, 0
        %v408 = vsel %vm271, %v237, 0
        %v411 = vsel %vm271, %v238, 0
        %v414 = vsel %vm271, %v239, 0
        %v417 = vsel %vm271, %v240, 0
        %v420 = vsel %vm271, %v241, 0
        %v423 = vsel %vm271, %v242, 0
        %v426 = vsel %vm271, %v243, 0
        %v429 = vsel %vm271, %v244, 0
        %v432 = vsel %vm271, %v245, 0
        %v435 = vsel %vm271, %v246, 0
        %v438 = vsel %vm271, %v247, 0
        %v441 = vsel %vm271, %v248, 0
        %v444 = vsel %vm271, %v249, 0
        %v447 = vsel %vm271, %v250, 0
        %v450 = vsel %vm271, %v251, 0
        %v453 = vsel %vm271, %v252, 0
        %v456 = vsel %vm271, %v253, 0
        %v459 = vsel %vm271, %v254, 0
        %v462 = vsel %vm271, %v255, 0
        %464 = vmatprep.subr.mxu0 0.0
        %465 = vmatpush1.msra.mxu0 %v256
        %466 = vmatprep.subr.mxu0 0.0
        %467 = vmatpush1.msra.mxu0 %v257
        %468 = vmatprep.subr.mxu0 0.0
        %469 = vmatpush1.msra.mxu0 %v258
        %470 = vmatprep.subr.mxu0 0.0
        %471 = vmatpush1.msra.mxu0 %v259
        %472 = vmatprep.subr.mxu0 0.0
        %473 = vmatpush1.msra.mxu0 %v260
        %474 = vmatprep.subr.mxu0 0.0
        %475 = vmatpush1.msra.mxu0 %v261
        %476 = vmatprep.subr.mxu0 0.0
        %477 = vmatpush1.msra.mxu0 %v262
        %478 = vmatprep.subr.mxu0 0.0
        %479 = vmatpush1.msra.mxu0 %v263
        %480 = vmatprep.subr.mxu0 0.0
        %481 = vmatpush1.msra.mxu0 0.0
        %482 = vmatprep.subr.mxu0 0.0
        %483 = vmatpush1.msra.mxu0 0.0
        %484 = vmatprep.subr.mxu0 0.0
        %485 = vmatpush1.msra.mxu0 0.0
        %486 = vmatprep.subr.mxu0 0.0
        %487 = vmatpush1.msra.mxu0 0.0
        %488 = vmatprep.subr.mxu0 0.0
        %489 = vmatpush1.msra.mxu0 0.0
        %490 = vmatprep.subr.mxu0 0.0
        %491 = vmatpush1.msra.mxu0 0.0
        %492 = vmatprep.subr.mxu0 0.0
        %493 = vmatpush1.msra.mxu0 0.0
        %494 = vmatprep.subr.mxu0 0.0
        %495 = vmatpush1.msra.mxu0 0.0
        %496 = vmatprep.subr.mxu0 0.0
        %497 = vmatpush1.msra.mxu0 0.0
        %498 = vmatprep.subr.mxu0 0.0
        %499 = vmatpush1.msra.mxu0 0.0
        %500 = vmatprep.subr.mxu0 0.0
        %501 = vmatpush1.msra.mxu0 0.0
        %502 = vmatprep.subr.mxu0 0.0
        %503 = vmatpush1.msra.mxu0 0.0
        %504 = vmatprep.subr.mxu0 0.0
        %505 = vmatpush1.msra.mxu0 0.0
        %506 = vmatprep.subr.mxu0 0.0
        %507 = vmatpush1.msra.mxu0 0.0
        %508 = vmatprep.subr.mxu0 0.0
        %509 = vmatpush1.msra.mxu0 0.0
        %510 = vmatprep.subr.mxu0 0.0
        %511 = vmatpush1.msra.mxu0 0.0
        %512 = vmatprep.subr.mxu0 0.0
        %513 = vmatpush1.msra.mxu0 0.0
        %514 = vmatprep.subr.mxu0 0.0
        %515 = vmatpush1.msra.mxu0 0.0
        %516 = vmatprep.subr.mxu0 0.0
        %517 = vmatpush1.msra.mxu0 0.0
        %518 = vmatprep.subr.mxu0 0.0
        %519 = vmatpush1.msra.mxu0 0.0
        %520 = vmatprep.subr.mxu0 0.0
        %521 = vmatpush1.msra.mxu0 0.0
        %522 = vmatprep.subr.mxu0 0.0
        %523 = vmatpush1.msra.mxu0 0.0
        %524 = vmatprep.subr.mxu0 0.0
        %525 = vmatpush1.msra.mxu0 0.0
        %526 = vmatprep.subr.mxu0 0.0
        %527 = vmatpush1.msra.mxu0 0.0
        %528 = vmatprep.mubr.f32.mxu0 0.0
        %529 = vmatmul.mubr.f32.gmra.mrb[0].mxu0 %v273
        %v530 = vpop.f32.mrb[0].mxu0
        %v531 = vadd.f32 %v269, %v530
        %v532 = vpop.f32.mrb[0].mxu0
        %533 = vmatprep.mubr.f32.mxu0 0.0
        %534 = vmatmul.mubr.f32.gmra.mrb[0].mxu0 %v276
        %v535 = vpop.f32.mrb[0].mxu0
        %v536 = vadd.f32 %v269, %v535
        %v537 = vpop.f32.mrb[0].mxu0
        %538 = vmatprep.mubr.f32.mxu0 0.0
        %539 = vmatmul.mubr.f32.gmra.mrb[0].mxu0 %v279
        %v540 = vpop.f32.mrb[0].mxu0
        %v541 = vadd.f32 %v269, %v540
        %v542 = vpop.f32.mrb[0].mxu0
        %543 = vmatprep.mubr.f32.mxu0 0.0
        %544 = vmatmul.mubr.f32.gmra.mrb[0].mxu0 %v282
        %v545 = vpop.f32.mrb[0].mxu0
        %v546 = vadd.f32 %v269, %v545
        %v547 = vpop.f32.mrb[0].mxu0
        %548 = vmatprep.mubr.f32.mxu0 0.0
        %549 = vmatmul.mubr.f32.gmra.mrb[0].mxu0 %v285
        %v550 = vpop.f32.mrb[0].mxu0
        %v551 = vadd.f32 %v269, %v550
        %v552 = vpop.f32.mrb[0].mxu0
        %553 = vmatprep.mubr.f32.mxu0 0.0
        %554 = vmatmul.mubr.f32.gmra.mrb[0].mxu0 %v288
        %v555 = vpop.f32.mrb[0].mxu0
        %v556 = vadd.f32 %v269, %v555
        %v557 = vpop.f32.mrb[0].mxu0
        %558 = vmatprep.mubr.f32.mxu0 0.0
        %559 = vmatmul.mubr.f32.gmra.mrb[0].mxu0 %v291
        %v560 = vpop.f32.mrb[0].mxu0
        %v561 = vadd.f32 %v269, %v560
        %v562 = vpop.f32.mrb[0].mxu0
        %563 = vmatprep.mubr.f32.mxu0 0.0
        %564 = vmatmul.mubr.f32.gmra.mrb[0].mxu0 %v294
        %v565 = vpop.f32.mrb[0].mxu0
        %v566 = vadd.f32 %v269, %v565
        %v567 = vpop.f32.mrb[0].mxu0
        %568 = vmatprep.mubr.f32.mxu0 0.0
        %569 = vmatmul.mubr.f32.gmra.mrb[0].mxu0 %v297
        %v570 = vpop.f32.mrb[0].mxu0
        %v571 = vadd.f32 %v269, %v570
        %v572 = vpop.f32.mrb[0].mxu0
        %573 = vmatprep.mubr.f32.mxu0 0.0
        %574 = vmatmul.mubr.f32.gmra.mrb[0].mxu0 %v300
        %v575 = vpop.f32.mrb[0].mxu0
        %v576 = vadd.f32 %v269, %v575
        %v577 = vpop.f32.mrb[0].mxu0
        %578 = vmatprep.mubr.f32.mxu0 0.0
        %579 = vmatmul.mubr.f32.gmra.mrb[0].mxu0 %v303
        %v580 = vpop.f32.mrb[0].mxu0
        %v581 = vadd.f32 %v269, %v580
        %v582 = vpop.f32.mrb[0].mxu0
        %583 = vmatprep.mubr.f32.mxu0 0.0
        %584 = vmatmul.mubr.f32.gmra.mrb[0].mxu0 %v306
        %v585 = vpop.f32.mrb[0].mxu0
        %v586 = vadd.f32 %v269, %v585
        %v587 = vpop.f32.mrb[0].mxu0
        %588 = vmatprep.mubr.f32.mxu0 0.0
        %589 = vmatmul.mubr.f32.gmra.mrb[0].mxu0 %v309
        %v590 = vpop.f32.mrb[0].mxu0
        %v591 = vadd.f32 %v269, %v590
        %v592 = vpop.f32.mrb[0].mxu0
        %593 = vmatprep.mubr.f32.mxu0 0.0
        %594 = vmatmul.mubr.f32.gmra.mrb[0].mxu0 %v312
        %v595 = vpop.f32.mrb[0].mxu0
        %v596 = vadd.f32 %v269, %v595
        %v597 = vpop.f32.mrb[0].mxu0
        %598 = vmatprep.mubr.f32.mxu0 0.0
        %599 = vmatmul.mubr.f32.gmra.mrb[0].mxu0 %v315
        %v600 = vpop.f32.mrb[0].mxu0
        %v601 = vadd.f32 %v269, %v600
        %v602 = vpop.f32.mrb[0].mxu0
        %603 = vmatprep.mubr.f32.mxu0 0.0
        %604 = vmatmul.mubr.f32.gmra.mrb[0].mxu0 %v318
        %v605 = vpop.f32.mrb[0].mxu0
        %v606 = vadd.f32 %v269, %v605
        %v607 = vpop.f32.mrb[0].mxu0
        %608 = vmatprep.mubr.f32.mxu0 0.0
        %609 = vmatmul.mubr.f32.gmra.mrb[0].mxu0 %v321
        %v610 = vpop.f32.mrb[0].mxu0
        %v611 = vadd.f32 %v269, %v610
        %v612 = vpop.f32.mrb[0].mxu0
        %613 = vmatprep.mubr.f32.mxu0 0.0
        %614 = vmatmul.mubr.f32.gmra.mrb[0].mxu0 %v324
        %v615 = vpop.f32.mrb[0].mxu0
        %v616 = vadd.f32 %v269, %v615
        %v617 = vpop.f32.mrb[0].mxu0
        %618 = vmatprep.mubr.f32.mxu0 0.0
        %619 = vmatmul.mubr.f32.gmra.mrb[0].mxu0 %v327
        %v620 = vpop.f32.mrb[0].mxu0
        %v621 = vadd.f32 %v269, %v620
        %v622 = vpop.f32.mrb[0].mxu0
        %623 = vmatprep.mubr.f32.mxu0 0.0
        %624 = vmatmul.mubr.f32.gmra.mrb[0].mxu0 %v330
        %v625 = vpop.f32.mrb[0].mxu0
        %v626 = vadd.f32 %v269, %v625
        %v627 = vpop.f32.mrb[0].mxu0
        %628 = vmatprep.mubr.f32.mxu0 0.0
        %629 = vmatmul.mubr.f32.gmra.mrb[0].mxu0 %v333
        %v630 = vpop.f32.mrb[0].mxu0
        %v631 = vadd.f32 %v269, %v630
        %v632 = vpop.f32.mrb[0].mxu0
        %633 = vmatprep.mubr.f32.mxu0 0.0
        %634 = vmatmul.mubr.f32.gmra.mrb[0].mxu0 %v336
        %v635 = vpop.f32.mrb[0].mxu0
        %v636 = vadd.f32 %v269, %v635
        %v637 = vpop.f32.mrb[0].mxu0
        %638 = vmatprep.mubr.f32.mxu0 0.0
        %639 = vmatmul.mubr.f32.gmra.mrb[0].mxu0 %v339
        %v640 = vpop.f32.mrb[0].mxu0
        %v641 = vadd.f32 %v269, %v640
        %v642 = vpop.f32.mrb[0].mxu0
        %643 = vmatprep.mubr.f32.mxu0 0.0
        %644 = vmatmul.mubr.f32.gmra.mrb[0].mxu0 %v342
        %v645 = vpop.f32.mrb[0].mxu0
        %v646 = vadd.f32 %v269, %v645
        %v647 = vpop.f32.mrb[0].mxu0
        %648 = vmatprep.mubr.f32.mxu0 0.0
        %649 = vmatmul.mubr.f32.gmra.mrb[0].mxu0 %v345
        %v650 = vpop.f32.mrb[0].mxu0
        %v651 = vadd.f32 %v269, %v650
        %v652 = vpop.f32.mrb[0].mxu0
        %653 = vmatprep.mubr.f32.mxu0 0.0
        %654 = vmatmul.mubr.f32.gmra.mrb[0].mxu0 %v348
        %v655 = vpop.f32.mrb[0].mxu0
        %v656 = vadd.f32 %v269, %v655
        %v657 = vpop.f32.mrb[0].mxu0
        %658 = vmatprep.mubr.f32.mxu0 0.0
        %659 = vmatmul.mubr.f32.gmra.mrb[0].mxu0 %v351
        %v660 = vpop.f32.mrb[0].mxu0
        %v661 = vadd.f32 %v269, %v660
        %v662 = vpop.f32.mrb[0].mxu0
        %663 = vmatprep.mubr.f32.mxu0 0.0
        %664 = vmatmul.mubr.f32.gmra.mrb[0].mxu0 %v354
        %v665 = vpop.f32.mrb[0].mxu0
        %v666 = vadd.f32 %v269, %v665
        %v667 = vpop.f32.mrb[0].mxu0
        %668 = vmatprep.mubr.f32.mxu0 0.0
        %669 = vmatmul.mubr.f32.gmra.mrb[0].mxu0 %v357
        %v670 = vpop.f32.mrb[0].mxu0
        %v671 = vadd.f32 %v269, %v670
        %v672 = vpop.f32.mrb[0].mxu0
        %673 = vmatprep.mubr.f32.mxu0 0.0
        %674 = vmatmul.mubr.f32.gmra.mrb[0].mxu0 %v360
        %v675 = vpop.f32.mrb[0].mxu0
        %v676 = vadd.f32 %v269, %v675
        %v677 = vpop.f32.mrb[0].mxu0
        %678 = vmatprep.mubr.f32.mxu0 0.0
        %679 = vmatmul.mubr.f32.gmra.mrb[0].mxu0 %v363
        %v680 = vpop.f32.mrb[0].mxu0
        %v681 = vadd.f32 %v269, %v680
        %v682 = vpop.f32.mrb[0].mxu0
        %683 = vmatprep.mubr.f32.mxu0 0.0
        %684 = vmatmul.mubr.f32.gmra.mrb[0].mxu0 %v366
        %v685 = vpop.f32.mrb[0].mxu0
        %v686 = vadd.f32 %v269, %v685
        %v687 = vpop.f32.mrb[0].mxu0
        %688 = vmatprep.mubr.f32.mxu0 0.0
        %689 = vmatmul.mubr.f32.gmra.mrb[0].mxu0 %v369
        %v690 = vpop.f32.mrb[0].mxu0
        %v691 = vadd.f32 %v269, %v690
        %v692 = vpop.f32.mrb[0].mxu0
        %693 = vmatprep.mubr.f32.mxu0 0.0
        %694 = vmatmul.mubr.f32.gmra.mrb[0].mxu0 %v372
        %v695 = vpop.f32.mrb[0].mxu0
        %v696 = vadd.f32 %v269, %v695
        %v697 = vpop.f32.mrb[0].mxu0
        %698 = vmatprep.mubr.f32.mxu0 0.0
        %699 = vmatmul.mubr.f32.gmra.mrb[0].mxu0 %v375
        %v700 = vpop.f32.mrb[0].mxu0
        %v701 = vadd.f32 %v269, %v700
        %v702 = vpop.f32.mrb[0].mxu0
        %703 = vmatprep.mubr.f32.mxu0 0.0
        %704 = vmatmul.mubr.f32.gmra.mrb[0].mxu0 %v378
        %v705 = vpop.f32.mrb[0].mxu0
        %v706 = vadd.f32 %v269, %v705
        %v707 = vpop.f32.mrb[0].mxu0
        %708 = vmatprep.mubr.f32.mxu0 0.0
        %709 = vmatmul.mubr.f32.gmra.mrb[0].mxu0 %v381
        %v710 = vpop.f32.mrb[0].mxu0
        %v711 = vadd.f32 %v269, %v710
        %v712 = vpop.f32.mrb[0].mxu0
        %713 = vmatprep.mubr.f32.mxu0 0.0
        %714 = vmatmul.mubr.f32.gmra.mrb[0].mxu0 %v384
        %v715 = vpop.f32.mrb[0].mxu0
        %v716 = vadd.f32 %v269, %v715
        %v717 = vpop.f32.mrb[0].mxu0
        %718 = vmatprep.mubr.f32.mxu0 0.0
        %719 = vmatmul.mubr.f32.gmra.mrb[0].mxu0 %v387
        %v720 = vpop.f32.mrb[0].mxu0
        %v721 = vadd.f32 %v269, %v720
        %v722 = vpop.f32.mrb[0].mxu0
        %723 = vmatprep.mubr.f32.mxu0 0.0
        %724 = vmatmul.mubr.f32.gmra.mrb[0].mxu0 %v390
        %v725 = vpop.f32.mrb[0].mxu0
        %v726 = vadd.f32 %v269, %v725
        %v727 = vpop.f32.mrb[0].mxu0
        %728 = vmatprep.mubr.f32.mxu0 0.0
        %729 = vmatmul.mubr.f32.gmra.mrb[0].mxu0 %v393
        %v730 = vpop.f32.mrb[0].mxu0
        %v731 = vadd.f32 %v269, %v730
        %v732 = vpop.f32.mrb[0].mxu0
        %733 = vmatprep.mubr.f32.mxu0 0.0
        %734 = vmatmul.mubr.f32.gmra.mrb[0].mxu0 %v396
        %v735 = vpop.f32.mrb[0].mxu0
        %v736 = vadd.f32 %v269, %v735
        %v737 = vpop.f32.mrb[0].mxu0
        %738 = vmatprep.mubr.f32.mxu0 0.0
        %739 = vmatmul.mubr.f32.gmra.mrb[0].mxu0 %v399
        %v740 = vpop.f32.mrb[0].mxu0
        %v741 = vadd.f32 %v269, %v740
        %v742 = vpop.f32.mrb[0].mxu0
        %743 = vmatprep.mubr.f32.mxu0 0.0
        %744 = vmatmul.mubr.f32.gmra.mrb[0].mxu0 %v402
        %v745 = vpop.f32.mrb[0].mxu0
        %v746 = vadd.f32 %v269, %v745
        %v747 = vpop.f32.mrb[0].mxu0
        %748 = vmatprep.mubr.f32.mxu0 0.0
        %749 = vmatmul.mubr.f32.gmra.mrb[0].mxu0 %v405
        %v750 = vpop.f32.mrb[0].mxu0
        %v751 = vadd.f32 %v269, %v750
        %v752 = vpop.f32.mrb[0].mxu0
        %753 = vmatprep.mubr.f32.mxu0 0.0
        %754 = vmatmul.mubr.f32.gmra.mrb[0].mxu0 %v408
        %v755 = vpop.f32.mrb[0].mxu0
        %v756 = vadd.f32 %v269, %v755
        %v757 = vpop.f32.mrb[0].mxu0
        %758 = vmatprep.mubr.f32.mxu0 0.0
        %759 = vmatmul.mubr.f32.gmra.mrb[0].mxu0 %v411
        %v760 = vpop.f32.mrb[0].mxu0
        %v761 = vadd.f32 %v269, %v760
        %v762 = vpop.f32.mrb[0].mxu0
        %763 = vmatprep.mubr.f32.mxu0 0.0
        %764 = vmatmul.mubr.f32.gmra.mrb[0].mxu0 %v414
        %v765 = vpop.f32.mrb[0].mxu0
        %v766 = vadd.f32 %v269, %v765
        %v767 = vpop.f32.mrb[0].mxu0
        %768 = vmatprep.mubr.f32.mxu0 0.0
        %769 = vmatmul.mubr.f32.gmra.mrb[0].mxu0 %v417
        %v770 = vpop.f32.mrb[0].mxu0
        %v771 = vadd.f32 %v269, %v770
        %v772 = vpop.f32.mrb[0].mxu0
        %773 = vmatprep.mubr.f32.mxu0 0.0
        %774 = vmatmul.mubr.f32.gmra.mrb[0].mxu0 %v420
        %v775 = vpop.f32.mrb[0].mxu0
        %v776 = vadd.f32 %v269, %v775
        %v777 = vpop.f32.mrb[0].mxu0
        %778 = vmatprep.mubr.f32.mxu0 0.0
        %779 = vmatmul.mubr.f32.gmra.mrb[0].mxu0 %v423
        %v780 = vpop.f32.mrb[0].mxu0
        %v781 = vadd.f32 %v269, %v780
        %v782 = vpop.f32.mrb[0].mxu0
        %783 = vmatprep.mubr.f32.mxu0 0.0
        %784 = vmatmul.mubr.f32.gmra.mrb[0].mxu0 %v426
        %v785 = vpop.f32.mrb[0].mxu0
        %v786 = vadd.f32 %v269, %v785
        %v787 = vpop.f32.mrb[0].mxu0
        %788 = vmatprep.mubr.f32.mxu0 0.0
        %789 = vmatmul.mubr.f32.gmra.mrb[0].mxu0 %v429
        %v790 = vpop.f32.mrb[0].mxu0
        %v791 = vadd.f32 %v269, %v790
        %v792 = vpop.f32.mrb[0].mxu0
        %793 = vmatprep.mubr.f32.mxu0 0.0
        %794 = vmatmul.mubr.f32.gmra.mrb[0].mxu0 %v432
        %v795 = vpop.f32.mrb[0].mxu0
        %v796 = vadd.f32 %v269, %v795
        %v797 = vpop.f32.mrb[0].mxu0
        %798 = vmatprep.mubr.f32.mxu0 0.0
        %799 = vmatmul.mubr.f32.gmra.mrb[0].mxu0 %v435
        %v800 = vpop.f32.mrb[0].mxu0
        %v801 = vadd.f32 %v269, %v800
        %v802 = vpop.f32.mrb[0].mxu0
        %803 = vmatprep.mubr.f32.mxu0 0.0
        %804 = vmatmul.mubr.f32.gmra.mrb[0].mxu0 %v438
        %v805 = vpop.f32.mrb[0].mxu0
        %v806 = vadd.f32 %v269, %v805
        %v807 = vpop.f32.mrb[0].mxu0
        %808 = vmatprep.mubr.f32.mxu0 0.0
        %809 = vmatmul.mubr.f32.gmra.mrb[0].mxu0 %v441
        %v810 = vpop.f32.mrb[0].mxu0
        %v811 = vadd.f32 %v269, %v810
        %v812 = vpop.f32.mrb[0].mxu0
        %813 = vmatprep.mubr.f32.mxu0 0.0
        %814 = vmatmul.mubr.f32.gmra.mrb[0].mxu0 %v444
        %v815 = vpop.f32.mrb[0].mxu0
        %v816 = vadd.f32 %v269, %v815
        %v817 = vpop.f32.mrb[0].mxu0
        %818 = vmatprep.mubr.f32.mxu0 0.0
        %819 = vmatmul.mubr.f32.gmra.mrb[0].mxu0 %v447
        %v820 = vpop.f32.mrb[0].mxu0
        %v821 = vadd.f32 %v269, %v820
        %v822 = vpop.f32.mrb[0].mxu0
        %823 = vmatprep.mubr.f32.mxu0 0.0
        %824 = vmatmul.mubr.f32.gmra.mrb[0].mxu0 %v450
        %v825 = vpop.f32.mrb[0].mxu0
        %v826 = vadd.f32 %v269, %v825
        %v827 = vpop.f32.mrb[0].mxu0
        %828 = vmatprep.mubr.f32.mxu0 0.0
        %829 = vmatmul.mubr.f32.gmra.mrb[0].mxu0 %v453
        %v830 = vpop.f32.mrb[0].mxu0
        %v831 = vadd.f32 %v269, %v830
        %v832 = vpop.f32.mrb[0].mxu0
        %833 = vmatprep.mubr.f32.mxu0 0.0
        %834 = vmatmul.mubr.f32.gmra.mrb[0].mxu0 %v456
        %v835 = vpop.f32.mrb[0].mxu0
        %v836 = vadd.f32 %v269, %v835
        %v837 = vpop.f32.mrb[0].mxu0
        %838 = vmatprep.mubr.f32.mxu0 0.0
        %839 = vmatmul.mubr.f32.gmra.mrb[0].mxu0 %v459
        %v840 = vpop.f32.mrb[0].mxu0
        %v841 = vadd.f32 %v269, %v840
        %v842 = vpop.f32.mrb[0].mxu0
        %843 = vmatprep.mubr.f32.mxu0 0.0
        %844 = vmatmul.mubr.f32.gmra.mrb[0].mxu0 %v462
        %v845 = vpop.f32.mrb[0].mxu0
        %v846 = vadd.f32 %v269, %v845
        %v847 = vpop.f32.mrb[0].mxu0
        %848 = vdwg.mxu0
        %v849 = vmax.f32 %v531, 0.0
        %v850 = vmax.f32 %v536, 0.0
        %v851 = vmax.f32 %v541, 0.0
        %v852 = vmax.f32 %v546, 0.0
        %v853 = vmax.f32 %v551, 0.0
        %v854 = vmax.f32 %v556, 0.0
        %v855 = vmax.f32 %v561, 0.0
        %v856 = vmax.f32 %v566, 0.0
        %v857 = vmax.f32 %v571, 0.0
        %v858 = vmax.f32 %v576, 0.0
        %v859 = vmax.f32 %v581, 0.0
        %v860 = vmax.f32 %v586, 0.0
        %v861 = vmax.f32 %v591, 0.0
        %v862 = vmax.f32 %v596, 0.0
        %v863 = vmax.f32 %v601, 0.0
        %v864 = vmax.f32 %v606, 0.0
        %v865 = vmax.f32 %v611, 0.0
        %v866 = vmax.f32 %v616, 0.0
        %v867 = vmax.f32 %v621, 0.0
        %v868 = vmax.f32 %v626, 0.0
        %v869 = vmax.f32 %v631, 0.0
        %v870 = vmax.f32 %v636, 0.0
        %v871 = vmax.f32 %v641, 0.0
        %v872 = vmax.f32 %v646, 0.0
        %v873 = vmax.f32 %v651, 0.0
        %v874 = vmax.f32 %v656, 0.0
        %v875 = vmax.f32 %v661, 0.0
        %v876 = vmax.f32 %v666, 0.0
        %v877 = vmax.f32 %v671, 0.0
        %v878 = vmax.f32 %v676, 0.0
        %v879 = vmax.f32 %v681, 0.0
        %v880 = vmax.f32 %v686, 0.0
        %v881 = vmax.f32 %v691, 0.0
        %v882 = vmax.f32 %v696, 0.0
        %v883 = vmax.f32 %v701, 0.0
        %v884 = vmax.f32 %v706, 0.0
        %v885 = vmax.f32 %v711, 0.0
        %v886 = vmax.f32 %v716, 0.0
        %v887 = vmax.f32 %v721, 0.0
        %v888 = vmax.f32 %v726, 0.0
        %v889 = vmax.f32 %v731, 0.0
        %v890 = vmax.f32 %v736, 0.0
        %v891 = vmax.f32 %v741, 0.0
        %v892 = vmax.f32 %v746, 0.0
        %v893 = vmax.f32 %v751, 0.0
        %v894 = vmax.f32 %v756, 0.0
        %v895 = vmax.f32 %v761, 0.0
        %v896 = vmax.f32 %v766, 0.0
        %v897 = vmax.f32 %v771, 0.0
        %v898 = vmax.f32 %v776, 0.0
        %v899 = vmax.f32 %v781, 0.0
        %v900 = vmax.f32 %v786, 0.0
        %v901 = vmax.f32 %v791, 0.0
        %v902 = vmax.f32 %v796, 0.0
        %v903 = vmax.f32 %v801, 0.0
        %v904 = vmax.f32 %v806, 0.0
        %v905 = vmax.f32 %v811, 0.0
        %v906 = vmax.f32 %v816, 0.0
        %v907 = vmax.f32 %v821, 0.0
        %v908 = vmax.f32 %v826, 0.0
        %v909 = vmax.f32 %v831, 0.0
        %v910 = vmax.f32 %v836, 0.0
        %v911 = vmax.f32 %v841, 0.0
        %v912 = vmax.f32 %v846, 0.0
        %913 = vst [vmem:[%s172] sm:$0xff] %v849
        %914 = vst [vmem:[%s172 + $0x8] sm:$0xff] %v850
        %915 = vst [vmem:[%s172 + $0x10] sm:$0xff] %v851
        %916 = vst [vmem:[%s172 + $0x18] sm:$0xff] %v852
        %917 = vst [vmem:[%s172 + $0x20] sm:$0xff] %v853
        %918 = vst [vmem:[%s172 + $0x28] sm:$0xff] %v854
        %919 = vst [vmem:[%s172 + $0x30] sm:$0xff] %v855
        %920 = vst [vmem:[%s172 + $0x38] sm:$0xff] %v856
        %921 = vst [vmem:[%s172 + $0x40] sm:$0xff] %v857
        %922 = vst [vmem:[%s172 + $0x48] sm:$0xff] %v858
        %923 = vst [vmem:[%s172 + $0x50] sm:$0xff] %v859
        %924 = vst [vmem:[%s172 + $0x58] sm:$0xff] %v860
        %925 = vst [vmem:[%s172 + $0x60] sm:$0xff] %v861
        %926 = vst [vmem:[%s172 + $0x68] sm:$0xff] %v862
        %927 = vst [vmem:[%s172 + $0x70] sm:$0xff] %v863
        %928 = vst [vmem:[%s172 + $0x78] sm:$0xff] %v864
        %929 = vst [vmem:[%s172 + $0x80] sm:$0xff] %v865
        %930 = vst [vmem:[%s172 + $0x88] sm:$0xff] %v866
        %931 = vst [vmem:[%s172 + $0x90] sm:$0xff] %v867
        %932 = vst [vmem:[%s172 + $0x98] sm:$0xff] %v868
        %933 = vst [vmem:[%s172 + $0xa0] sm:$0xff] %v869
        %934 = vst [vmem:[%s172 + $0xa8] sm:$0xff] %v870
        %935 = vst [vmem:[%s172 + $0xb0] sm:$0xff] %v871
        %936 = vst [vmem:[%s172 + $0xb8] sm:$0xff] %v872
        %937 = vst [vmem:[%s172 + $0xc0] sm:$0xff] %v873
        %938 = vst [vmem:[%s172 + $0xc8] sm:$0xff] %v874
        %939 = vst [vmem:[%s172 + $0xd0] sm:$0xff] %v875
        %940 = vst [vmem:[%s172 + $0xd8] sm:$0xff] %v876
        %941 = vst [vmem:[%s172 + $0xe0] sm:$0xff] %v877
        %942 = vst [vmem:[%s172 + $0xe8] sm:$0xff] %v878
        %943 = vst [vmem:[%s172 + $0xf0] sm:$0xff] %v879
        %944 = vst [vmem:[%s172 + $0xf8] sm:$0xff] %v880
        %945 = vst [vmem:[%s172 + $0x100] sm:$0xff] %v881
        %946 = vst [vmem:[%s172 + $0x108] sm:$0xff] %v882
        %947 = vst [vmem:[%s172 + $0x110] sm:$0xff] %v883
        %948 = vst [vmem:[%s172 + $0x118] sm:$0xff] %v884
        %949 = vst [vmem:[%s172 + $0x120] sm:$0xff] %v885
        %950 = vst [vmem:[%s172 + $0x128] sm:$0xff] %v886
        %951 = vst [vmem:[%s172 + $0x130] sm:$0xff] %v887
        %952 = vst [vmem:[%s172 + $0x138] sm:$0xff] %v888
        %953 = vst [vmem:[%s172 + $0x140] sm:$0xff] %v889
        %954 = vst [vmem:[%s172 + $0x148] sm:$0xff] %v890
        %955 = vst [vmem:[%s172 + $0x150] sm:$0xff] %v891
        %956 = vst [vmem:[%s172 + $0x158] sm:$0xff] %v892
        %957 = vst [vmem:[%s172 + $0x160] sm:$0xff] %v893
        %958 = vst [vmem:[%s172 + $0x168] sm:$0xff] %v894
        %959 = vst [vmem:[%s172 + $0x170] sm:$0xff] %v895
        %960 = vst [vmem:[%s172 + $0x178] sm:$0xff] %v896
        %961 = vst [vmem:[%s172 + $0x180] sm:$0xff] %v897
        %962 = vst [vmem:[%s172 + $0x188] sm:$0xff] %v898
        %963 = vst [vmem:[%s172 + $0x190] sm:$0xff] %v899
        %964 = vst [vmem:[%s172 + $0x198] sm:$0xff] %v900
        %965 = vst [vmem:[%s172 + $0x1a0] sm:$0xff] %v901
        %966 = vst [vmem:[%s172 + $0x1a8] sm:$0xff] %v902
        %967 = vst [vmem:[%s172 + $0x1b0] sm:$0xff] %v903
        %968 = vst [vmem:[%s172 + $0x1b8] sm:$0xff] %v904
        %969 = vst [vmem:[%s172 + $0x1c0] sm:$0xff] %v905
        %970 = vst [vmem:[%s172 + $0x1c8] sm:$0xff] %v906
        %971 = vst [vmem:[%s172 + $0x1d0] sm:$0xff] %v907
        %972 = vst [vmem:[%s172 + $0x1d8] sm:$0xff] %v908
        %973 = vst [vmem:[%s172 + $0x1e0] sm:$0xff] %v909
        %974 = vst [vmem:[%s172 + $0x1e8] sm:$0xff] %v910
        %975 = vst [vmem:[%s172 + $0x1f0] sm:$0xff] %v911
        %976 = vst [vmem:[%s172 + $0x1f8] sm:$0xff] %v912
        %s977 = sand.u32 %s90, 1
        %s978 = sand.u32 %s90, 1
        %s979 = smul.addr %s978, 512
        %s980 = scalar_lea.vmem [#allocation2], %s979
        // Predicated region
        $region33: #{conv_policy_forward.4} parent=31 // pred_check
          %p981 = pneg %p100
        $region34: #{conv_policy_forward.4} parent=31 // pred_check_branch
          %983 = sbr.rel (%p981) target = $region36
        $region35: #{conv_policy_forward.4} parent=31 // pred_region
          %s984 = smul.u32 64, %s14
          %s985 = ssub.s32 144, %s984
          %p986 = scmp.lt.s32.totalorder %s985, 64
          %s987 = scalar_select %p986, %s985, 64
          %s988 = smul.u32 128, %s987
          %p989 = scmp.ne.s32.totalorder 0, %s988
          %s990 = smul.addr %s984, 8
          %s991 = scalar_lea.vmem %s3, %s990
          // Predicated region
          $region37: #{conv_policy_forward.4} parent=35 // pred_check
            %p992 = pneg %p989
          $region38: #{conv_policy_forward.4} parent=35 // pred_check_branch
            %994 = sbr.rel (%p992) target = $region40
          $region39: #{conv_policy_forward.4} parent=35 // pred_region
            // Predicated region
            $region41: #{conv_policy_forward.4} parent=39 // pred_check
              _
            $region42: #{conv_policy_forward.4} parent=39 // pred_check_branch
              %996 = sbr.rel (0) target = $region44
            $region43: #{conv_policy_forward.4} parent=39 // pred_region
              // Predicated region
              $region63: #{conv_policy_forward.4} parent=43 // pred_check
                _
              $region64: #{conv_policy_forward.4} parent=43 // pred_check_branch
                %1171 = sbr.rel (0) target = $region66
              $region65: #{conv_policy_forward.4} parent=43 // pred_region
                %s1172 = sshrl.u32 %s987, 6
                // While loop
                $region67: #{conv_policy_forward.4} parent=65 // loop_pre_header
                  _
                $region68: #{conv_policy_forward.4} parent=65 // loop_header
                  %s1174 = sphi 0, %s1176
                  %p1175 = scmp.ge.s32.totalorder %s1174, %s1172
                  %s1179 = sphi 0, %s1312
                  %s1180 = sphi %s980, %s1315
                  %s1181 = sphi %s991, %s1316
                $region69: #{conv_policy_forward.4} parent=65 // loop_header_branch
                  %1178 = sbr.rel (%p1175) target = $region73
                $region70: #{conv_policy_forward.4} parent=65 // loop_body
                  %v1182 = vld [vmem:[%s1180] sm:$0xff]
                  %1183 = vst [vmem:[%s1181] sm:$0xff] %v1182
                  %v1184 = vld [vmem:[%s1180 + $0x8] sm:$0xff]
                  %1185 = vst [vmem:[%s1181 + $0x8] sm:$0xff] %v1184
                  %v1186 = vld [vmem:[%s1180 + $0x10] sm:$0xff]
                  %1187 = vst [vmem:[%s1181 + $0x10] sm:$0xff] %v1186
                  %v1188 = vld [vmem:[%s1180 + $0x18] sm:$0xff]
                  %1189 = vst [vmem:[%s1181 + $0x18] sm:$0xff] %v1188
                  %v1190 = vld [vmem:[%s1180 + $0x20] sm:$0xff]
                  %1191 = vst [vmem:[%s1181 + $0x20] sm:$0xff] %v1190
                  %v1192 = vld [vmem:[%s1180 + $0x28] sm:$0xff]
                  %1193 = vst [vmem:[%s1181 + $0x28] sm:$0xff] %v1192
                  %v1194 = vld [vmem:[%s1180 + $0x30] sm:$0xff]
                  %1195 = vst [vmem:[%s1181 + $0x30] sm:$0xff] %v1194
                  %v1196 = vld [vmem:[%s1180 + $0x38] sm:$0xff]
                  %1197 = vst [vmem:[%s1181 + $0x38] sm:$0xff] %v1196
                  %v1198 = vld [vmem:[%s1180 + $0x40] sm:$0xff]
                  %1199 = vst [vmem:[%s1181 + $0x40] sm:$0xff] %v1198
                  %v1200 = vld [vmem:[%s1180 + $0x48] sm:$0xff]
                  %1201 = vst [vmem:[%s1181 + $0x48] sm:$0xff] %v1200
                  %v1202 = vld [vmem:[%s1180 + $0x50] sm:$0xff]
                  %1203 = vst [vmem:[%s1181 + $0x50] sm:$0xff] %v1202
                  %v1204 = vld [vmem:[%s1180 + $0x58] sm:$0xff]
                  %1205 = vst [vmem:[%s1181 + $0x58] sm:$0xff] %v1204
                  %v1206 = vld [vmem:[%s1180 + $0x60] sm:$0xff]
                  %1207 = vst [vmem:[%s1181 + $0x60] sm:$0xff] %v1206
                  %v1208 = vld [vmem:[%s1180 + $0x68] sm:$0xff]
                  %1209 = vst [vmem:[%s1181 + $0x68] sm:$0xff] %v1208
                  %v1210 = vld [vmem:[%s1180 + $0x70] sm:$0xff]
                  %1211 = vst [vmem:[%s1181 + $0x70] sm:$0xff] %v1210
                  %v1212 = vld [vmem:[%s1180 + $0x78] sm:$0xff]
                  %1213 = vst [vmem:[%s1181 + $0x78] sm:$0xff] %v1212
                  %v1214 = vld [vmem:[%s1180 + $0x80] sm:$0xff]
                  %1215 = vst [vmem:[%s1181 + $0x80] sm:$0xff] %v1214
                  %v1216 = vld [vmem:[%s1180 + $0x88] sm:$0xff]
                  %1217 = vst [vmem:[%s1181 + $0x88] sm:$0xff] %v1216
                  %v1218 = vld [vmem:[%s1180 + $0x90] sm:$0xff]
                  %1219 = vst [vmem:[%s1181 + $0x90] sm:$0xff] %v1218
                  %v1220 = vld [vmem:[%s1180 + $0x98] sm:$0xff]
                  %1221 = vst [vmem:[%s1181 + $0x98] sm:$0xff] %v1220
                  %v1222 = vld [vmem:[%s1180 + $0xa0] sm:$0xff]
                  %1223 = vst [vmem:[%s1181 + $0xa0] sm:$0xff] %v1222
                  %v1224 = vld [vmem:[%s1180 + $0xa8] sm:$0xff]
                  %1225 = vst [vmem:[%s1181 + $0xa8] sm:$0xff] %v1224
                  %v1226 = vld [vmem:[%s1180 + $0xb0] sm:$0xff]
                  %1227 = vst [vmem:[%s1181 + $0xb0] sm:$0xff] %v1226
                  %v1228 = vld [vmem:[%s1180 + $0xb8] sm:$0xff]
                  %1229 = vst [vmem:[%s1181 + $0xb8] sm:$0xff] %v1228
                  %v1230 = vld [vmem:[%s1180 + $0xc0] sm:$0xff]
                  %1231 = vst [vmem:[%s1181 + $0xc0] sm:$0xff] %v1230
                  %v1232 = vld [vmem:[%s1180 + $0xc8] sm:$0xff]
                  %1233 = vst [vmem:[%s1181 + $0xc8] sm:$0xff] %v1232
                  %v1234 = vld [vmem:[%s1180 + $0xd0] sm:$0xff]
                  %1235 = vst [vmem:[%s1181 + $0xd0] sm:$0xff] %v1234
                  %v1236 = vld [vmem:[%s1180 + $0xd8] sm:$0xff]
                  %1237 = vst [vmem:[%s1181 + $0xd8] sm:$0xff] %v1236
                  %v1238 = vld [vmem:[%s1180 + $0xe0] sm:$0xff]
                  %1239 = vst [vmem:[%s1181 + $0xe0] sm:$0xff] %v1238
                  %v1240 = vld [vmem:[%s1180 + $0xe8] sm:$0xff]
                  %1241 = vst [vmem:[%s1181 + $0xe8] sm:$0xff] %v1240
                  %v1242 = vld [vmem:[%s1180 + $0xf0] sm:$0xff]
                  %1243 = vst [vmem:[%s1181 + $0xf0] sm:$0xff] %v1242
                  %v1244 = vld [vmem:[%s1180 + $0xf8] sm:$0xff]
                  %1245 = vst [vmem:[%s1181 + $0xf8] sm:$0xff] %v1244
                  %v1246 = vld [vmem:[%s1180 + $0x100] sm:$0xff]
                  %1247 = vst [vmem:[%s1181 + $0x100] sm:$0xff] %v1246
                  %v1248 = vld [vmem:[%s1180 + $0x108] sm:$0xff]
                  %1249 = vst [vmem:[%s1181 + $0x108] sm:$0xff] %v1248
                  %v1250 = vld [vmem:[%s1180 + $0x110] sm:$0xff]
                  %1251 = vst [vmem:[%s1181 + $0x110] sm:$0xff] %v1250
                  %v1252 = vld [vmem:[%s1180 + $0x118] sm:$0xff]
                  %1253 = vst [vmem:[%s1181 + $0x118] sm:$0xff] %v1252
                  %v1254 = vld [vmem:[%s1180 + $0x120] sm:$0xff]
                  %1255 = vst [vmem:[%s1181 + $0x120] sm:$0xff] %v1254
                  %v1256 = vld [vmem:[%s1180 + $0x128] sm:$0xff]
                  %1257 = vst [vmem:[%s1181 + $0x128] sm:$0xff] %v1256
                  %v1258 = vld [vmem:[%s1180 + $0x130] sm:$0xff]
                  %1259 = vst [vmem:[%s1181 + $0x130] sm:$0xff] %v1258
                  %v1260 = vld [vmem:[%s1180 + $0x138] sm:$0xff]
                  %1261 = vst [vmem:[%s1181 + $0x138] sm:$0xff] %v1260
                  %v1262 = vld [vmem:[%s1180 + $0x140] sm:$0xff]
                  %1263 = vst [vmem:[%s1181 + $0x140] sm:$0xff] %v1262
                  %v1264 = vld [vmem:[%s1180 + $0x148] sm:$0xff]
                  %1265 = vst [vmem:[%s1181 + $0x148] sm:$0xff] %v1264
                  %v1266 = vld [vmem:[%s1180 + $0x150] sm:$0xff]
                  %1267 = vst [vmem:[%s1181 + $0x150] sm:$0xff] %v1266
                  %v1268 = vld [vmem:[%s1180 + $0x158] sm:$0xff]
                  %1269 = vst [vmem:[%s1181 + $0x158] sm:$0xff] %v1268
                  %v1270 = vld [vmem:[%s1180 + $0x160] sm:$0xff]
                  %1271 = vst [vmem:[%s1181 + $0x160] sm:$0xff] %v1270
                  %v1272 = vld [vmem:[%s1180 + $0x168] sm:$0xff]
                  %1273 = vst [vmem:[%s1181 + $0x168] sm:$0xff] %v1272
                  %v1274 = vld [vmem:[%s1180 + $0x170] sm:$0xff]
                  %1275 = vst [vmem:[%s1181 + $0x170] sm:$0xff] %v1274
                  %v1276 = vld [vmem:[%s1180 + $0x178] sm:$0xff]
                  %1277 = vst [vmem:[%s1181 + $0x178] sm:$0xff] %v1276
                  %v1278 = vld [vmem:[%s1180 + $0x180] sm:$0xff]
                  %1279 = vst [vmem:[%s1181 + $0x180] sm:$0xff] %v1278
                  %v1280 = vld [vmem:[%s1180 + $0x188] sm:$0xff]
                  %1281 = vst [vmem:[%s1181 + $0x188] sm:$0xff] %v1280
                  %v1282 = vld [vmem:[%s1180 + $0x190] sm:$0xff]
                  %1283 = vst [vmem:[%s1181 + $0x190] sm:$0xff] %v1282
                  %v1284 = vld [vmem:[%s1180 + $0x198] sm:$0xff]
                  %1285 = vst [vmem:[%s1181 + $0x198] sm:$0xff] %v1284
                  %v1286 = vld [vmem:[%s1180 + $0x1a0] sm:$0xff]
                  %1287 = vst [vmem:[%s1181 + $0x1a0] sm:$0xff] %v1286
                  %v1288 = vld [vmem:[%s1180 + $0x1a8] sm:$0xff]
                  %1289 = vst [vmem:[%s1181 + $0x1a8] sm:$0xff] %v1288
                  %v1290 = vld [vmem:[%s1180 + $0x1b0] sm:$0xff]
                  %1291 = vst [vmem:[%s1181 + $0x1b0] sm:$0xff] %v1290
                  %v1292 = vld [vmem:[%s1180 + $0x1b8] sm:$0xff]
                  %1293 = vst [vmem:[%s1181 + $0x1b8] sm:$0xff] %v1292
                  %v1294 = vld [vmem:[%s1180 + $0x1c0] sm:$0xff]
                  %1295 = vst [vmem:[%s1181 + $0x1c0] sm:$0xff] %v1294
                  %v1296 = vld [vmem:[%s1180 + $0x1c8] sm:$0xff]
                  %1297 = vst [vmem:[%s1181 + $0x1c8] sm:$0xff] %v1296
                  %v1298 = vld [vmem:[%s1180 + $0x1d0] sm:$0xff]
                  %1299 = vst [vmem:[%s1181 + $0x1d0] sm:$0xff] %v1298
                  %v1300 = vld [vmem:[%s1180 + $0x1d8] sm:$0xff]
                  %1301 = vst [vmem:[%s1181 + $0x1d8] sm:$0xff] %v1300
                  %v1302 = vld [vmem:[%s1180 + $0x1e0] sm:$0xff]
                  %1303 = vst [vmem:[%s1181 + $0x1e0] sm:$0xff] %v1302
                  %v1304 = vld [vmem:[%s1180 + $0x1e8] sm:$0xff]
                  %1305 = vst [vmem:[%s1181 + $0x1e8] sm:$0xff] %v1304
                  %v1306 = vld [vmem:[%s1180 + $0x1f0] sm:$0xff]
                  %1307 = vst [vmem:[%s1181 + $0x1f0] sm:$0xff] %v1306
                  %v1308 = vld [vmem:[%s1180 + $0x1f8] sm:$0xff]
                  %1309 = vst [vmem:[%s1181 + $0x1f8] sm:$0xff] %v1308
                  %s1310 = sadd.s32 1, %s1179
                  %p1311 = scmp.ge.s32.totalorder %s1310, %s1172
                  %s1312 = scalar_select %p1311, 0, %s1310
                  %s1313 = smul.u32 %s1312, 512
                  %s1314 = smul.u32 %s1312, 512
                  %s1315 = scalar_lea.vmem %s980, %s1313 [#allocation2]
                  %s1316 = scalar_lea.vmem %s991, %s1314
                $region71: #{conv_policy_forward.4} parent=65 // loop_footer
                  %s1176 = sadd.s32 %s1174, 1
                $region72: #{conv_policy_forward.4} parent=65 // loop_footer_branch
                  %1173 = sbr.rel target = $region68
                $region73: #{conv_policy_forward.4} parent=65 // loop_exit
                  _
                %s1317 = sshrl.u32 %s987, 6
                %s1318 = sand.u32 %s987, 63
                %s1319 = smul.u32 %s1317, 64
                %s1320 = smul.u32 8, %s1319
                %s1321 = scalar_lea.vmem %s980, %s1320 [#allocation2]
                %s1322 = smul.u32 8, %s1319
                %s1323 = scalar_lea.vmem %s991, %s1322
                // While loop
                $region74: #{conv_policy_forward.4} parent=65 // loop_pre_header
                  _
                $region75: #{conv_policy_forward.4} parent=65 // loop_header
                  %s1325 = sphi 0, %s1327
                  %p1326 = scmp.ge.s32.totalorder %s1325, %s1318
                  %s1330 = sphi 0, %s1337
                  %s1331 = sphi %s1321, %s1340
                  %s1332 = sphi %s1323, %s1341
                $region76: #{conv_policy_forward.4} parent=65 // loop_header_branch
                  %1329 = sbr.rel (%p1326) target = $region80
                $region77: #{conv_policy_forward.4} parent=65 // loop_body
                  %v1333 = vld [vmem:[%s1331] sm:$0xff]
                  %1334 = vst [vmem:[%s1332] sm:$0xff] %v1333
                  %s1335 = sadd.s32 1, %s1330
                  %p1336 = scmp.ge.s32.totalorder %s1335, %s1318
                  %s1337 = scalar_select %p1336, 0, %s1335
                  %s1338 = smul.u32 %s1337, 8
                  %s1339 = smul.u32 %s1337, 8
                  %s1340 = scalar_lea.vmem %s1321, %s1338 [#allocation2]
                  %s1341 = scalar_lea.vmem %s1323, %s1339
                $region78: #{conv_policy_forward.4} parent=65 // loop_footer
                  %s1327 = sadd.s32 %s1325, 1
                $region79: #{conv_policy_forward.4} parent=65 // loop_footer_branch
                  %1324 = sbr.rel target = $region75
                $region80: #{conv_policy_forward.4} parent=65 // loop_exit
                  _
              $region66: #{conv_policy_forward.4} parent=43 // pred_fallthru
                _
              // Predicated region
              $region81: #{conv_policy_forward.4} parent=43 // pred_check
                _
              $region82: #{conv_policy_forward.4} parent=43 // pred_check_branch
                %1343 = sbr.rel target = $region84
              $region83: #{conv_policy_forward.4} parent=43 // pred_region
                _
              $region84: #{conv_policy_forward.4} parent=43 // pred_fallthru
                _
            $region44: #{conv_policy_forward.4} parent=39 // pred_fallthru
              _
            // Predicated region
            $region45: #{conv_policy_forward.4} parent=39 // pred_check
              _
            $region46: #{conv_policy_forward.4} parent=39 // pred_check_branch
              %998 = sbr.rel target = $region48
            $region47: #{conv_policy_forward.4} parent=39 // pred_region
              %s1000 = sshrl.u32 %s987, 6
              // While loop
              $region49: #{conv_policy_forward.4} parent=47 // loop_pre_header
                _
              $region50: #{conv_policy_forward.4} parent=47 // loop_header
                %s1002 = sphi 0, %s1004
                %p1003 = scmp.ge.s32.totalorder %s1002, %s1000
                %s1007 = sphi 0, %s1140
                %s1008 = sphi %s980, %s1143
                %s1009 = sphi %s991, %s1144
              $region51: #{conv_policy_forward.4} parent=47 // loop_header_branch
                %1006 = sbr.rel (%p1003) target = $region55
              $region52: #{conv_policy_forward.4} parent=47 // loop_body
                %v1010 = vld [vmem:[%s1008] sm:$0xff]
                %1011 = vst [vmem:[%s1009] sm:$0xff] %v1010
                %v1012 = vld [vmem:[%s1008 + $0x8] sm:$0xff]
                %1013 = vst [vmem:[%s1009 + $0x8] sm:$0xff] %v1012
                %v1014 = vld [vmem:[%s1008 + $0x10] sm:$0xff]
                %1015 = vst [vmem:[%s1009 + $0x10] sm:$0xff] %v1014
                %v1016 = vld [vmem:[%s1008 + $0x18] sm:$0xff]
                %1017 = vst [vmem:[%s1009 + $0x18] sm:$0xff] %v1016
                %v1018 = vld [vmem:[%s1008 + $0x20] sm:$0xff]
                %1019 = vst [vmem:[%s1009 + $0x20] sm:$0xff] %v1018
                %v1020 = vld [vmem:[%s1008 + $0x28] sm:$0xff]
                %1021 = vst [vmem:[%s1009 + $0x28] sm:$0xff] %v1020
                %v1022 = vld [vmem:[%s1008 + $0x30] sm:$0xff]
                %1023 = vst [vmem:[%s1009 + $0x30] sm:$0xff] %v1022
                %v1024 = vld [vmem:[%s1008 + $0x38] sm:$0xff]
                %1025 = vst [vmem:[%s1009 + $0x38] sm:$0xff] %v1024
                %v1026 = vld [vmem:[%s1008 + $0x40] sm:$0xff]
                %1027 = vst [vmem:[%s1009 + $0x40] sm:$0xff] %v1026
                %v1028 = vld [vmem:[%s1008 + $0x48] sm:$0xff]
                %1029 = vst [vmem:[%s1009 + $0x48] sm:$0xff] %v1028
                %v1030 = vld [vmem:[%s1008 + $0x50] sm:$0xff]
                %1031 = vst [vmem:[%s1009 + $0x50] sm:$0xff] %v1030
                %v1032 = vld [vmem:[%s1008 + $0x58] sm:$0xff]
                %1033 = vst [vmem:[%s1009 + $0x58] sm:$0xff] %v1032
                %v1034 = vld [vmem:[%s1008 + $0x60] sm:$0xff]
                %1035 = vst [vmem:[%s1009 + $0x60] sm:$0xff] %v1034
                %v1036 = vld [vmem:[%s1008 + $0x68] sm:$0xff]
                %1037 = vst [vmem:[%s1009 + $0x68] sm:$0xff] %v1036
                %v1038 = vld [vmem:[%s1008 + $0x70] sm:$0xff]
                %1039 = vst [vmem:[%s1009 + $0x70] sm:$0xff] %v1038
                %v1040 = vld [vmem:[%s1008 + $0x78] sm:$0xff]
                %1041 = vst [vmem:[%s1009 + $0x78] sm:$0xff] %v1040
                %v1042 = vld [vmem:[%s1008 + $0x80] sm:$0xff]
                %1043 = vst [vmem:[%s1009 + $0x80] sm:$0xff] %v1042
                %v1044 = vld [vmem:[%s1008 + $0x88] sm:$0xff]
                %1045 = vst [vmem:[%s1009 + $0x88] sm:$0xff] %v1044
                %v1046 = vld [vmem:[%s1008 + $0x90] sm:$0xff]
                %1047 = vst [vmem:[%s1009 + $0x90] sm:$0xff] %v1046
                %v1048 = vld [vmem:[%s1008 + $0x98] sm:$0xff]
                %1049 = vst [vmem:[%s1009 + $0x98] sm:$0xff] %v1048
                %v1050 = vld [vmem:[%s1008 + $0xa0] sm:$0xff]
                %1051 = vst [vmem:[%s1009 + $0xa0] sm:$0xff] %v1050
                %v1052 = vld [vmem:[%s1008 + $0xa8] sm:$0xff]
                %1053 = vst [vmem:[%s1009 + $0xa8] sm:$0xff] %v1052
                %v1054 = vld [vmem:[%s1008 + $0xb0] sm:$0xff]
                %1055 = vst [vmem:[%s1009 + $0xb0] sm:$0xff] %v1054
                %v1056 = vld [vmem:[%s1008 + $0xb8] sm:$0xff]
                %1057 = vst [vmem:[%s1009 + $0xb8] sm:$0xff] %v1056
                %v1058 = vld [vmem:[%s1008 + $0xc0] sm:$0xff]
                %1059 = vst [vmem:[%s1009 + $0xc0] sm:$0xff] %v1058
                %v1060 = vld [vmem:[%s1008 + $0xc8] sm:$0xff]
                %1061 = vst [vmem:[%s1009 + $0xc8] sm:$0xff] %v1060
                %v1062 = vld [vmem:[%s1008 + $0xd0] sm:$0xff]
                %1063 = vst [vmem:[%s1009 + $0xd0] sm:$0xff] %v1062
                %v1064 = vld [vmem:[%s1008 + $0xd8] sm:$0xff]
                %1065 = vst [vmem:[%s1009 + $0xd8] sm:$0xff] %v1064
                %v1066 = vld [vmem:[%s1008 + $0xe0] sm:$0xff]
                %1067 = vst [vmem:[%s1009 + $0xe0] sm:$0xff] %v1066
                %v1068 = vld [vmem:[%s1008 + $0xe8] sm:$0xff]
                %1069 = vst [vmem:[%s1009 + $0xe8] sm:$0xff] %v1068
                %v1070 = vld [vmem:[%s1008 + $0xf0] sm:$0xff]
                %1071 = vst [vmem:[%s1009 + $0xf0] sm:$0xff] %v1070
                %v1072 = vld [vmem:[%s1008 + $0xf8] sm:$0xff]
                %1073 = vst [vmem:[%s1009 + $0xf8] sm:$0xff] %v1072
                %v1074 = vld [vmem:[%s1008 + $0x100] sm:$0xff]
                %1075 = vst [vmem:[%s1009 + $0x100] sm:$0xff] %v1074
                %v1076 = vld [vmem:[%s1008 + $0x108] sm:$0xff]
                %1077 = vst [vmem:[%s1009 + $0x108] sm:$0xff] %v1076
                %v1078 = vld [vmem:[%s1008 + $0x110] sm:$0xff]
                %1079 = vst [vmem:[%s1009 + $0x110] sm:$0xff] %v1078
                %v1080 = vld [vmem:[%s1008 + $0x118] sm:$0xff]
                %1081 = vst [vmem:[%s1009 + $0x118] sm:$0xff] %v1080
                %v1082 = vld [vmem:[%s1008 + $0x120] sm:$0xff]
                %1083 = vst [vmem:[%s1009 + $0x120] sm:$0xff] %v1082
                %v1084 = vld [vmem:[%s1008 + $0x128] sm:$0xff]
                %1085 = vst [vmem:[%s1009 + $0x128] sm:$0xff] %v1084
                %v1086 = vld [vmem:[%s1008 + $0x130] sm:$0xff]
                %1087 = vst [vmem:[%s1009 + $0x130] sm:$0xff] %v1086
                %v1088 = vld [vmem:[%s1008 + $0x138] sm:$0xff]
                %1089 = vst [vmem:[%s1009 + $0x138] sm:$0xff] %v1088
                %v1090 = vld [vmem:[%s1008 + $0x140] sm:$0xff]
                %1091 = vst [vmem:[%s1009 + $0x140] sm:$0xff] %v1090
                %v1092 = vld [vmem:[%s1008 + $0x148] sm:$0xff]
                %1093 = vst [vmem:[%s1009 + $0x148] sm:$0xff] %v1092
                %v1094 = vld [vmem:[%s1008 + $0x150] sm:$0xff]
                %1095 = vst [vmem:[%s1009 + $0x150] sm:$0xff] %v1094
                %v1096 = vld [vmem:[%s1008 + $0x158] sm:$0xff]
                %1097 = vst [vmem:[%s1009 + $0x158] sm:$0xff] %v1096
                %v1098 = vld [vmem:[%s1008 + $0x160] sm:$0xff]
                %1099 = vst [vmem:[%s1009 + $0x160] sm:$0xff] %v1098
                %v1100 = vld [vmem:[%s1008 + $0x168] sm:$0xff]
                %1101 = vst [vmem:[%s1009 + $0x168] sm:$0xff] %v1100
                %v1102 = vld [vmem:[%s1008 + $0x170] sm:$0xff]
                %1103 = vst [vmem:[%s1009 + $0x170] sm:$0xff] %v1102
                %v1104 = vld [vmem:[%s1008 + $0x178] sm:$0xff]
                %1105 = vst [vmem:[%s1009 + $0x178] sm:$0xff] %v1104
                %v1106 = vld [vmem:[%s1008 + $0x180] sm:$0xff]
                %1107 = vst [vmem:[%s1009 + $0x180] sm:$0xff] %v1106
                %v1108 = vld [vmem:[%s1008 + $0x188] sm:$0xff]
                %1109 = vst [vmem:[%s1009 + $0x188] sm:$0xff] %v1108
                %v1110 = vld [vmem:[%s1008 + $0x190] sm:$0xff]
                %1111 = vst [vmem:[%s1009 + $0x190] sm:$0xff] %v1110
                %v1112 = vld [vmem:[%s1008 + $0x198] sm:$0xff]
                %1113 = vst [vmem:[%s1009 + $0x198] sm:$0xff] %v1112
                %v1114 = vld [vmem:[%s1008 + $0x1a0] sm:$0xff]
                %1115 = vst [vmem:[%s1009 + $0x1a0] sm:$0xff] %v1114
                %v1116 = vld [vmem:[%s1008 + $0x1a8] sm:$0xff]
                %1117 = vst [vmem:[%s1009 + $0x1a8] sm:$0xff] %v1116
                %v1118 = vld [vmem:[%s1008 + $0x1b0] sm:$0xff]
                %1119 = vst [vmem:[%s1009 + $0x1b0] sm:$0xff] %v1118
                %v1120 = vld [vmem:[%s1008 + $0x1b8] sm:$0xff]
                %1121 = vst [vmem:[%s1009 + $0x1b8] sm:$0xff] %v1120
                %v1122 = vld [vmem:[%s1008 + $0x1c0] sm:$0xff]
                %1123 = vst [vmem:[%s1009 + $0x1c0] sm:$0xff] %v1122
                %v1124 = vld [vmem:[%s1008 + $0x1c8] sm:$0xff]
                %1125 = vst [vmem:[%s1009 + $0x1c8] sm:$0xff] %v1124
                %v1126 = vld [vmem:[%s1008 + $0x1d0] sm:$0xff]
                %1127 = vst [vmem:[%s1009 + $0x1d0] sm:$0xff] %v1126
                %v1128 = vld [vmem:[%s1008 + $0x1d8] sm:$0xff]
                %1129 = vst [vmem:[%s1009 + $0x1d8] sm:$0xff] %v1128
                %v1130 = vld [vmem:[%s1008 + $0x1e0] sm:$0xff]
                %1131 = vst [vmem:[%s1009 + $0x1e0] sm:$0xff] %v1130
                %v1132 = vld [vmem:[%s1008 + $0x1e8] sm:$0xff]
                %1133 = vst [vmem:[%s1009 + $0x1e8] sm:$0xff] %v1132
                %v1134 = vld [vmem:[%s1008 + $0x1f0] sm:$0xff]
                %1135 = vst [vmem:[%s1009 + $0x1f0] sm:$0xff] %v1134
                %v1136 = vld [vmem:[%s1008 + $0x1f8] sm:$0xff]
                %1137 = vst [vmem:[%s1009 + $0x1f8] sm:$0xff] %v1136
                %s1138 = sadd.s32 1, %s1007
                %p1139 = scmp.ge.s32.totalorder %s1138, %s1000
                %s1140 = scalar_select %p1139, 0, %s1138
                %s1141 = smul.u32 %s1140, 512
                %s1142 = smul.u32 %s1140, 512
                %s1143 = scalar_lea.vmem %s980, %s1141 [#allocation2]
                %s1144 = scalar_lea.vmem %s991, %s1142
              $region53: #{conv_policy_forward.4} parent=47 // loop_footer
                %s1004 = sadd.s32 %s1002, 1
              $region54: #{conv_policy_forward.4} parent=47 // loop_footer_branch
                %1001 = sbr.rel target = $region50
              $region55: #{conv_policy_forward.4} parent=47 // loop_exit
                _
              %s1145 = sshrl.u32 %s987, 6
              %s1146 = sand.u32 %s987, 63
              %s1147 = smul.u32 %s1145, 64
              %s1148 = smul.u32 8, %s1147
              %s1149 = scalar_lea.vmem %s980, %s1148 [#allocation2]
              %s1150 = smul.u32 8, %s1147
              %s1151 = scalar_lea.vmem %s991, %s1150
              // While loop
              $region56: #{conv_policy_forward.4} parent=47 // loop_pre_header
                _
              $region57: #{conv_policy_forward.4} parent=47 // loop_header
                %s1153 = sphi 0, %s1155
                %p1154 = scmp.ge.s32.totalorder %s1153, %s1146
                %s1158 = sphi 0, %s1165
                %s1159 = sphi %s1149, %s1168
                %s1160 = sphi %s1151, %s1169
              $region58: #{conv_policy_forward.4} parent=47 // loop_header_branch
                %1157 = sbr.rel (%p1154) target = $region62
              $region59: #{conv_policy_forward.4} parent=47 // loop_body
                %v1161 = vld [vmem:[%s1159] sm:$0xff]
                %1162 = vst [vmem:[%s1160] sm:$0xff] %v1161
                %s1163 = sadd.s32 1, %s1158
                %p1164 = scmp.ge.s32.totalorder %s1163, %s1146
                %s1165 = scalar_select %p1164, 0, %s1163
                %s1166 = smul.u32 %s1165, 8
                %s1167 = smul.u32 %s1165, 8
                %s1168 = scalar_lea.vmem %s1149, %s1166 [#allocation2]
                %s1169 = scalar_lea.vmem %s1151, %s1167
              $region60: #{conv_policy_forward.4} parent=47 // loop_footer
                %s1155 = sadd.s32 %s1153, 1
              $region61: #{conv_policy_forward.4} parent=47 // loop_footer_branch
                %1152 = sbr.rel target = $region57
              $region62: #{conv_policy_forward.4} parent=47 // loop_exit
                _
            $region48: #{conv_policy_forward.4} parent=39 // pred_fallthru
              _
          $region40: #{conv_policy_forward.4} parent=35 // pred_fallthru
            _
          %1344 = vnop
        $region36: #{conv_policy_forward.4} parent=31 // pred_fallthru
          _
      $region32: #{conv_policy_forward.4} parent=5 // pred_fallthru
        _
      %p1345 = scmp.le.s32.totalorder 2, %s9
      // Predicated region
      $region85: #{conv_policy_forward.4} parent=5 // pred_check
        %p1346 = pneg %p1345
      $region86: #{conv_policy_forward.4} parent=5 // pred_check_branch
        %1348 = sbr.rel (%p1346) target = $region88
      $region87: #{conv_policy_forward.4} parent=5 // pred_region
        %s1349 = ssub.s32 %s9, 2
        // Predicated region
        $region89: #{conv_policy_forward.4} parent=87 // pred_check
          %p1350 = pneg %p106
        $region90: #{conv_policy_forward.4} parent=87 // pred_check_branch
          %1352 = sbr.rel (%p1350) target = $region92
        $region91: #{conv_policy_forward.4} parent=87 // pred_region
          %s1353 = sand.u32 %s91, 1
          %s1354 = sand.u32 %s91, 1
          %s1355 = smul.addr %s1354, 512
          %s1356 = scalar_lea.vmem [#allocation2], %s1355
        $region92: #{conv_policy_forward.4} parent=87 // pred_fallthru
          _
      $region88: #{conv_policy_forward.4} parent=5 // pred_fallthru
        _
    $region6: #{conv_policy_forward.4} parent=1 // loop_footer
      %s13 = sadd.s32 1, %s9
    $region7: #{conv_policy_forward.4} parent=1 // loop_footer_branch
      %8 = sbr.rel target = $region3
    $region8: #{conv_policy_forward.4} parent=1 // loop_exit
      _

// kernel: conv_policy_forward.5
$region0: #{conv_policy_forward.5}
  #allocation0 [shape = 'u32[]', space=smem, size = 0x4, offset = 0x4, fixed_abs, tag = 'smem constant byte address 0x4 - core index']
  #allocation1 [shape = 'u32[144,128]{1,0:T(1,128)}', space=vmem, size = 0x12000, scoped, tag = 'internal scratch']
  %s0 = inlined_call_operand.vmem [shape: f32[128,1152], index: 0, kind: input, shape index: {}]
  %s1 = inlined_call_operand.vmem [shape: f32[1152,128], index: 1, kind: input, shape index: {}]
  %s2 = inlined_call_operand.vmem [shape: f32[1,128], index: 2, kind: input, shape index: {}]
  %s3 = inlined_call_operand.vmem [shape: f32[128,128], index: 3, kind: output, shape index: {}]
  %s4 = sld [smem:[#allocation0]]
  $region22: #{conv_policy_forward.5} parent=0
    _
  %s6 = ssub.s32 1, %s4
  %s7 = scalar_select 0, %s6, %s4
  // Predicated region
  $region2: #{conv_policy_forward.5} parent=0 // pred_check
    _
  $region3: #{conv_policy_forward.5} parent=0 // pred_check_branch
    %9 = sbr.rel (0) target = $region5
  $region4: #{conv_policy_forward.5} parent=0 // pred_region
    _
  $region5: #{conv_policy_forward.5} parent=0 // pred_fallthru
    _
  // Predicated region
  $region6: #{conv_policy_forward.5} parent=0 // pred_check
    _
  $region7: #{conv_policy_forward.5} parent=0 // pred_check_branch
    %11 = sbr.rel (0) target = $region9
  $region8: #{conv_policy_forward.5} parent=0 // pred_region
    _
  $region9: #{conv_policy_forward.5} parent=0 // pred_fallthru
    _
  // Predicated region
  $region10: #{conv_policy_forward.5} parent=0 // pred_check
    _
  $region11: #{conv_policy_forward.5} parent=0 // pred_check_branch
    %13 = sbr.rel (0) target = $region13
  $region12: #{conv_policy_forward.5} parent=0 // pred_region
    _
  $region13: #{conv_policy_forward.5} parent=0 // pred_fallthru
    _
  %v14 = vld [vmem:[%s0] sm:$0xff]
  %v15 = vld [vmem:[%s0 + $0x8] sm:$0xff]
  %v16 = vld [vmem:[%s0 + $0x10] sm:$0xff]
  %v17 = vld [vmem:[%s0 + $0x18] sm:$0xff]
  %v18 = vld [vmem:[%s0 + $0x20] sm:$0xff]
  %v19 = vld [vmem:[%s0 + $0x28] sm:$0xff]
  %v20 = vld [vmem:[%s0 + $0x30] sm:$0xff]
  %v21 = vld [vmem:[%s0 + $0x38] sm:$0xff]
  %v22 = vld [vmem:[%s0 + $0x40] sm:$0xff]
  %v23 = vld [vmem:[%s0 + $0x48] sm:$0xff]
  %v24 = vld [vmem:[%s0 + $0x50] sm:$0xff]
  %v25 = vld [vmem:[%s0 + $0x58] sm:$0xff]
  %v26 = vld [vmem:[%s0 + $0x60] sm:$0xff]
  %v27 = vld [vmem:[%s0 + $0x68] sm:$0xff]
  %v28 = vld [vmem:[%s0 + $0x70] sm:$0xff]
  %v29 = vld [vmem:[%s0 + $0x78] sm:$0xff]
  %v30 = vld [vmem:[%s0 + $0x80] sm:$0xff]
  %v31 = vld [vmem:[%s0 + $0x88] sm:$0xff]
  %v32 = vld [vmem:[%s0 + $0x90] sm:$0xff]
  %v33 = vld [vmem:[%s0 + $0x98] sm:$0xff]
  %v34 = vld [vmem:[%s0 + $0xa0] sm:$0xff]
  %v35 = vld [vmem:[%s0 + $0xa8] sm:$0xff]
  %v36 = vld [vmem:[%s0 + $0xb0] sm:$0xff]
  %v37 = vld [vmem:[%s0 + $0xb8] sm:$0xff]
  %v38 = vld [vmem:[%s0 + $0xc0] sm:$0xff]
  %v39 = vld [vmem:[%s0 + $0xc8] sm:$0xff]
  %v40 = vld [vmem:[%s0 + $0xd0] sm:$0xff]
  %v41 = vld [vmem:[%s0 + $0xd8] sm:$0xff]
  %v42 = vld [vmem:[%s0 + $0xe0] sm:$0xff]
  %v43 = vld [vmem:[%s0 + $0xe8] sm:$0xff]
  %v44 = vld [vmem:[%s0 + $0xf0] sm:$0xff]
  %v45 = vld [vmem:[%s0 + $0xf8] sm:$0xff]
  %v46 = vld [vmem:[%s0 + $0x100] sm:$0xff]
  %v47 = vld [vmem:[%s0 + $0x108] sm:$0xff]
  %v48 = vld [vmem:[%s0 + $0x110] sm:$0xff]
  %v49 = vld [vmem:[%s0 + $0x118] sm:$0xff]
  %v50 = vld [vmem:[%s0 + $0x120] sm:$0xff]
  %v51 = vld [vmem:[%s0 + $0x128] sm:$0xff]
  %v52 = vld [vmem:[%s0 + $0x130] sm:$0xff]
  %v53 = vld [vmem:[%s0 + $0x138] sm:$0xff]
  %v54 = vld [vmem:[%s0 + $0x140] sm:$0xff]
  %v55 = vld [vmem:[%s0 + $0x148] sm:$0xff]
  %v56 = vld [vmem:[%s0 + $0x150] sm:$0xff]
  %v57 = vld [vmem:[%s0 + $0x158] sm:$0xff]
  %v58 = vld [vmem:[%s0 + $0x160] sm:$0xff]
  %v59 = vld [vmem:[%s0 + $0x168] sm:$0xff]
  %v60 = vld [vmem:[%s0 + $0x170] sm:$0xff]
  %v61 = vld [vmem:[%s0 + $0x178] sm:$0xff]
  %v62 = vld [vmem:[%s0 + $0x180] sm:$0xff]
  %v63 = vld [vmem:[%s0 + $0x188] sm:$0xff]
  %v64 = vld [vmem:[%s0 + $0x190] sm:$0xff]
  %v65 = vld [vmem:[%s0 + $0x198] sm:$0xff]
  %v66 = vld [vmem:[%s0 + $0x1a0] sm:$0xff]
  %v67 = vld [vmem:[%s0 + $0x1a8] sm:$0xff]
  %v68 = vld [vmem:[%s0 + $0x1b0] sm:$0xff]
  %v69 = vld [vmem:[%s0 + $0x1b8] sm:$0xff]
  %v70 = vld [vmem:[%s0 + $0x1c0] sm:$0xff]
  %v71 = vld [vmem:[%s0 + $0x1c8] sm:$0xff]
  %v72 = vld [vmem:[%s0 + $0x1d0] sm:$0xff]
  %v73 = vld [vmem:[%s0 + $0x1d8] sm:$0xff]
  %v74 = vld [vmem:[%s0 + $0x1e0] sm:$0xff]
  %v75 = vld [vmem:[%s0 + $0x1e8] sm:$0xff]
  %v76 = vld [vmem:[%s0 + $0x1f0] sm:$0xff]
  %v77 = vld [vmem:[%s0 + $0x1f8] sm:$0xff]
  %v78 = vld [vmem:[%s0 + $0x200] sm:$0xff]
  %v79 = vld [vmem:[%s0 + $0x208] sm:$0xff]
  %v80 = vld [vmem:[%s0 + $0x210] sm:$0xff]
  %v81 = vld [vmem:[%s0 + $0x218] sm:$0xff]
  %v82 = vld [vmem:[%s0 + $0x220] sm:$0xff]
  %v83 = vld [vmem:[%s0 + $0x228] sm:$0xff]
  %v84 = vld [vmem:[%s0 + $0x230] sm:$0xff]
  %v85 = vld [vmem:[%s0 + $0x238] sm:$0xff]
  %v86 = vld [vmem:[%s0 + $0x240] sm:$0xff]
  %v87 = vld [vmem:[%s0 + $0x248] sm:$0xff]
  %v88 = vld [vmem:[%s0 + $0x250] sm:$0xff]
  %v89 = vld [vmem:[%s0 + $0x258] sm:$0xff]
  %v90 = vld [vmem:[%s0 + $0x260] sm:$0xff]
  %v91 = vld [vmem:[%s0 + $0x268] sm:$0xff]
  %v92 = vld [vmem:[%s0 + $0x270] sm:$0xff]
  %v93 = vld [vmem:[%s0 + $0x278] sm:$0xff]
  %v94 = vld [vmem:[%s0 + $0x280] sm:$0xff]
  %v95 = vld [vmem:[%s0 + $0x288] sm:$0xff]
  %v96 = vld [vmem:[%s0 + $0x290] sm:$0xff]
  %v97 = vld [vmem:[%s0 + $0x298] sm:$0xff]
  %v98 = vld [vmem:[%s0 + $0x2a0] sm:$0xff]
  %v99 = vld [vmem:[%s0 + $0x2a8] sm:$0xff]
  %v100 = vld [vmem:[%s0 + $0x2b0] sm:$0xff]
  %v101 = vld [vmem:[%s0 + $0x2b8] sm:$0xff]
  %v102 = vld [vmem:[%s0 + $0x2c0] sm:$0xff]
  %v103 = vld [vmem:[%s0 + $0x2c8] sm:$0xff]
  %v104 = vld [vmem:[%s0 + $0x2d0] sm:$0xff]
  %v105 = vld [vmem:[%s0 + $0x2d8] sm:$0xff]
  %v106 = vld [vmem:[%s0 + $0x2e0] sm:$0xff]
  %v107 = vld [vmem:[%s0 + $0x2e8] sm:$0xff]
  %v108 = vld [vmem:[%s0 + $0x2f0] sm:$0xff]
  %v109 = vld [vmem:[%s0 + $0x2f8] sm:$0xff]
  %v110 = vld [vmem:[%s0 + $0x300] sm:$0xff]
  %v111 = vld [vmem:[%s0 + $0x308] sm:$0xff]
  %v112 = vld [vmem:[%s0 + $0x310] sm:$0xff]
  %v113 = vld [vmem:[%s0 + $0x318] sm:$0xff]
  %v114 = vld [vmem:[%s0 + $0x320] sm:$0xff]
  %v115 = vld [vmem:[%s0 + $0x328] sm:$0xff]
  %v116 = vld [vmem:[%s0 + $0x330] sm:$0xff]
  %v117 = vld [vmem:[%s0 + $0x338] sm:$0xff]
  %v118 = vld [vmem:[%s0 + $0x340] sm:$0xff]
  %v119 = vld [vmem:[%s0 + $0x348] sm:$0xff]
  %v120 = vld [vmem:[%s0 + $0x350] sm:$0xff]
  %v121 = vld [vmem:[%s0 + $0x358] sm:$0xff]
  %v122 = vld [vmem:[%s0 + $0x360] sm:$0xff]
  %v123 = vld [vmem:[%s0 + $0x368] sm:$0xff]
  %v124 = vld [vmem:[%s0 + $0x370] sm:$0xff]
  %v125 = vld [vmem:[%s0 + $0x378] sm:$0xff]
  %v126 = vld [vmem:[%s0 + $0x380] sm:$0xff]
  %v127 = vld [vmem:[%s0 + $0x388] sm:$0xff]
  %v128 = vld [vmem:[%s0 + $0x390] sm:$0xff]
  %v129 = vld [vmem:[%s0 + $0x398] sm:$0xff]
  %v130 = vld [vmem:[%s0 + $0x3a0] sm:$0xff]
  %v131 = vld [vmem:[%s0 + $0x3a8] sm:$0xff]
  %v132 = vld [vmem:[%s0 + $0x3b0] sm:$0xff]
  %v133 = vld [vmem:[%s0 + $0x3b8] sm:$0xff]
  %v134 = vld [vmem:[%s0 + $0x3c0] sm:$0xff]
  %v135 = vld [vmem:[%s0 + $0x3c8] sm:$0xff]
  %v136 = vld [vmem:[%s0 + $0x3d0] sm:$0xff]
  %v137 = vld [vmem:[%s0 + $0x3d8] sm:$0xff]
  %v138 = vld [vmem:[%s0 + $0x3e0] sm:$0xff]
  %v139 = vld [vmem:[%s0 + $0x3e8] sm:$0xff]
  %v140 = vld [vmem:[%s0 + $0x3f0] sm:$0xff]
  %v141 = vld [vmem:[%s0 + $0x3f8] sm:$0xff]
  %v142 = vld [vmem:[%s0 + $0x400] sm:$0xff]
  %v143 = vld [vmem:[%s0 + $0x408] sm:$0xff]
  %v144 = vld [vmem:[%s0 + $0x410] sm:$0xff]
  %v145 = vld [vmem:[%s0 + $0x418] sm:$0xff]
  %v146 = vld [vmem:[%s0 + $0x420] sm:$0xff]
  %v147 = vld [vmem:[%s0 + $0x428] sm:$0xff]
  %v148 = vld [vmem:[%s0 + $0x430] sm:$0xff]
  %v149 = vld [vmem:[%s0 + $0x438] sm:$0xff]
  %v150 = vld [vmem:[%s0 + $0x440] sm:$0xff]
  %v151 = vld [vmem:[%s0 + $0x448] sm:$0xff]
  %v152 = vld [vmem:[%s0 + $0x450] sm:$0xff]
  %v153 = vld [vmem:[%s0 + $0x458] sm:$0xff]
  %v154 = vld [vmem:[%s0 + $0x460] sm:$0xff]
  %v155 = vld [vmem:[%s0 + $0x468] sm:$0xff]
  %v156 = vld [vmem:[%s0 + $0x470] sm:$0xff]
  %v157 = vld [vmem:[%s0 + $0x478] sm:$0xff]
  %v158 = vld [vmem:[%s1] sm:$0xff]
  %v159 = vld [vmem:[%s1 + $0x8] sm:$0xff]
  %v160 = vld [vmem:[%s1 + $0x10] sm:$0xff]
  %v161 = vld [vmem:[%s1 + $0x18] sm:$0xff]
  %v162 = vld [vmem:[%s1 + $0x20] sm:$0xff]
  %v163 = vld [vmem:[%s1 + $0x28] sm:$0xff]
  %v164 = vld [vmem:[%s1 + $0x30] sm:$0xff]
  %v165 = vld [vmem:[%s1 + $0x38] sm:$0xff]
  %v166 = vld [vmem:[%s1 + $0x40] sm:$0xff]
  %v167 = vld [vmem:[%s1 + $0x48] sm:$0xff]
  %v168 = vld [vmem:[%s1 + $0x50] sm:$0xff]
  %v169 = vld [vmem:[%s1 + $0x58] sm:$0xff]
  %v170 = vld [vmem:[%s1 + $0x60] sm:$0xff]
  %v171 = vld [vmem:[%s1 + $0x68] sm:$0xff]
  %v172 = vld [vmem:[%s1 + $0x70] sm:$0xff]
  %v173 = vld [vmem:[%s1 + $0x78] sm:$0xff]
  %v174 = vld [vmem:[%s1 + $0x80] sm:$0xff]
  %v175 = vld [vmem:[%s1 + $0x88] sm:$0xff]
  %v176 = vld [vmem:[%s1 + $0x90] sm:$0xff]
  %v177 = vld [vmem:[%s1 + $0x98] sm:$0xff]
  %v178 = vld [vmem:[%s1 + $0xa0] sm:$0xff]
  %v179 = vld [vmem:[%s1 + $0xa8] sm:$0xff]
  %v180 = vld [vmem:[%s1 + $0xb0] sm:$0xff]
  %v181 = vld [vmem:[%s1 + $0xb8] sm:$0xff]
  %v182 = vld [vmem:[%s1 + $0xc0] sm:$0xff]
  %v183 = vld [vmem:[%s1 + $0xc8] sm:$0xff]
  %v184 = vld [vmem:[%s1 + $0xd0] sm:$0xff]
  %v185 = vld [vmem:[%s1 + $0xd8] sm:$0xff]
  %v186 = vld [vmem:[%s1 + $0xe0] sm:$0xff]
  %v187 = vld [vmem:[%s1 + $0xe8] sm:$0xff]
  %v188 = vld [vmem:[%s1 + $0xf0] sm:$0xff]
  %v189 = vld [vmem:[%s1 + $0xf8] sm:$0xff]
  %v190 = vld [vmem:[%s1 + $0x100] sm:$0xff]
  %v191 = vld [vmem:[%s1 + $0x108] sm:$0xff]
  %v192 = vld [vmem:[%s1 + $0x110] sm:$0xff]
  %v193 = vld [vmem:[%s1 + $0x118] sm:$0xff]
  %v194 = vld [vmem:[%s1 + $0x120] sm:$0xff]
  %v195 = vld [vmem:[%s1 + $0x128] sm:$0xff]
  %v196 = vld [vmem:[%s1 + $0x130] sm:$0xff]
  %v197 = vld [vmem:[%s1 + $0x138] sm:$0xff]
  %v198 = vld [vmem:[%s1 + $0x140] sm:$0xff]
  %v199 = vld [vmem:[%s1 + $0x148] sm:$0xff]
  %v200 = vld [vmem:[%s1 + $0x150] sm:$0xff]
  %v201 = vld [vmem:[%s1 + $0x158] sm:$0xff]
  %v202 = vld [vmem:[%s1 + $0x160] sm:$0xff]
  %v203 = vld [vmem:[%s1 + $0x168] sm:$0xff]
  %v204 = vld [vmem:[%s1 + $0x170] sm:$0xff]
  %v205 = vld [vmem:[%s1 + $0x178] sm:$0xff]
  %v206 = vld [vmem:[%s1 + $0x180] sm:$0xff]
  %v207 = vld [vmem:[%s1 + $0x188] sm:$0xff]
  %v208 = vld [vmem:[%s1 + $0x190] sm:$0xff]
  %v209 = vld [vmem:[%s1 + $0x198] sm:$0xff]
  %v210 = vld [vmem:[%s1 + $0x1a0] sm:$0xff]
  %v211 = vld [vmem:[%s1 + $0x1a8] sm:$0xff]
  %v212 = vld [vmem:[%s1 + $0x1b0] sm:$0xff]
  %v213 = vld [vmem:[%s1 + $0x1b8] sm:$0xff]
  %v214 = vld [vmem:[%s1 + $0x1c0] sm:$0xff]
  %v215 = vld [vmem:[%s1 + $0x1c8] sm:$0xff]
  %v216 = vld [vmem:[%s1 + $0x1d0] sm:$0xff]
  %v217 = vld [vmem:[%s1 + $0x1d8] sm:$0xff]
  %v218 = vld [vmem:[%s1 + $0x1e0] sm:$0xff]
  %v219 = vld [vmem:[%s1 + $0x1e8] sm:$0xff]
  %v220 = vld [vmem:[%s1 + $0x1f0] sm:$0xff]
  %v221 = vld [vmem:[%s1 + $0x1f8] sm:$0xff]
  %v222 = vld [vmem:[%s1 + $0x200] sm:$0xff]
  %v223 = vld [vmem:[%s1 + $0x208] sm:$0xff]
  %v224 = vld [vmem:[%s1 + $0x210] sm:$0xff]
  %v225 = vld [vmem:[%s1 + $0x218] sm:$0xff]
  %v226 = vld [vmem:[%s1 + $0x220] sm:$0xff]
  %v227 = vld [vmem:[%s1 + $0x228] sm:$0xff]
  %v228 = vld [vmem:[%s1 + $0x230] sm:$0xff]
  %v229 = vld [vmem:[%s1 + $0x238] sm:$0xff]
  %v230 = vld [vmem:[%s1 + $0x240] sm:$0xff]
  %v231 = vld [vmem:[%s1 + $0x248] sm:$0xff]
  %v232 = vld [vmem:[%s1 + $0x250] sm:$0xff]
  %v233 = vld [vmem:[%s1 + $0x258] sm:$0xff]
  %v234 = vld [vmem:[%s1 + $0x260] sm:$0xff]
  %v235 = vld [vmem:[%s1 + $0x268] sm:$0xff]
  %v236 = vld [vmem:[%s1 + $0x270] sm:$0xff]
  %v237 = vld [vmem:[%s1 + $0x278] sm:$0xff]
  %v238 = vld [vmem:[%s1 + $0x280] sm:$0xff]
  %v239 = vld [vmem:[%s1 + $0x288] sm:$0xff]
  %v240 = vld [vmem:[%s1 + $0x290] sm:$0xff]
  %v241 = vld [vmem:[%s1 + $0x298] sm:$0xff]
  %v242 = vld [vmem:[%s1 + $0x2a0] sm:$0xff]
  %v243 = vld [vmem:[%s1 + $0x2a8] sm:$0xff]
  %v244 = vld [vmem:[%s1 + $0x2b0] sm:$0xff]
  %v245 = vld [vmem:[%s1 + $0x2b8] sm:$0xff]
  %v246 = vld [vmem:[%s1 + $0x2c0] sm:$0xff]
  %v247 = vld [vmem:[%s1 + $0x2c8] sm:$0xff]
  %v248 = vld [vmem:[%s1 + $0x2d0] sm:$0xff]
  %v249 = vld [vmem:[%s1 + $0x2d8] sm:$0xff]
  %v250 = vld [vmem:[%s1 + $0x2e0] sm:$0xff]
  %v251 = vld [vmem:[%s1 + $0x2e8] sm:$0xff]
  %v252 = vld [vmem:[%s1 + $0x2f0] sm:$0xff]
  %v253 = vld [vmem:[%s1 + $0x2f8] sm:$0xff]
  %v254 = vld [vmem:[%s1 + $0x300] sm:$0xff]
  %v255 = vld [vmem:[%s1 + $0x308] sm:$0xff]
  %v256 = vld [vmem:[%s1 + $0x310] sm:$0xff]
  %v257 = vld [vmem:[%s1 + $0x318] sm:$0xff]
  %v258 = vld [vmem:[%s1 + $0x320] sm:$0xff]
  %v259 = vld [vmem:[%s1 + $0x328] sm:$0xff]
  %v260 = vld [vmem:[%s1 + $0x330] sm:$0xff]
  %v261 = vld [vmem:[%s1 + $0x338] sm:$0xff]
  %v262 = vld [vmem:[%s1 + $0x340] sm:$0xff]
  %v263 = vld [vmem:[%s1 + $0x348] sm:$0xff]
  %v264 = vld [vmem:[%s1 + $0x350] sm:$0xff]
  %v265 = vld [vmem:[%s1 + $0x358] sm:$0xff]
  %v266 = vld [vmem:[%s1 + $0x360] sm:$0xff]
  %v267 = vld [vmem:[%s1 + $0x368] sm:$0xff]
  %v268 = vld [vmem:[%s1 + $0x370] sm:$0xff]
  %v269 = vld [vmem:[%s1 + $0x378] sm:$0xff]
  %v270 = vld [vmem:[%s1 + $0x380] sm:$0xff]
  %v271 = vld [vmem:[%s1 + $0x388] sm:$0xff]
  %v272 = vld [vmem:[%s1 + $0x390] sm:$0xff]
  %v273 = vld [vmem:[%s1 + $0x398] sm:$0xff]
  %v274 = vld [vmem:[%s1 + $0x3a0] sm:$0xff]
  %v275 = vld [vmem:[%s1 + $0x3a8] sm:$0xff]
  %v276 = vld [vmem:[%s1 + $0x3b0] sm:$0xff]
  %v277 = vld [vmem:[%s1 + $0x3b8] sm:$0xff]
  %v278 = vld [vmem:[%s1 + $0x3c0] sm:$0xff]
  %v279 = vld [vmem:[%s1 + $0x3c8] sm:$0xff]
  %v280 = vld [vmem:[%s1 + $0x3d0] sm:$0xff]
  %v281 = vld [vmem:[%s1 + $0x3d8] sm:$0xff]
  %v282 = vld [vmem:[%s1 + $0x3e0] sm:$0xff]
  %v283 = vld [vmem:[%s1 + $0x3e8] sm:$0xff]
  %v284 = vld [vmem:[%s1 + $0x3f0] sm:$0xff]
  %v285 = vld [vmem:[%s1 + $0x3f8] sm:$0xff]
  %v286 = vld [vmem:[%s1 + $0x400] sm:$0xff]
  %v287 = vld [vmem:[%s1 + $0x408] sm:$0xff]
  %v288 = vld [vmem:[%s1 + $0x410] sm:$0xff]
  %v289 = vld [vmem:[%s1 + $0x418] sm:$0xff]
  %v290 = vld [vmem:[%s1 + $0x420] sm:$0xff]
  %v291 = vld [vmem:[%s1 + $0x428] sm:$0xff]
  %v292 = vld [vmem:[%s1 + $0x430] sm:$0xff]
  %v293 = vld [vmem:[%s1 + $0x438] sm:$0xff]
  %v294 = vld [vmem:[%s1 + $0x440] sm:$0xff]
  %v295 = vld [vmem:[%s1 + $0x448] sm:$0xff]
  %v296 = vld [vmem:[%s1 + $0x450] sm:$0xff]
  %v297 = vld [vmem:[%s1 + $0x458] sm:$0xff]
  %v298 = vld [vmem:[%s1 + $0x460] sm:$0xff]
  %v299 = vld [vmem:[%s1 + $0x468] sm:$0xff]
  %v300 = vld [vmem:[%s1 + $0x470] sm:$0xff]
  %v301 = vld [vmem:[%s1 + $0x478] sm:$0xff]
  %v302 = vld [vmem:[%s2] sm:$0x1]
  %v304 = vlaneseq
  %v305 = vshrl.u32 %v304, 7
  %v306 = vsub.s32 0, %v305
  %v307 = vrot.slane %v302, %v306
  %309 = vmatprep.subr.mxu0 0.0
  %310 = vmatpush1.msra.mxu0 %v158
  %311 = vmatprep.subr.mxu0 0.0
  %312 = vmatpush1.msra.mxu0 %v159
  %313 = vmatprep.subr.mxu0 0.0
  %314 = vmatpush1.msra.mxu0 %v160
  %315 = vmatprep.subr.mxu0 0.0
  %316 = vmatpush1.msra.mxu0 %v161
  %317 = vmatprep.subr.mxu0 0.0
  %318 = vmatpush1.msra.mxu0 %v162
  %319 = vmatprep.subr.mxu0 0.0
  %320 = vmatpush1.msra.mxu0 %v163
  %321 = vmatprep.subr.mxu0 0.0
  %322 = vmatpush1.msra.mxu0 %v164
  %323 = vmatprep.subr.mxu0 0.0
  %324 = vmatpush1.msra.mxu0 %v165
  %325 = vmatprep.subr.mxu0 0.0
  %326 = vmatpush1.msra.mxu0 %v166
  %327 = vmatprep.subr.mxu0 0.0
  %328 = vmatpush1.msra.mxu0 %v167
  %329 = vmatprep.subr.mxu0 0.0
  %330 = vmatpush1.msra.mxu0 %v168
  %331 = vmatprep.subr.mxu0 0.0
  %332 = vmatpush1.msra.mxu0 %v169
  %333 = vmatprep.subr.mxu0 0.0
  %334 = vmatpush1.msra.mxu0 %v170
  %335 = vmatprep.subr.mxu0 0.0
  %336 = vmatpush1.msra.mxu0 %v171
  %337 = vmatprep.subr.mxu0 0.0
  %338 = vmatpush1.msra.mxu0 %v172
  %339 = vmatprep.subr.mxu0 0.0
  %340 = vmatpush1.msra.mxu0 %v173
  %341 = vmatprep.subr.mxu0 0.0
  %342 = vmatpush1.msra.mxu0 %v174
  %343 = vmatprep.subr.mxu0 0.0
  %344 = vmatpush1.msra.mxu0 %v175
  %345 = vmatprep.subr.mxu0 0.0
  %346 = vmatpush1.msra.mxu0 %v176
  %347 = vmatprep.subr.mxu0 0.0
  %348 = vmatpush1.msra.mxu0 %v177
  %349 = vmatprep.subr.mxu0 0.0
  %350 = vmatpush1.msra.mxu0 %v178
  %351 = vmatprep.subr.mxu0 0.0
  %352 = vmatpush1.msra.mxu0 %v179
  %353 = vmatprep.subr.mxu0 0.0
  %354 = vmatpush1.msra.mxu0 %v180
  %355 = vmatprep.subr.mxu0 0.0
  %356 = vmatpush1.msra.mxu0 %v181
  %357 = vmatprep.subr.mxu0 0.0
  %358 = vmatpush1.msra.mxu0 %v182
  %359 = vmatprep.subr.mxu0 0.0
  %360 = vmatpush1.msra.mxu0 %v183
  %361 = vmatprep.subr.mxu0 0.0
  %362 = vmatpush1.msra.mxu0 %v184
  %363 = vmatprep.subr.mxu0 0.0
  %364 = vmatpush1.msra.mxu0 %v185
  %365 = vmatprep.subr.mxu0 0.0
  %366 = vmatpush1.msra.mxu0 %v186
  %367 = vmatprep.subr.mxu0 0.0
  %368 = vmatpush1.msra.mxu0 %v187
  %369 = vmatprep.subr.mxu0 0.0
  %370 = vmatpush1.msra.mxu0 %v188
  %371 = vmatprep.subr.mxu0 0.0
  %372 = vmatpush1.msra.mxu0 %v189
  %373 = vmatprep.mubr.f32.mxu0 %v15
  %374 = vmatmul.mubr.f32.gmra.mrb[0].mxu0 %v14
  %v375 = vpop.f32.mrb[0].mxu0
  %v376 = vadd.f32 %v307, %v375
  %v377 = vpop.f32.mrb[0].mxu0
  %378 = vmatprep.mubr.f32.mxu0 %v24
  %379 = vmatmul.mubr.f32.gmra.mrb[0].mxu0 %v23
  %v380 = vpop.f32.mrb[0].mxu0
  %v381 = vadd.f32 %v307, %v380
  %v382 = vpop.f32.mrb[0].mxu0
  %383 = vmatprep.mubr.f32.mxu0 %v33
  %384 = vmatmul.mubr.f32.gmra.mrb[0].mxu0 %v32
  %v385 = vpop.f32.mrb[0].mxu0
  %v386 = vadd.f32 %v307, %v385
  %v387 = vpop.f32.mrb[0].mxu0
  %388 = vmatprep.mubr.f32.mxu0 %v42
  %389 = vmatmul.mubr.f32.gmra.mrb[0].mxu0 %v41
  %v390 = vpop.f32.mrb[0].mxu0
  %v391 = vadd.f32 %v307, %v390
  %v392 = vpop.f32.mrb[0].mxu0
  %393 = vmatprep.mubr.f32.mxu0 %v51
  %394 = vmatmul.mubr.f32.gmra.mrb[0].mxu0 %v50
  %v395 = vpop.f32.mrb[0].mxu0
  %v396 = vadd.f32 %v307, %v395
  %v397 = vpop.f32.mrb[0].mxu0
  %398 = vmatprep.mubr.f32.mxu0 %v60
  %399 = vmatmul.mubr.f32.gmra.mrb[0].mxu0 %v59
  %v400 = vpop.f32.mrb[0].mxu0
  %v401 = vadd.f32 %v307, %v400
  %v402 = vpop.f32.mrb[0].mxu0
  %403 = vmatprep.mubr.f32.mxu0 %v69
  %404 = vmatmul.mubr.f32.gmra.mrb[0].mxu0 %v68
  %v405 = vpop.f32.mrb[0].mxu0
  %v406 = vadd.f32 %v307, %v405
  %v407 = vpop.f32.mrb[0].mxu0
  %408 = vmatprep.mubr.f32.mxu0 %v78
  %409 = vmatmul.mubr.f32.gmra.mrb[0].mxu0 %v77
  %v410 = vpop.f32.mrb[0].mxu0
  %v411 = vadd.f32 %v307, %v410
  %v412 = vpop.f32.mrb[0].mxu0
  %413 = vmatprep.mubr.f32.mxu0 %v87
  %414 = vmatmul.mubr.f32.gmra.mrb[0].mxu0 %v86
  %v415 = vpop.f32.mrb[0].mxu0
  %v416 = vadd.f32 %v307, %v415
  %v417 = vpop.f32.mrb[0].mxu0
  %418 = vmatprep.mubr.f32.mxu0 %v96
  %419 = vmatmul.mubr.f32.gmra.mrb[0].mxu0 %v95
  %v420 = vpop.f32.mrb[0].mxu0
  %v421 = vadd.f32 %v307, %v420
  %v422 = vpop.f32.mrb[0].mxu0
  %423 = vmatprep.mubr.f32.mxu0 %v105
  %424 = vmatmul.mubr.f32.gmra.mrb[0].mxu0 %v104
  %v425 = vpop.f32.mrb[0].mxu0
  %v426 = vadd.f32 %v307, %v425
  %v427 = vpop.f32.mrb[0].mxu0
  %428 = vmatprep.mubr.f32.mxu0 %v114
  %429 = vmatmul.mubr.f32.gmra.mrb[0].mxu0 %v113
  %v430 = vpop.f32.mrb[0].mxu0
  %v431 = vadd.f32 %v307, %v430
  %v432 = vpop.f32.mrb[0].mxu0
  %433 = vmatprep.mubr.f32.mxu0 %v123
  %434 = vmatmul.mubr.f32.gmra.mrb[0].mxu0 %v122
  %v435 = vpop.f32.mrb[0].mxu0
  %v436 = vadd.f32 %v307, %v435
  %v437 = vpop.f32.mrb[0].mxu0
  %438 = vmatprep.mubr.f32.mxu0 %v132
  %439 = vmatmul.mubr.f32.gmra.mrb[0].mxu0 %v131
  %v440 = vpop.f32.mrb[0].mxu0
  %v441 = vadd.f32 %v307, %v440
  %v442 = vpop.f32.mrb[0].mxu0
  %443 = vmatprep.mubr.f32.mxu0 %v141
  %444 = vmatmul.mubr.f32.gmra.mrb[0].mxu0 %v140
  %v445 = vpop.f32.mrb[0].mxu0
  %v446 = vadd.f32 %v307, %v445
  %v447 = vpop.f32.mrb[0].mxu0
  %448 = vmatprep.mubr.f32.mxu0 %v150
  %449 = vmatmul.mubr.f32.gmra.mrb[0].mxu0 %v149
  %v450 = vpop.f32.mrb[0].mxu0
  %v451 = vadd.f32 %v307, %v450
  %v452 = vpop.f32.mrb[0].mxu0
  %453 = vdwg.mxu0
  %454 = vmatprep.subr.mxu0 0.0
  %455 = vmatpush1.msra.mxu0 %v190
  %456 = vmatprep.subr.mxu0 0.0
  %457 = vmatpush1.msra.mxu0 %v191
  %458 = vmatprep.subr.mxu0 0.0
  %459 = vmatpush1.msra.mxu0 %v192
  %460 = vmatprep.subr.mxu0 0.0
  %461 = vmatpush1.msra.mxu0 %v193
  %462 = vmatprep.subr.mxu0 0.0
  %463 = vmatpush1.msra.mxu0 %v194
  %464 = vmatprep.subr.mxu0 0.0
  %465 = vmatpush1.msra.mxu0 %v195
  %466 = vmatprep.subr.mxu0 0.0
  %467 = vmatpush1.msra.mxu0 %v196
  %468 = vmatprep.subr.mxu0 0.0
  %469 = vmatpush1.msra.mxu0 %v197
  %470 = vmatprep.subr.mxu0 0.0
  %471 = vmatpush1.msra.mxu0 %v198
  %472 = vmatprep.subr.mxu0 0.0
  %473 = vmatpush1.msra.mxu0 %v199
  %474 = vmatprep.subr.mxu0 0.0
  %475 = vmatpush1.msra.mxu0 %v200
  %476 = vmatprep.subr.mxu0 0.0
  %477 = vmatpush1.msra.mxu0 %v201
  %478 = vmatprep.subr.mxu0 0.0
  %479 = vmatpush1.msra.mxu0 %v202
  %480 = vmatprep.subr.mxu0 0.0
  %481 = vmatpush1.msra.mxu0 %v203
  %482 = vmatprep.subr.mxu0 0.0
  %483 = vmatpush1.msra.mxu0 %v204
  %484 = vmatprep.subr.mxu0 0.0
  %485 = vmatpush1.msra.mxu0 %v205
  %486 = vmatprep.subr.mxu0 0.0
  %487 = vmatpush1.msra.mxu0 %v206
  %488 = vmatprep.subr.mxu0 0.0
  %489 = vmatpush1.msra.mxu0 %v207
  %490 = vmatprep.subr.mxu0 0.0
  %491 = vmatpush1.msra.mxu0 %v208
  %492 = vmatprep.subr.mxu0 0.0
  %493 = vmatpush1.msra.mxu0 %v209
  %494 = vmatprep.subr.mxu0 0.0
  %495 = vmatpush1.msra.mxu0 %v210
  %496 = vmatprep.subr.mxu0 0.0
  %497 = vmatpush1.msra.mxu0 %v211
  %498 = vmatprep.subr.mxu0 0.0
  %499 = vmatpush1.msra.mxu0 %v212
  %500 = vmatprep.subr.mxu0 0.0
  %501 = vmatpush1.msra.mxu0 %v213
  %502 = vmatprep.subr.mxu0 0.0
  %503 = vmatpush1.msra.mxu0 %v214
  %504 = vmatprep.subr.mxu0 0.0
  %505 = vmatpush1.msra.mxu0 %v215
  %506 = vmatprep.subr.mxu0 0.0
  %507 = vmatpush1.msra.mxu0 %v216
  %508 = vmatprep.subr.mxu0 0.0
  %509 = vmatpush1.msra.mxu0 %v217
  %510 = vmatprep.subr.mxu0 0.0
  %511 = vmatpush1.msra.mxu0 %v218
  %512 = vmatprep.subr.mxu0 0.0
  %513 = vmatpush1.msra.mxu0 %v219
  %514 = vmatprep.subr.mxu0 0.0
  %515 = vmatpush1.msra.mxu0 %v220
  %516 = vmatprep.subr.mxu0 0.0
  %517 = vmatpush1.msra.mxu0 %v221
  %518 = vmatprep.mubr.f32.mxu0 %v17
  %519 = vmatmul.mubr.f32.gmra.mrb[0].mxu0 %v16
  %v520 = vpop.f32.mrb[0].mxu0
  %v521 = vadd.f32 %v376, %v520
  %v522 = vpop.f32.mrb[0].mxu0
  %523 = vmatprep.mubr.f32.mxu0 %v26
  %524 = vmatmul.mubr.f32.gmra.mrb[0].mxu0 %v25
  %v525 = vpop.f32.mrb[0].mxu0
  %v526 = vadd.f32 %v381, %v525
  %v527 = vpop.f32.mrb[0].mxu0
  %528 = vmatprep.mubr.f32.mxu0 %v35
  %529 = vmatmul.mubr.f32.gmra.mrb[0].mxu0 %v34
  %v530 = vpop.f32.mrb[0].mxu0
  %v531 = vadd.f32 %v386, %v530
  %v532 = vpop.f32.mrb[0].mxu0
  %533 = vmatprep.mubr.f32.mxu0 %v44
  %534 = vmatmul.mubr.f32.gmra.mrb[0].mxu0 %v43
  %v535 = vpop.f32.mrb[0].mxu0
  %v536 = vadd.f32 %v391, %v535
  %v537 = vpop.f32.mrb[0].mxu0
  %538 = vmatprep.mubr.f32.mxu0 %v53
  %539 = vmatmul.mubr.f32.gmra.mrb[0].mxu0 %v52
  %v540 = vpop.f32.mrb[0].mxu0
  %v541 = vadd.f32 %v396, %v540
  %v542 = vpop.f32.mrb[0].mxu0
  %543 = vmatprep.mubr.f32.mxu0 %v62
  %544 = vmatmul.mubr.f32.gmra.mrb[0].mxu0 %v61
  %v545 = vpop.f32.mrb[0].mxu0
  %v546 = vadd.f32 %v401, %v545
  %v547 = vpop.f32.mrb[0].mxu0
  %548 = vmatprep.mubr.f32.mxu0 %v71
  %549 = vmatmul.mubr.f32.gmra.mrb[0].mxu0 %v70
  %v550 = vpop.f32.mrb[0].mxu0
  %v551 = vadd.f32 %v406, %v550
  %v552 = vpop.f32.mrb[0].mxu0
  %553 = vmatprep.mubr.f32.mxu0 %v80
  %554 = vmatmul.mubr.f32.gmra.mrb[0].mxu0 %v79
  %v555 = vpop.f32.mrb[0].mxu0
  %v556 = vadd.f32 %v411, %v555
  %v557 = vpop.f32.mrb[0].mxu0
  %558 = vmatprep.mubr.f32.mxu0 %v89
  %559 = vmatmul.mubr.f32.gmra.mrb[0].mxu0 %v88
  %v560 = vpop.f32.mrb[0].mxu0
  %v561 = vadd.f32 %v416, %v560
  %v562 = vpop.f32.mrb[0].mxu0
  %563 = vmatprep.mubr.f32.mxu0 %v98
  %564 = vmatmul.mubr.f32.gmra.mrb[0].mxu0 %v97
  %v565 = vpop.f32.mrb[0].mxu0
  %v566 = vadd.f32 %v421, %v565
  %v567 = vpop.f32.mrb[0].mxu0
  %568 = vmatprep.mubr.f32.mxu0 %v107
  %569 = vmatmul.mubr.f32.gmra.mrb[0].mxu0 %v106
  %v570 = vpop.f32.mrb[0].mxu0
  %v571 = vadd.f32 %v426, %v570
  %v572 = vpop.f32.mrb[0].mxu0
  %573 = vmatprep.mubr.f32.mxu0 %v116
  %574 = vmatmul.mubr.f32.gmra.mrb[0].mxu0 %v115
  %v575 = vpop.f32.mrb[0].mxu0
  %v576 = vadd.f32 %v431, %v575
  %v577 = vpop.f32.mrb[0].mxu0
  %578 = vmatprep.mubr.f32.mxu0 %v125
  %579 = vmatmul.mubr.f32.gmra.mrb[0].mxu0 %v124
  %v580 = vpop.f32.mrb[0].mxu0
  %v581 = vadd.f32 %v436, %v580
  %v582 = vpop.f32.mrb[0].mxu0
  %583 = vmatprep.mubr.f32.mxu0 %v134
  %584 = vmatmul.mubr.f32.gmra.mrb[0].mxu0 %v133
  %v585 = vpop.f32.mrb[0].mxu0
  %v586 = vadd.f32 %v441, %v585
  %v587 = vpop.f32.mrb[0].mxu0
  %588 = vmatprep.mubr.f32.mxu0 %v143
  %589 = vmatmul.mubr.f32.gmra.mrb[0].mxu0 %v142
  %v590 = vpop.f32.mrb[0].mxu0
  %v591 = vadd.f32 %v446, %v590
  %v592 = vpop.f32.mrb[0].mxu0
  %593 = vmatprep.mubr.f32.mxu0 %v152
  %594 = vmatmul.mubr.f32.gmra.mrb[0].mxu0 %v151
  %v595 = vpop.f32.mrb[0].mxu0
  %v596 = vadd.f32 %v451, %v595
  %v597 = vpop.f32.mrb[0].mxu0
  %598 = vdwg.mxu0
  %599 = vmatprep.subr.mxu0 0.0
  %600 = vmatpush1.msra.mxu0 %v222
  %601 = vmatprep.subr.mxu0 0.0
  %602 = vmatpush1.msra.mxu0 %v223
  %603 = vmatprep.subr.mxu0 0.0
  %604 = vmatpush1.msra.mxu0 %v224
  %605 = vmatprep.subr.mxu0 0.0
  %606 = vmatpush1.msra.mxu0 %v225
  %607 = vmatprep.subr.mxu0 0.0
  %608 = vmatpush1.msra.mxu0 %v226
  %609 = vmatprep.subr.mxu0 0.0
  %610 = vmatpush1.msra.mxu0 %v227
  %611 = vmatprep.subr.mxu0 0.0
  %612 = vmatpush1.msra.mxu0 %v228
  %613 = vmatprep.subr.mxu0 0.0
  %614 = vmatpush1.msra.mxu0 %v229
  %615 = vmatprep.subr.mxu0 0.0
  %616 = vmatpush1.msra.mxu0 %v230
  %617 = vmatprep.subr.mxu0 0.0
  %618 = vmatpush1.msra.mxu0 %v231
  %619 = vmatprep.subr.mxu0 0.0
  %620 = vmatpush1.msra.mxu0 %v232
  %621 = vmatprep.subr.mxu0 0.0
  %622 = vmatpush1.msra.mxu0 %v233
  %623 = vmatprep.subr.mxu0 0.0
  %624 = vmatpush1.msra.mxu0 %v234
  %625 = vmatprep.subr.mxu0 0.0
  %626 = vmatpush1.msra.mxu0 %v235
  %627 = vmatprep.subr.mxu0 0.0
  %628 = vmatpush1.msra.mxu0 %v236
  %629 = vmatprep.subr.mxu0 0.0
  %630 = vmatpush1.msra.mxu0 %v237
  %631 = vmatprep.subr.mxu0 0.0
  %632 = vmatpush1.msra.mxu0 %v238
  %633 = vmatprep.subr.mxu0 0.0
  %634 = vmatpush1.msra.mxu0 %v239
  %635 = vmatprep.subr.mxu0 0.0
  %636 = vmatpush1.msra.mxu0 %v240
  %637 = vmatprep.subr.mxu0 0.0
  %638 = vmatpush1.msra.mxu0 %v241
  %639 = vmatprep.subr.mxu0 0.0
  %640 = vmatpush1.msra.mxu0 %v242
  %641 = vmatprep.subr.mxu0 0.0
  %642 = vmatpush1.msra.mxu0 %v243
  %643 = vmatprep.subr.mxu0 0.0
  %644 = vmatpush1.msra.mxu0 %v244
  %645 = vmatprep.subr.mxu0 0.0
  %646 = vmatpush1.msra.mxu0 %v245
  %647 = vmatprep.subr.mxu0 0.0
  %648 = vmatpush1.msra.mxu0 %v246
  %649 = vmatprep.subr.mxu0 0.0
  %650 = vmatpush1.msra.mxu0 %v247
  %651 = vmatprep.subr.mxu0 0.0
  %652 = vmatpush1.msra.mxu0 %v248
  %653 = vmatprep.subr.mxu0 0.0
  %654 = vmatpush1.msra.mxu0 %v249
  %655 = vmatprep.subr.mxu0 0.0
  %656 = vmatpush1.msra.mxu0 %v250
  %657 = vmatprep.subr.mxu0 0.0
  %658 = vmatpush1.msra.mxu0 %v251
  %659 = vmatprep.subr.mxu0 0.0
  %660 = vmatpush1.msra.mxu0 %v252
  %661 = vmatprep.subr.mxu0 0.0
  %662 = vmatpush1.msra.mxu0 %v253
  %663 = vmatprep.mubr.f32.mxu0 %v19
  %664 = vmatmul.mubr.f32.gmra.mrb[0].mxu0 %v18
  %v665 = vpop.f32.mrb[0].mxu0
  %v666 = vadd.f32 %v521, %v665
  %v667 = vpop.f32.mrb[0].mxu0
  %668 = vmatprep.mubr.f32.mxu0 %v28
  %669 = vmatmul.mubr.f32.gmra.mrb[0].mxu0 %v27
  %v670 = vpop.f32.mrb[0].mxu0
  %v671 = vadd.f32 %v526, %v670
  %v672 = vpop.f32.mrb[0].mxu0
  %673 = vmatprep.mubr.f32.mxu0 %v37
  %674 = vmatmul.mubr.f32.gmra.mrb[0].mxu0 %v36
  %v675 = vpop.f32.mrb[0].mxu0
  %v676 = vadd.f32 %v531, %v675
  %v677 = vpop.f32.mrb[0].mxu0
  %678 = vmatprep.mubr.f32.mxu0 %v46
  %679 = vmatmul.mubr.f32.gmra.mrb[0].mxu0 %v45
  %v680 = vpop.f32.mrb[0].mxu0
  %v681 = vadd.f32 %v536, %v680
  %v682 = vpop.f32.mrb[0].mxu0
  %683 = vmatprep.mubr.f32.mxu0 %v55
  %684 = vmatmul.mubr.f32.gmra.mrb[0].mxu0 %v54
  %v685 = vpop.f32.mrb[0].mxu0
  %v686 = vadd.f32 %v541, %v685
  %v687 = vpop.f32.mrb[0].mxu0
  %688 = vmatprep.mubr.f32.mxu0 %v64
  %689 = vmatmul.mubr.f32.gmra.mrb[0].mxu0 %v63
  %v690 = vpop.f32.mrb[0].mxu0
  %v691 = vadd.f32 %v546, %v690
  %v692 = vpop.f32.mrb[0].mxu0
  %693 = vmatprep.mubr.f32.mxu0 %v73
  %694 = vmatmul.mubr.f32.gmra.mrb[0].mxu0 %v72
  %v695 = vpop.f32.mrb[0].mxu0
  %v696 = vadd.f32 %v551, %v695
  %v697 = vpop.f32.mrb[0].mxu0
  %698 = vmatprep.mubr.f32.mxu0 %v82
  %699 = vmatmul.mubr.f32.gmra.mrb[0].mxu0 %v81
  %v700 = vpop.f32.mrb[0].mxu0
  %v701 = vadd.f32 %v556, %v700
  %v702 = vpop.f32.mrb[0].mxu0
  %703 = vmatprep.mubr.f32.mxu0 %v91
  %704 = vmatmul.mubr.f32.gmra.mrb[0].mxu0 %v90
  %v705 = vpop.f32.mrb[0].mxu0
  %v706 = vadd.f32 %v561, %v705
  %v707 = vpop.f32.mrb[0].mxu0
  %708 = vmatprep.mubr.f32.mxu0 %v100
  %709 = vmatmul.mubr.f32.gmra.mrb[0].mxu0 %v99
  %v710 = vpop.f32.mrb[0].mxu0
  %v711 = vadd.f32 %v566, %v710
  %v712 = vpop.f32.mrb[0].mxu0
  %713 = vmatprep.mubr.f32.mxu0 %v109
  %714 = vmatmul.mubr.f32.gmra.mrb[0].mxu0 %v108
  %v715 = vpop.f32.mrb[0].mxu0
  %v716 = vadd.f32 %v571, %v715
  %v717 = vpop.f32.mrb[0].mxu0
  %718 = vmatprep.mubr.f32.mxu0 %v118
  %719 = vmatmul.mubr.f32.gmra.mrb[0].mxu0 %v117
  %v720 = vpop.f32.mrb[0].mxu0
  %v721 = vadd.f32 %v576, %v720
  %v722 = vpop.f32.mrb[0].mxu0
  %723 = vmatprep.mubr.f32.mxu0 %v127
  %724 = vmatmul.mubr.f32.gmra.mrb[0].mxu0 %v126
  %v725 = vpop.f32.mrb[0].mxu0
  %v726 = vadd.f32 %v581, %v725
  %v727 = vpop.f32.mrb[0].mxu0
  %728 = vmatprep.mubr.f32.mxu0 %v136
  %729 = vmatmul.mubr.f32.gmra.mrb[0].mxu0 %v135
  %v730 = vpop.f32.mrb[0].mxu0
  %v731 = vadd.f32 %v586, %v730
  %v732 = vpop.f32.mrb[0].mxu0
  %733 = vmatprep.mubr.f32.mxu0 %v145
  %734 = vmatmul.mubr.f32.gmra.mrb[0].mxu0 %v144
  %v735 = vpop.f32.mrb[0].mxu0
  %v736 = vadd.f32 %v591, %v735
  %v737 = vpop.f32.mrb[0].mxu0
  %738 = vmatprep.mubr.f32.mxu0 %v154
  %739 = vmatmul.mubr.f32.gmra.mrb[0].mxu0 %v153
  %v740 = vpop.f32.mrb[0].mxu0
  %v741 = vadd.f32 %v596, %v740
  %v742 = vpop.f32.mrb[0].mxu0
  %743 = vdwg.mxu0
  %744 = vmatprep.subr.mxu0 0.0
  %745 = vmatpush1.msra.mxu0 %v254
  %746 = vmatprep.subr.mxu0 0.0
  %747 = vmatpush1.msra.mxu0 %v255
  %748 = vmatprep.subr.mxu0 0.0
  %749 = vmatpush1.msra.mxu0 %v256
  %750 = vmatprep.subr.mxu0 0.0
  %751 = vmatpush1.msra.mxu0 %v257
  %752 = vmatprep.subr.mxu0 0.0
  %753 = vmatpush1.msra.mxu0 %v258
  %754 = vmatprep.subr.mxu0 0.0
  %755 = vmatpush1.msra.mxu0 %v259
  %756 = vmatprep.subr.mxu0 0.0
  %757 = vmatpush1.msra.mxu0 %v260
  %758 = vmatprep.subr.mxu0 0.0
  %759 = vmatpush1.msra.mxu0 %v261
  %760 = vmatprep.subr.mxu0 0.0
  %761 = vmatpush1.msra.mxu0 %v262
  %762 = vmatprep.subr.mxu0 0.0
  %763 = vmatpush1.msra.mxu0 %v263
  %764 = vmatprep.subr.mxu0 0.0
  %765 = vmatpush1.msra.mxu0 %v264
  %766 = vmatprep.subr.mxu0 0.0
  %767 = vmatpush1.msra.mxu0 %v265
  %768 = vmatprep.subr.mxu0 0.0
  %769 = vmatpush1.msra.mxu0 %v266
  %770 = vmatprep.subr.mxu0 0.0
  %771 = vmatpush1.msra.mxu0 %v267
  %772 = vmatprep.subr.mxu0 0.0
  %773 = vmatpush1.msra.mxu0 %v268
  %774 = vmatprep.subr.mxu0 0.0
  %775 = vmatpush1.msra.mxu0 %v269
  %776 = vmatprep.subr.mxu0 0.0
  %777 = vmatpush1.msra.mxu0 %v270
  %778 = vmatprep.subr.mxu0 0.0
  %779 = vmatpush1.msra.mxu0 %v271
  %780 = vmatprep.subr.mxu0 0.0
  %781 = vmatpush1.msra.mxu0 %v272
  %782 = vmatprep.subr.mxu0 0.0
  %783 = vmatpush1.msra.mxu0 %v273
  %784 = vmatprep.subr.mxu0 0.0
  %785 = vmatpush1.msra.mxu0 %v274
  %786 = vmatprep.subr.mxu0 0.0
  %787 = vmatpush1.msra.mxu0 %v275
  %788 = vmatprep.subr.mxu0 0.0
  %789 = vmatpush1.msra.mxu0 %v276
  %790 = vmatprep.subr.mxu0 0.0
  %791 = vmatpush1.msra.mxu0 %v277
  %792 = vmatprep.subr.mxu0 0.0
  %793 = vmatpush1.msra.mxu0 %v278
  %794 = vmatprep.subr.mxu0 0.0
  %795 = vmatpush1.msra.mxu0 %v279
  %796 = vmatprep.subr.mxu0 0.0
  %797 = vmatpush1.msra.mxu0 %v280
  %798 = vmatprep.subr.mxu0 0.0
  %799 = vmatpush1.msra.mxu0 %v281
  %800 = vmatprep.subr.mxu0 0.0
  %801 = vmatpush1.msra.mxu0 %v282
  %802 = vmatprep.subr.mxu0 0.0
  %803 = vmatpush1.msra.mxu0 %v283
  %804 = vmatprep.subr.mxu0 0.0
  %805 = vmatpush1.msra.mxu0 %v284
  %806 = vmatprep.subr.mxu0 0.0
  %807 = vmatpush1.msra.mxu0 %v285
  %808 = vmatprep.mubr.f32.mxu0 %v21
  %809 = vmatmul.mubr.f32.gmra.mrb[0].mxu0 %v20
  %v810 = vpop.f32.mrb[0].mxu0
  %v811 = vadd.f32 %v666, %v810
  %v812 = vpop.f32.mrb[0].mxu0
  %813 = vmatprep.mubr.f32.mxu0 %v30
  %814 = vmatmul.mubr.f32.gmra.mrb[0].mxu0 %v29
  %v815 = vpop.f32.mrb[0].mxu0
  %v816 = vadd.f32 %v671, %v815
  %v817 = vpop.f32.mrb[0].mxu0
  %818 = vmatprep.mubr.f32.mxu0 %v39
  %819 = vmatmul.mubr.f32.gmra.mrb[0].mxu0 %v38
  %v820 = vpop.f32.mrb[0].mxu0
  %v821 = vadd.f32 %v676, %v820
  %v822 = vpop.f32.mrb[0].mxu0
  %823 = vmatprep.mubr.f32.mxu0 %v48
  %824 = vmatmul.mubr.f32.gmra.mrb[0].mxu0 %v47
  %v825 = vpop.f32.mrb[0].mxu0
  %v826 = vadd.f32 %v681, %v825
  %v827 = vpop.f32.mrb[0].mxu0
  %828 = vmatprep.mubr.f32.mxu0 %v57
  %829 = vmatmul.mubr.f32.gmra.mrb[0].mxu0 %v56
  %v830 = vpop.f32.mrb[0].mxu0
  %v831 = vadd.f32 %v686, %v830
  %v832 = vpop.f32.mrb[0].mxu0
  %833 = vmatprep.mubr.f32.mxu0 %v66
  %834 = vmatmul.mubr.f32.gmra.mrb[0].mxu0 %v65
  %v835 = vpop.f32.mrb[0].mxu0
  %v836 = vadd.f32 %v691, %v835
  %v837 = vpop.f32.mrb[0].mxu0
  %838 = vmatprep.mubr.f32.mxu0 %v75
  %839 = vmatmul.mubr.f32.gmra.mrb[0].mxu0 %v74
  %v840 = vpop.f32.mrb[0].mxu0
  %v841 = vadd.f32 %v696, %v840
  %v842 = vpop.f32.mrb[0].mxu0
  %843 = vmatprep.mubr.f32.mxu0 %v84
  %844 = vmatmul.mubr.f32.gmra.mrb[0].mxu0 %v83
  %v845 = vpop.f32.mrb[0].mxu0
  %v846 = vadd.f32 %v701, %v845
  %v847 = vpop.f32.mrb[0].mxu0
  %848 = vmatprep.mubr.f32.mxu0 %v93
  %849 = vmatmul.mubr.f32.gmra.mrb[0].mxu0 %v92
  %v850 = vpop.f32.mrb[0].mxu0
  %v851 = vadd.f32 %v706, %v850
  %v852 = vpop.f32.mrb[0].mxu0
  %853 = vmatprep.mubr.f32.mxu0 %v102
  %854 = vmatmul.mubr.f32.gmra.mrb[0].mxu0 %v101
  %v855 = vpop.f32.mrb[0].mxu0
  %v856 = vadd.f32 %v711, %v855
  %v857 = vpop.f32.mrb[0].mxu0
  %858 = vmatprep.mubr.f32.mxu0 %v111
  %859 = vmatmul.mubr.f32.gmra.mrb[0].mxu0 %v110
  %v860 = vpop.f32.mrb[0].mxu0
  %v861 = vadd.f32 %v716, %v860
  %v862 = vpop.f32.mrb[0].mxu0
  %863 = vmatprep.mubr.f32.mxu0 %v120
  %864 = vmatmul.mubr.f32.gmra.mrb[0].mxu0 %v119
  %v865 = vpop.f32.mrb[0].mxu0
  %v866 = vadd.f32 %v721, %v865
  %v867 = vpop.f32.mrb[0].mxu0
  %868 = vmatprep.mubr.f32.mxu0 %v129
  %869 = vmatmul.mubr.f32.gmra.mrb[0].mxu0 %v128
  %v870 = vpop.f32.mrb[0].mxu0
  %v871 = vadd.f32 %v726, %v870
  %v872 = vpop.f32.mrb[0].mxu0
  %873 = vmatprep.mubr.f32.mxu0 %v138
  %874 = vmatmul.mubr.f32.gmra.mrb[0].mxu0 %v137
  %v875 = vpop.f32.mrb[0].mxu0
  %v876 = vadd.f32 %v731, %v875
  %v877 = vpop.f32.mrb[0].mxu0
  %878 = vmatprep.mubr.f32.mxu0 %v147
  %879 = vmatmul.mubr.f32.gmra.mrb[0].mxu0 %v146
  %v880 = vpop.f32.mrb[0].mxu0
  %v881 = vadd.f32 %v736, %v880
  %v882 = vpop.f32.mrb[0].mxu0
  %883 = vmatprep.mubr.f32.mxu0 %v156
  %884 = vmatmul.mubr.f32.gmra.mrb[0].mxu0 %v155
  %v885 = vpop.f32.mrb[0].mxu0
  %v886 = vadd.f32 %v741, %v885
  %v887 = vpop.f32.mrb[0].mxu0
  %888 = vdwg.mxu0
  %889 = vmatprep.subr.mxu0 0.0
  %890 = vmatpush1.msra.mxu0 %v286
  %891 = vmatprep.subr.mxu0 0.0
  %892 = vmatpush1.msra.mxu0 %v287
  %893 = vmatprep.subr.mxu0 0.0
  %894 = vmatpush1.msra.mxu0 %v288
  %895 = vmatprep.subr.mxu0 0.0
  %896 = vmatpush1.msra.mxu0 %v289
  %897 = vmatprep.subr.mxu0 0.0
  %898 = vmatpush1.msra.mxu0 %v290
  %899 = vmatprep.subr.mxu0 0.0
  %900 = vmatpush1.msra.mxu0 %v291
  %901 = vmatprep.subr.mxu0 0.0
  %902 = vmatpush1.msra.mxu0 %v292
  %903 = vmatprep.subr.mxu0 0.0
  %904 = vmatpush1.msra.mxu0 %v293
  %905 = vmatprep.subr.mxu0 0.0
  %906 = vmatpush1.msra.mxu0 %v294
  %907 = vmatprep.subr.mxu0 0.0
  %908 = vmatpush1.msra.mxu0 %v295
  %909 = vmatprep.subr.mxu0 0.0
  %910 = vmatpush1.msra.mxu0 %v296
  %911 = vmatprep.subr.mxu0 0.0
  %912 = vmatpush1.msra.mxu0 %v297
  %913 = vmatprep.subr.mxu0 0.0
  %914 = vmatpush1.msra.mxu0 %v298
  %915 = vmatprep.subr.mxu0 0.0
  %916 = vmatpush1.msra.mxu0 %v299
  %917 = vmatprep.subr.mxu0 0.0
  %918 = vmatpush1.msra.mxu0 %v300
  %919 = vmatprep.subr.mxu0 0.0
  %920 = vmatpush1.msra.mxu0 %v301
  %921 = vmatprep.subr.mxu0 0.0
  %922 = vmatpush1.msra.mxu0 0.0
  %923 = vmatprep.subr.mxu0 0.0
  %924 = vmatpush1.msra.mxu0 0.0
  %925 = vmatprep.subr.mxu0 0.0
  %926 = vmatpush1.msra.mxu0 0.0
  %927 = vmatprep.subr.mxu0 0.0
  %928 = vmatpush1.msra.mxu0 0.0
  %929 = vmatprep.subr.mxu0 0.0
  %930 = vmatpush1.msra.mxu0 0.0
  %931 = vmatprep.subr.mxu0 0.0
  %932 = vmatpush1.msra.mxu0 0.0
  %933 = vmatprep.subr.mxu0 0.0
  %934 = vmatpush1.msra.mxu0 0.0
  %935 = vmatprep.subr.mxu0 0.0
  %936 = vmatpush1.msra.mxu0 0.0
  %937 = vmatprep.subr.mxu0 0.0
  %938 = vmatpush1.msra.mxu0 0.0
  %939 = vmatprep.subr.mxu0 0.0
  %940 = vmatpush1.msra.mxu0 0.0
  %941 = vmatprep.subr.mxu0 0.0
  %942 = vmatpush1.msra.mxu0 0.0
  %943 = vmatprep.subr.mxu0 0.0
  %944 = vmatpush1.msra.mxu0 0.0
  %945 = vmatprep.subr.mxu0 0.0
  %946 = vmatpush1.msra.mxu0 0.0
  %947 = vmatprep.subr.mxu0 0.0
  %948 = vmatpush1.msra.mxu0 0.0
  %949 = vmatprep.subr.mxu0 0.0
  %950 = vmatpush1.msra.mxu0 0.0
  %951 = vmatprep.subr.mxu0 0.0
  %952 = vmatpush1.msra.mxu0 0.0
  %953 = vmatprep.mubr.f32.mxu0 0.0
  %954 = vmatmul.mubr.f32.gmra.mrb[0].mxu0 %v22
  %v955 = vpop.f32.mrb[0].mxu0
  %v956 = vadd.f32 %v811, %v955
  %v957 = vpop.f32.mrb[0].mxu0
  %958 = vmatprep.mubr.f32.mxu0 0.0
  %959 = vmatmul.mubr.f32.gmra.mrb[0].mxu0 %v31
  %v960 = vpop.f32.mrb[0].mxu0
  %v961 = vadd.f32 %v816, %v960
  %v962 = vpop.f32.mrb[0].mxu0
  %963 = vmatprep.mubr.f32.mxu0 0.0
  %964 = vmatmul.mubr.f32.gmra.mrb[0].mxu0 %v40
  %v965 = vpop.f32.mrb[0].mxu0
  %v966 = vadd.f32 %v821, %v965
  %v967 = vpop.f32.mrb[0].mxu0
  %968 = vmatprep.mubr.f32.mxu0 0.0
  %969 = vmatmul.mubr.f32.gmra.mrb[0].mxu0 %v49
  %v970 = vpop.f32.mrb[0].mxu0
  %v971 = vadd.f32 %v826, %v970
  %v972 = vpop.f32.mrb[0].mxu0
  %973 = vmatprep.mubr.f32.mxu0 0.0
  %974 = vmatmul.mubr.f32.gmra.mrb[0].mxu0 %v58
  %v975 = vpop.f32.mrb[0].mxu0
  %v976 = vadd.f32 %v831, %v975
  %v977 = vpop.f32.mrb[0].mxu0
  %978 = vmatprep.mubr.f32.mxu0 0.0
  %979 = vmatmul.mubr.f32.gmra.mrb[0].mxu0 %v67
  %v980 = vpop.f32.mrb[0].mxu0
  %v981 = vadd.f32 %v836, %v980
  %v982 = vpop.f32.mrb[0].mxu0
  %983 = vmatprep.mubr.f32.mxu0 0.0
  %984 = vmatmul.mubr.f32.gmra.mrb[0].mxu0 %v76
  %v985 = vpop.f32.mrb[0].mxu0
  %v986 = vadd.f32 %v841, %v985
  %v987 = vpop.f32.mrb[0].mxu0
  %988 = vmatprep.mubr.f32.mxu0 0.0
  %989 = vmatmul.mubr.f32.gmra.mrb[0].mxu0 %v85
  %v990 = vpop.f32.mrb[0].mxu0
  %v991 = vadd.f32 %v846, %v990
  %v992 = vpop.f32.mrb[0].mxu0
  %993 = vmatprep.mubr.f32.mxu0 0.0
  %994 = vmatmul.mubr.f32.gmra.mrb[0].mxu0 %v94
  %v995 = vpop.f32.mrb[0].mxu0
  %v996 = vadd.f32 %v851, %v995
  %v997 = vpop.f32.mrb[0].mxu0
  %998 = vmatprep.mubr.f32.mxu0 0.0
  %999 = vmatmul.mubr.f32.gmra.mrb[0].mxu0 %v103
  %v1000 = vpop.f32.mrb[0].mxu0
  %v1001 = vadd.f32 %v856, %v1000
  %v1002 = vpop.f32.mrb[0].mxu0
  %1003 = vmatprep.mubr.f32.mxu0 0.0
  %1004 = vmatmul.mubr.f32.gmra.mrb[0].mxu0 %v112
  %v1005 = vpop.f32.mrb[0].mxu0
  %v1006 = vadd.f32 %v861, %v1005
  %v1007 = vpop.f32.mrb[0].mxu0
  %1008 = vmatprep.mubr.f32.mxu0 0.0
  %1009 = vmatmul.mubr.f32.gmra.mrb[0].mxu0 %v121
  %v1010 = vpop.f32.mrb[0].mxu0
  %v1011 = vadd.f32 %v866, %v1010
  %v1012 = vpop.f32.mrb[0].mxu0
  %1013 = vmatprep.mubr.f32.mxu0 0.0
  %1014 = vmatmul.mubr.f32.gmra.mrb[0].mxu0 %v130
  %v1015 = vpop.f32.mrb[0].mxu0
  %v1016 = vadd.f32 %v871, %v1015
  %v1017 = vpop.f32.mrb[0].mxu0
  %1018 = vmatprep.mubr.f32.mxu0 0.0
  %1019 = vmatmul.mubr.f32.gmra.mrb[0].mxu0 %v139
  %v1020 = vpop.f32.mrb[0].mxu0
  %v1021 = vadd.f32 %v876, %v1020
  %v1022 = vpop.f32.mrb[0].mxu0
  %1023 = vmatprep.mubr.f32.mxu0 0.0
  %1024 = vmatmul.mubr.f32.gmra.mrb[0].mxu0 %v148
  %v1025 = vpop.f32.mrb[0].mxu0
  %v1026 = vadd.f32 %v881, %v1025
  %v1027 = vpop.f32.mrb[0].mxu0
  %1028 = vmatprep.mubr.f32.mxu0 0.0
  %1029 = vmatmul.mubr.f32.gmra.mrb[0].mxu0 %v157
  %v1030 = vpop.f32.mrb[0].mxu0
  %v1031 = vadd.f32 %v886, %v1030
  %v1032 = vpop.f32.mrb[0].mxu0
  %1033 = vdwg.mxu0
  %v1034 = vmax.f32 %v956, 0.0
  %v1035 = vmax.f32 %v961, 0.0
  %v1036 = vmax.f32 %v966, 0.0
  %v1037 = vmax.f32 %v971, 0.0
  %v1038 = vmax.f32 %v976, 0.0
  %v1039 = vmax.f32 %v981, 0.0
  %v1040 = vmax.f32 %v986, 0.0
  %v1041 = vmax.f32 %v991, 0.0
  %v1042 = vmax.f32 %v996, 0.0
  %v1043 = vmax.f32 %v1001, 0.0
  %v1044 = vmax.f32 %v1006, 0.0
  %v1045 = vmax.f32 %v1011, 0.0
  %v1046 = vmax.f32 %v1016, 0.0
  %v1047 = vmax.f32 %v1021, 0.0
  %v1048 = vmax.f32 %v1026, 0.0
  %v1049 = vmax.f32 %v1031, 0.0
  %1050 = vst [vmem:[%s3] sm:$0xff] %v1034
  %1051 = vst [vmem:[%s3 + $0x8] sm:$0xff] %v1035
  %1052 = vst [vmem:[%s3 + $0x10] sm:$0xff] %v1036
  %1053 = vst [vmem:[%s3 + $0x18] sm:$0xff] %v1037
  %1054 = vst [vmem:[%s3 + $0x20] sm:$0xff] %v1038
  %1055 = vst [vmem:[%s3 + $0x28] sm:$0xff] %v1039
  %1056 = vst [vmem:[%s3 + $0x30] sm:$0xff] %v1040
  %1057 = vst [vmem:[%s3 + $0x38] sm:$0xff] %v1041
  %1058 = vst [vmem:[%s3 + $0x40] sm:$0xff] %v1042
  %1059 = vst [vmem:[%s3 + $0x48] sm:$0xff] %v1043
  %1060 = vst [vmem:[%s3 + $0x50] sm:$0xff] %v1044
  %1061 = vst [vmem:[%s3 + $0x58] sm:$0xff] %v1045
  %1062 = vst [vmem:[%s3 + $0x60] sm:$0xff] %v1046
  %1063 = vst [vmem:[%s3 + $0x68] sm:$0xff] %v1047
  %1064 = vst [vmem:[%s3 + $0x70] sm:$0xff] %v1048
  %1065 = vst [vmem:[%s3 + $0x78] sm:$0xff] %v1049
  // Predicated region
  $region14: #{conv_policy_forward.5} parent=0 // pred_check
    _
  $region15: #{conv_policy_forward.5} parent=0 // pred_check_branch
    %1067 = sbr.rel (0) target = $region17
  $region16: #{conv_policy_forward.5} parent=0 // pred_region
    _
  $region17: #{conv_policy_forward.5} parent=0 // pred_fallthru
    _
  // Predicated region
  $region18: #{conv_policy_forward.5} parent=0 // pred_check
    _
  $region19: #{conv_policy_forward.5} parent=0 // pred_check_branch
    %1069 = sbr.rel (0) target = $region21
  $region20: #{conv_policy_forward.5} parent=0 // pred_region
    _
  $region21: #{conv_policy_forward.5} parent=0 // pred_fallthru
    _

// kernel: conv_policy_forward.6
$region0: #{conv_policy_forward.6}
  #allocation0 [shape = 'u32[]', space=smem, size = 0x4, offset = 0x4, fixed_abs, tag = 'smem constant byte address 0x4 - core index']
  #allocation1 [shape = 'u32[144,128]{1,0:T(1,128)}', space=vmem, size = 0x12000, scoped, tag = 'internal scratch']
  %s0 = inlined_call_operand.vmem [shape: f32[32,512], index: 0, kind: input, shape index: {}]
  %s1 = inlined_call_operand.vmem [shape: f32[512,128], index: 1, kind: input, shape index: {}]
  %s2 = inlined_call_operand.vmem [shape: f32[1,128], index: 2, kind: input, shape index: {}]
  %s3 = inlined_call_operand.vmem [shape: f32[32,128], index: 3, kind: output, shape index: {}]
  %s4 = sld [smem:[#allocation0]]
  $region22: #{conv_policy_forward.6} parent=0
    _
  %s6 = ssub.s32 1, %s4
  %s7 = scalar_select 0, %s6, %s4
  // Predicated region
  $region2: #{conv_policy_forward.6} parent=0 // pred_check
    _
  $region3: #{conv_policy_forward.6} parent=0 // pred_check_branch
    %9 = sbr.rel (0) target = $region5
  $region4: #{conv_policy_forward.6} parent=0 // pred_region
    _
  $region5: #{conv_policy_forward.6} parent=0 // pred_fallthru
    _
  // Predicated region
  $region6: #{conv_policy_forward.6} parent=0 // pred_check
    _
  $region7: #{conv_policy_forward.6} parent=0 // pred_check_branch
    %11 = sbr.rel (0) target = $region9
  $region8: #{conv_policy_forward.6} parent=0 // pred_region
    _
  $region9: #{conv_policy_forward.6} parent=0 // pred_fallthru
    _
  // Predicated region
  $region10: #{conv_policy_forward.6} parent=0 // pred_check
    _
  $region11: #{conv_policy_forward.6} parent=0 // pred_check_branch
    %13 = sbr.rel (0) target = $region13
  $region12: #{conv_policy_forward.6} parent=0 // pred_region
    _
  $region13: #{conv_policy_forward.6} parent=0 // pred_fallthru
    _
  %v14 = vld [vmem:[%s0] sm:$0xff]
  %v15 = vld [vmem:[%s0 + $0x8] sm:$0xff]
  %v16 = vld [vmem:[%s0 + $0x10] sm:$0xff]
  %v17 = vld [vmem:[%s0 + $0x18] sm:$0xff]
  %v18 = vld [vmem:[%s0 + $0x20] sm:$0xff]
  %v19 = vld [vmem:[%s0 + $0x28] sm:$0xff]
  %v20 = vld [vmem:[%s0 + $0x30] sm:$0xff]
  %v21 = vld [vmem:[%s0 + $0x38] sm:$0xff]
  %v22 = vld [vmem:[%s0 + $0x40] sm:$0xff]
  %v23 = vld [vmem:[%s0 + $0x48] sm:$0xff]
  %v24 = vld [vmem:[%s0 + $0x50] sm:$0xff]
  %v25 = vld [vmem:[%s0 + $0x58] sm:$0xff]
  %v26 = vld [vmem:[%s0 + $0x60] sm:$0xff]
  %v27 = vld [vmem:[%s0 + $0x68] sm:$0xff]
  %v28 = vld [vmem:[%s0 + $0x70] sm:$0xff]
  %v29 = vld [vmem:[%s0 + $0x78] sm:$0xff]
  %v30 = vld [vmem:[%s1] sm:$0xff]
  %v31 = vld [vmem:[%s1 + $0x8] sm:$0xff]
  %v32 = vld [vmem:[%s1 + $0x10] sm:$0xff]
  %v33 = vld [vmem:[%s1 + $0x18] sm:$0xff]
  %v34 = vld [vmem:[%s1 + $0x20] sm:$0xff]
  %v35 = vld [vmem:[%s1 + $0x28] sm:$0xff]
  %v36 = vld [vmem:[%s1 + $0x30] sm:$0xff]
  %v37 = vld [vmem:[%s1 + $0x38] sm:$0xff]
  %v38 = vld [vmem:[%s1 + $0x40] sm:$0xff]
  %v39 = vld [vmem:[%s1 + $0x48] sm:$0xff]
  %v40 = vld [vmem:[%s1 + $0x50] sm:$0xff]
  %v41 = vld [vmem:[%s1 + $0x58] sm:$0xff]
  %v42 = vld [vmem:[%s1 + $0x60] sm:$0xff]
  %v43 = vld [vmem:[%s1 + $0x68] sm:$0xff]
  %v44 = vld [vmem:[%s1 + $0x70] sm:$0xff]
  %v45 = vld [vmem:[%s1 + $0x78] sm:$0xff]
  %v46 = vld [vmem:[%s1 + $0x80] sm:$0xff]
  %v47 = vld [vmem:[%s1 + $0x88] sm:$0xff]
  %v48 = vld [vmem:[%s1 + $0x90] sm:$0xff]
  %v49 = vld [vmem:[%s1 + $0x98] sm:$0xff]
  %v50 = vld [vmem:[%s1 + $0xa0] sm:$0xff]
  %v51 = vld [vmem:[%s1 + $0xa8] sm:$0xff]
  %v52 = vld [vmem:[%s1 + $0xb0] sm:$0xff]
  %v53 = vld [vmem:[%s1 + $0xb8] sm:$0xff]
  %v54 = vld [vmem:[%s1 + $0xc0] sm:$0xff]
  %v55 = vld [vmem:[%s1 + $0xc8] sm:$0xff]
  %v56 = vld [vmem:[%s1 + $0xd0] sm:$0xff]
  %v57 = vld [vmem:[%s1 + $0xd8] sm:$0xff]
  %v58 = vld [vmem:[%s1 + $0xe0] sm:$0xff]
  %v59 = vld [vmem:[%s1 + $0xe8] sm:$0xff]
  %v60 = vld [vmem:[%s1 + $0xf0] sm:$0xff]
  %v61 = vld [vmem:[%s1 + $0xf8] sm:$0xff]
  %v62 = vld [vmem:[%s1 + $0x100] sm:$0xff]
  %v63 = vld [vmem:[%s1 + $0x108] sm:$0xff]
  %v64 = vld [vmem:[%s1 + $0x110] sm:$0xff]
  %v65 = vld [vmem:[%s1 + $0x118] sm:$0xff]
  %v66 = vld [vmem:[%s1 + $0x120] sm:$0xff]
  %v67 = vld [vmem:[%s1 + $0x128] sm:$0xff]
  %v68 = vld [vmem:[%s1 + $0x130] sm:$0xff]
  %v69 = vld [vmem:[%s1 + $0x138] sm:$0xff]
  %v70 = vld [vmem:[%s1 + $0x140] sm:$0xff]
  %v71 = vld [vmem:[%s1 + $0x148] sm:$0xff]
  %v72 = vld [vmem:[%s1 + $0x150] sm:$0xff]
  %v73 = vld [vmem:[%s1 + $0x158] sm:$0xff]
  %v74 = vld [vmem:[%s1 + $0x160] sm:$0xff]
  %v75 = vld [vmem:[%s1 + $0x168] sm:$0xff]
  %v76 = vld [vmem:[%s1 + $0x170] sm:$0xff]
  %v77 = vld [vmem:[%s1 + $0x178] sm:$0xff]
  %v78 = vld [vmem:[%s1 + $0x180] sm:$0xff]
  %v79 = vld [vmem:[%s1 + $0x188] sm:$0xff]
  %v80 = vld [vmem:[%s1 + $0x190] sm:$0xff]
  %v81 = vld [vmem:[%s1 + $0x198] sm:$0xff]
  %v82 = vld [vmem:[%s1 + $0x1a0] sm:$0xff]
  %v83 = vld [vmem:[%s1 + $0x1a8] sm:$0xff]
  %v84 = vld [vmem:[%s1 + $0x1b0] sm:$0xff]
  %v85 = vld [vmem:[%s1 + $0x1b8] sm:$0xff]
  %v86 = vld [vmem:[%s1 + $0x1c0] sm:$0xff]
  %v87 = vld [vmem:[%s1 + $0x1c8] sm:$0xff]
  %v88 = vld [vmem:[%s1 + $0x1d0] sm:$0xff]
  %v89 = vld [vmem:[%s1 + $0x1d8] sm:$0xff]
  %v90 = vld [vmem:[%s1 + $0x1e0] sm:$0xff]
  %v91 = vld [vmem:[%s1 + $0x1e8] sm:$0xff]
  %v92 = vld [vmem:[%s1 + $0x1f0] sm:$0xff]
  %v93 = vld [vmem:[%s1 + $0x1f8] sm:$0xff]
  %v94 = vld [vmem:[%s2] sm:$0x1]
  %v96 = vlaneseq
  %v97 = vshrl.u32 %v96, 7
  %v98 = vsub.s32 0, %v97
  %v99 = vrot.slane %v94, %v98
  %101 = vmatprep.subr.mxu0 0.0
  %102 = vmatpush1.msra.mxu0 %v30
  %103 = vmatprep.subr.mxu0 0.0
  %104 = vmatpush1.msra.mxu0 %v31
  %105 = vmatprep.subr.mxu0 0.0
  %106 = vmatpush1.msra.mxu0 %v32
  %107 = vmatprep.subr.mxu0 0.0
  %108 = vmatpush1.msra.mxu0 %v33
  %109 = vmatprep.subr.mxu0 0.0
  %110 = vmatpush1.msra.mxu0 %v34
  %111 = vmatprep.subr.mxu0 0.0
  %112 = vmatpush1.msra.mxu0 %v35
  %113 = vmatprep.subr.mxu0 0.0
  %114 = vmatpush1.msra.mxu0 %v36
  %115 = vmatprep.subr.mxu0 0.0
  %116 = vmatpush1.msra.mxu0 %v37
  %117 = vmatprep.subr.mxu0 0.0
  %118 = vmatpush1.msra.mxu0 %v38
  %119 = vmatprep.subr.mxu0 0.0
  %120 = vmatpush1.msra.mxu0 %v39
  %121 = vmatprep.subr.mxu0 0.0
  %122 = vmatpush1.msra.mxu0 %v40
  %123 = vmatprep.subr.mxu0 0.0
  %124 = vmatpush1.msra.mxu0 %v41
  %125 = vmatprep.subr.mxu0 0.0
  %126 = vmatpush1.msra.mxu0 %v42
  %127 = vmatprep.subr.mxu0 0.0
  %128 = vmatpush1.msra.mxu0 %v43
  %129 = vmatprep.subr.mxu0 0.0
  %130 = vmatpush1.msra.mxu0 %v44
  %131 = vmatprep.subr.mxu0 0.0
  %132 = vmatpush1.msra.mxu0 %v45
  %133 = vmatprep.subr.mxu0 0.0
  %134 = vmatpush1.msra.mxu0 %v46
  %135 = vmatprep.subr.mxu0 0.0
  %136 = vmatpush1.msra.mxu0 %v47
  %137 = vmatprep.subr.mxu0 0.0
  %138 = vmatpush1.msra.mxu0 %v48
  %139 = vmatprep.subr.mxu0 0.0
  %140 = vmatpush1.msra.mxu0 %v49
  %141 = vmatprep.subr.mxu0 0.0
  %142 = vmatpush1.msra.mxu0 %v50
  %143 = vmatprep.subr.mxu0 0.0
  %144 = vmatpush1.msra.mxu0 %v51
  %145 = vmatprep.subr.mxu0 0.0
  %146 = vmatpush1.msra.mxu0 %v52
  %147 = vmatprep.subr.mxu0 0.0
  %148 = vmatpush1.msra.mxu0 %v53
  %149 = vmatprep.subr.mxu0 0.0
  %150 = vmatpush1.msra.mxu0 %v54
  %151 = vmatprep.subr.mxu0 0.0
  %152 = vmatpush1.msra.mxu0 %v55
  %153 = vmatprep.subr.mxu0 0.0
  %154 = vmatpush1.msra.mxu0 %v56
  %155 = vmatprep.subr.mxu0 0.0
  %156 = vmatpush1.msra.mxu0 %v57
  %157 = vmatprep.subr.mxu0 0.0
  %158 = vmatpush1.msra.mxu0 %v58
  %159 = vmatprep.subr.mxu0 0.0
  %160 = vmatpush1.msra.mxu0 %v59
  %161 = vmatprep.subr.mxu0 0.0
  %162 = vmatpush1.msra.mxu0 %v60
  %163 = vmatprep.subr.mxu0 0.0
  %164 = vmatpush1.msra.mxu0 %v61
  %165 = vmatprep.mubr.f32.mxu0 %v15
  %166 = vmatmul.mubr.f32.gmra.mrb[0].mxu0 %v14
  %v167 = vpop.f32.mrb[0].mxu0
  %v168 = vadd.f32 %v99, %v167
  %v169 = vpop.f32.mrb[0].mxu0
  %170 = vmatprep.mubr.f32.mxu0 %v19
  %171 = vmatmul.mubr.f32.gmra.mrb[0].mxu0 %v18
  %v172 = vpop.f32.mrb[0].mxu0
  %v173 = vadd.f32 %v99, %v172
  %v174 = vpop.f32.mrb[0].mxu0
  %175 = vmatprep.mubr.f32.mxu0 %v23
  %176 = vmatmul.mubr.f32.gmra.mrb[0].mxu0 %v22
  %v177 = vpop.f32.mrb[0].mxu0
  %v178 = vadd.f32 %v99, %v177
  %v179 = vpop.f32.mrb[0].mxu0
  %180 = vmatprep.mubr.f32.mxu0 %v27
  %181 = vmatmul.mubr.f32.gmra.mrb[0].mxu0 %v26
  %v182 = vpop.f32.mrb[0].mxu0
  %v183 = vadd.f32 %v99, %v182
  %v184 = vpop.f32.mrb[0].mxu0
  %185 = vdwg.mxu0
  %186 = vmatprep.subr.mxu0 0.0
  %187 = vmatpush1.msra.mxu0 %v62
  %188 = vmatprep.subr.mxu0 0.0
  %189 = vmatpush1.msra.mxu0 %v63
  %190 = vmatprep.subr.mxu0 0.0
  %191 = vmatpush1.msra.mxu0 %v64
  %192 = vmatprep.subr.mxu0 0.0
  %193 = vmatpush1.msra.mxu0 %v65
  %194 = vmatprep.subr.mxu0 0.0
  %195 = vmatpush1.msra.mxu0 %v66
  %196 = vmatprep.subr.mxu0 0.0
  %197 = vmatpush1.msra.mxu0 %v67
  %198 = vmatprep.subr.mxu0 0.0
  %199 = vmatpush1.msra.mxu0 %v68
  %200 = vmatprep.subr.mxu0 0.0
  %201 = vmatpush1.msra.mxu0 %v69
  %202 = vmatprep.subr.mxu0 0.0
  %203 = vmatpush1.msra.mxu0 %v70
  %204 = vmatprep.subr.mxu0 0.0
  %205 = vmatpush1.msra.mxu0 %v71
  %206 = vmatprep.subr.mxu0 0.0
  %207 = vmatpush1.msra.mxu0 %v72
  %208 = vmatprep.subr.mxu0 0.0
  %209 = vmatpush1.msra.mxu0 %v73
  %210 = vmatprep.subr.mxu0 0.0
  %211 = vmatpush1.msra.mxu0 %v74
  %212 = vmatprep.subr.mxu0 0.0
  %213 = vmatpush1.msra.mxu0 %v75
  %214 = vmatprep.subr.mxu0 0.0
  %215 = vmatpush1.msra.mxu0 %v76
  %216 = vmatprep.subr.mxu0 0.0
  %217 = vmatpush1.msra.mxu0 %v77
  %218 = vmatprep.subr.mxu0 0.0
  %219 = vmatpush1.msra.mxu0 %v78
  %220 = vmatprep.subr.mxu0 0.0
  %221 = vmatpush1.msra.mxu0 %v79
  %222 = vmatprep.subr.mxu0 0.0
  %223 = vmatpush1.msra.mxu0 %v80
  %224 = vmatprep.subr.mxu0 0.0
  %225 = vmatpush1.msra.mxu0 %v81
  %226 = vmatprep.subr.mxu0 0.0
  %227 = vmatpush1.msra.mxu0 %v82
  %228 = vmatprep.subr.mxu0 0.0
  %229 = vmatpush1.msra.mxu0 %v83
  %230 = vmatprep.subr.mxu0 0.0
  %231 = vmatpush1.msra.mxu0 %v84
  %232 = vmatprep.subr.mxu0 0.0
  %233 = vmatpush1.msra.mxu0 %v85
  %234 = vmatprep.subr.mxu0 0.0
  %235 = vmatpush1.msra.mxu0 %v86
  %236 = vmatprep.subr.mxu0 0.0
  %237 = vmatpush1.msra.mxu0 %v87
  %238 = vmatprep.subr.mxu0 0.0
  %239 = vmatpush1.msra.mxu0 %v88
  %240 = vmatprep.subr.mxu0 0.0
  %241 = vmatpush1.msra.mxu0 %v89
  %242 = vmatprep.subr.mxu0 0.0
  %243 = vmatpush1.msra.mxu0 %v90
  %244 = vmatprep.subr.mxu0 0.0
  %245 = vmatpush1.msra.mxu0 %v91
  %246 = vmatprep.subr.mxu0 0.0
  %247 = vmatpush1.msra.mxu0 %v92
  %248 = vmatprep.subr.mxu0 0.0
  %249 = vmatpush1.msra.mxu0 %v93
  %250 = vmatprep.mubr.f32.mxu0 %v17
  %251 = vmatmul.mubr.f32.gmra.mrb[0].mxu0 %v16
  %v252 = vpop.f32.mrb[0].mxu0
  %v253 = vadd.f32 %v168, %v252
  %v254 = vpop.f32.mrb[0].mxu0
  %255 = vmatprep.mubr.f32.mxu0 %v21
  %256 = vmatmul.mubr.f32.gmra.mrb[0].mxu0 %v20
  %v257 = vpop.f32.mrb[0].mxu0
  %v258 = vadd.f32 %v173, %v257
  %v259 = vpop.f32.mrb[0].mxu0
  %260 = vmatprep.mubr.f32.mxu0 %v25
  %261 = vmatmul.mubr.f32.gmra.mrb[0].mxu0 %v24
  %v262 = vpop.f32.mrb[0].mxu0
  %v263 = vadd.f32 %v178, %v262
  %v264 = vpop.f32.mrb[0].mxu0
  %265 = vmatprep.mubr.f32.mxu0 %v29
  %266 = vmatmul.mubr.f32.gmra.mrb[0].mxu0 %v28
  %v267 = vpop.f32.mrb[0].mxu0
  %v268 = vadd.f32 %v183, %v267
  %v269 = vpop.f32.mrb[0].mxu0
  %270 = vdwg.mxu0
  %v271 = vmax.f32 %v253, 0.0
  %v272 = vmax.f32 %v258, 0.0
  %v273 = vmax.f32 %v263, 0.0
  %v274 = vmax.f32 %v268, 0.0
  %275 = vst [vmem:[%s3] sm:$0xff] %v271
  %276 = vst [vmem:[%s3 + $0x8] sm:$0xff] %v272
  %277 = vst [vmem:[%s3 + $0x10] sm:$0xff] %v273
  %278 = vst [vmem:[%s3 + $0x18] sm:$0xff] %v274
  // Predicated region
  $region14: #{conv_policy_forward.6} parent=0 // pred_check
    _
  $region15: #{conv_policy_forward.6} parent=0 // pred_check_branch
    %280 = sbr.rel (0) target = $region17
  $region16: #{conv_policy_forward.6} parent=0 // pred_region
    _
  $region17: #{conv_policy_forward.6} parent=0 // pred_fallthru
    _
  // Predicated region
  $region18: #{conv_policy_forward.6} parent=0 // pred_check
    _
  $region19: #{conv_policy_forward.6} parent=0 // pred_check_branch
    %282 = sbr.rel (0) target = $region21
  $region20: #{conv_policy_forward.6} parent=0 // pred_region
    _
  $region21: #{conv_policy_forward.6} parent=0 // pred_fallthru
    _

// kernel: conv_policy_forward.7
$region0: #{conv_policy_forward.7}
  #allocation0 [shape = 'u32[]', space=smem, size = 0x4, offset = 0x4, fixed_abs, tag = 'smem constant byte address 0x4 - core index']
  #allocation1 [shape = 'u32[144,128]{1,0:T(1,128)}', space=vmem, size = 0x12000, scoped, tag = 'internal scratch']
  %s0 = inlined_call_operand.vmem [shape: f32[2,2048], index: 0, kind: input, shape index: {}]
  %s1 = inlined_call_operand.vmem [shape: f32[512,256], index: 1, kind: input, shape index: {}]
  %s2 = inlined_call_operand.vmem [shape: f32[1,256], index: 2, kind: input, shape index: {}]
  %s3 = inlined_call_operand.vmem [shape: f32[1024,256], index: 3, kind: input, shape index: {}]
  %s4 = inlined_call_operand.vmem [shape: f32[1,256], index: 4, kind: input, shape index: {}]
  %s5 = inlined_call_operand.vmem [shape: f32[256,4], index: 5, kind: input, shape index: {}]
  %s6 = inlined_call_operand.vmem [shape: f32[1,4], index: 6, kind: input, shape index: {}]
  %s7 = inlined_call_operand.vmem [shape: f32[1,4], index: 7, kind: input, shape index: {}]
  %s8 = inlined_call_operand.vmem [shape: f32[1,4], index: 8, kind: input, shape index: {}]
  %s9 = inlined_call_operand.hbm [shape: f32[2,4], index: 9, kind: output, shape index: {}]
  %s10 = sld [smem:[#allocation0]]
  $region46: #{conv_policy_forward.7} parent=0
    _
  %s12 = ssub.s32 1, %s10
  %s13 = scalar_select 0, %s12, %s10
  $region1: #{conv_policy_forward.7} parent=0
    #allocation2 [shape = 'u8[1024]{0}', space=vmem, size = 0x400, scoped, tag = 'output window, operand 0, single buffered']
    #allocation3 [shape = 's32[1]{0}', space=sflag, size = 0x4, scoped, tag = 'scoped memory for conv_policy_forward.7']
    %14 = vsyncpa [#allocation3], 0
    // Predicated region
    $region2: #{conv_policy_forward.7} parent=1 // pred_check
      _
    $region3: #{conv_policy_forward.7} parent=1 // pred_check_branch
      %16 = sbr.rel (0) target = $region5
    $region4: #{conv_policy_forward.7} parent=1 // pred_region
      _
    $region5: #{conv_policy_forward.7} parent=1 // pred_fallthru
      _
    // Predicated region
    $region6: #{conv_policy_forward.7} parent=1 // pred_check
      _
    $region7: #{conv_policy_forward.7} parent=1 // pred_check_branch
      %18 = sbr.rel (0) target = $region9
    $region8: #{conv_policy_forward.7} parent=1 // pred_region
      _
    $region9: #{conv_policy_forward.7} parent=1 // pred_fallthru
      _
    // Predicated region
    $region10: #{conv_policy_forward.7} parent=1 // pred_check
      _
    $region11: #{conv_policy_forward.7} parent=1 // pred_check_branch
      %20 = sbr.rel (0) target = $region13
    $region12: #{conv_policy_forward.7} parent=1 // pred_region
      _
    $region13: #{conv_policy_forward.7} parent=1 // pred_fallthru
      _
    // Predicated region
    $region14: #{conv_policy_forward.7} parent=1 // pred_check
      _
    $region15: #{conv_policy_forward.7} parent=1 // pred_check_branch
      %22 = sbr.rel (0) target = $region17
    $region16: #{conv_policy_forward.7} parent=1 // pred_region
      _
    $region17: #{conv_policy_forward.7} parent=1 // pred_fallthru
      _
    // Predicated region
    $region18: #{conv_policy_forward.7} parent=1 // pred_check
      _
    $region19: #{conv_policy_forward.7} parent=1 // pred_check_branch
      %24 = sbr.rel (0) target = $region21
    $region20: #{conv_policy_forward.7} parent=1 // pred_region
      _
    $region21: #{conv_policy_forward.7} parent=1 // pred_fallthru
      _
    // Predicated region
    $region22: #{conv_policy_forward.7} parent=1 // pred_check
      _
    $region23: #{conv_policy_forward.7} parent=1 // pred_check_branch
      %26 = sbr.rel (0) target = $region25
    $region24: #{conv_policy_forward.7} parent=1 // pred_region
      _
    $region25: #{conv_policy_forward.7} parent=1 // pred_fallthru
      _
    // Predicated region
    $region26: #{conv_policy_forward.7} parent=1 // pred_check
      _
    $region27: #{conv_policy_forward.7} parent=1 // pred_check_branch
      %28 = sbr.rel (0) target = $region29
    $region28: #{conv_policy_forward.7} parent=1 // pred_region
      _
    $region29: #{conv_policy_forward.7} parent=1 // pred_fallthru
      _
    // Predicated region
    $region30: #{conv_policy_forward.7} parent=1 // pred_check
      _
    $region31: #{conv_policy_forward.7} parent=1 // pred_check_branch
      %30 = sbr.rel (0) target = $region33
    $region32: #{conv_policy_forward.7} parent=1 // pred_region
      _
    $region33: #{conv_policy_forward.7} parent=1 // pred_fallthru
      _
    // Predicated region
    $region34: #{conv_policy_forward.7} parent=1 // pred_check
      _
    $region35: #{conv_policy_forward.7} parent=1 // pred_check_branch
      %32 = sbr.rel (0) target = $region37
    $region36: #{conv_policy_forward.7} parent=1 // pred_region
      _
    $region37: #{conv_policy_forward.7} parent=1 // pred_fallthru
      _
    %v33 = vld [vmem:[%s0] sm:$0xff]
    %v34 = vld [vmem:[%s1] sm:$0xff]
    %v35 = vld [vmem:[%s1 + $0x8] sm:$0xff]
    %v36 = vld [vmem:[%s1 + $0x10] sm:$0xff]
    %v37 = vld [vmem:[%s1 + $0x18] sm:$0xff]
    %v38 = vld [vmem:[%s1 + $0x20] sm:$0xff]
    %v39 = vld [vmem:[%s1 + $0x28] sm:$0xff]
    %v40 = vld [vmem:[%s1 + $0x30] sm:$0xff]
    %v41 = vld [vmem:[%s1 + $0x38] sm:$0xff]
    %v42 = vld [vmem:[%s1 + $0x40] sm:$0xff]
    %v43 = vld [vmem:[%s1 + $0x48] sm:$0xff]
    %v44 = vld [vmem:[%s1 + $0x50] sm:$0xff]
    %v45 = vld [vmem:[%s1 + $0x58] sm:$0xff]
    %v46 = vld [vmem:[%s1 + $0x60] sm:$0xff]
    %v47 = vld [vmem:[%s1 + $0x68] sm:$0xff]
    %v48 = vld [vmem:[%s1 + $0x70] sm:$0xff]
    %v49 = vld [vmem:[%s1 + $0x78] sm:$0xff]
    %v50 = vld [vmem:[%s1 + $0x80] sm:$0xff]
    %v51 = vld [vmem:[%s1 + $0x88] sm:$0xff]
    %v52 = vld [vmem:[%s1 + $0x90] sm:$0xff]
    %v53 = vld [vmem:[%s1 + $0x98] sm:$0xff]
    %v54 = vld [vmem:[%s1 + $0xa0] sm:$0xff]
    %v55 = vld [vmem:[%s1 + $0xa8] sm:$0xff]
    %v56 = vld [vmem:[%s1 + $0xb0] sm:$0xff]
    %v57 = vld [vmem:[%s1 + $0xb8] sm:$0xff]
    %v58 = vld [vmem:[%s1 + $0xc0] sm:$0xff]
    %v59 = vld [vmem:[%s1 + $0xc8] sm:$0xff]
    %v60 = vld [vmem:[%s1 + $0xd0] sm:$0xff]
    %v61 = vld [vmem:[%s1 + $0xd8] sm:$0xff]
    %v62 = vld [vmem:[%s1 + $0xe0] sm:$0xff]
    %v63 = vld [vmem:[%s1 + $0xe8] sm:$0xff]
    %v64 = vld [vmem:[%s1 + $0xf0] sm:$0xff]
    %v65 = vld [vmem:[%s1 + $0xf8] sm:$0xff]
    %v66 = vld [vmem:[%s1 + $0x100] sm:$0xff]
    %v67 = vld [vmem:[%s1 + $0x108] sm:$0xff]
    %v68 = vld [vmem:[%s1 + $0x110] sm:$0xff]
    %v69 = vld [vmem:[%s1 + $0x118] sm:$0xff]
    %v70 = vld [vmem:[%s1 + $0x120] sm:$0xff]
    %v71 = vld [vmem:[%s1 + $0x128] sm:$0xff]
    %v72 = vld [vmem:[%s1 + $0x130] sm:$0xff]
    %v73 = vld [vmem:[%s1 + $0x138] sm:$0xff]
    %v74 = vld [vmem:[%s1 + $0x140] sm:$0xff]
    %v75 = vld [vmem:[%s1 + $0x148] sm:$0xff]
    %v76 = vld [vmem:[%s1 + $0x150] sm:$0xff]
    %v77 = vld [vmem:[%s1 + $0x158] sm:$0xff]
    %v78 = vld [vmem:[%s1 + $0x160] sm:$0xff]
    %v79 = vld [vmem:[%s1 + $0x168] sm:$0xff]
    %v80 = vld [vmem:[%s1 + $0x170] sm:$0xff]
    %v81 = vld [vmem:[%s1 + $0x178] sm:$0xff]
    %v82 = vld [vmem:[%s1 + $0x180] sm:$0xff]
    %v83 = vld [vmem:[%s1 + $0x188] sm:$0xff]
    %v84 = vld [vmem:[%s1 + $0x190] sm:$0xff]
    %v85 = vld [vmem:[%s1 + $0x198] sm:$0xff]
    %v86 = vld [vmem:[%s1 + $0x1a0] sm:$0xff]
    %v87 = vld [vmem:[%s1 + $0x1a8] sm:$0xff]
    %v88 = vld [vmem:[%s1 + $0x1b0] sm:$0xff]
    %v89 = vld [vmem:[%s1 + $0x1b8] sm:$0xff]
    %v90 = vld [vmem:[%s1 + $0x1c0] sm:$0xff]
    %v91 = vld [vmem:[%s1 + $0x1c8] sm:$0xff]
    %v92 = vld [vmem:[%s1 + $0x1d0] sm:$0xff]
    %v93 = vld [vmem:[%s1 + $0x1d8] sm:$0xff]
    %v94 = vld [vmem:[%s1 + $0x1e0] sm:$0xff]
    %v95 = vld [vmem:[%s1 + $0x1e8] sm:$0xff]
    %v96 = vld [vmem:[%s1 + $0x1f0] sm:$0xff]
    %v97 = vld [vmem:[%s1 + $0x1f8] sm:$0xff]
    %v98 = vld [vmem:[%s1 + $0x200] sm:$0xff]
    %v99 = vld [vmem:[%s1 + $0x208] sm:$0xff]
    %v100 = vld [vmem:[%s1 + $0x210] sm:$0xff]
    %v101 = vld [vmem:[%s1 + $0x218] sm:$0xff]
    %v102 = vld [vmem:[%s1 + $0x220] sm:$0xff]
    %v103 = vld [vmem:[%s1 + $0x228] sm:$0xff]
    %v104 = vld [vmem:[%s1 + $0x230] sm:$0xff]
    %v105 = vld [vmem:[%s1 + $0x238] sm:$0xff]
    %v106 = vld [vmem:[%s1 + $0x240] sm:$0xff]
    %v107 = vld [vmem:[%s1 + $0x248] sm:$0xff]
    %v108 = vld [vmem:[%s1 + $0x250] sm:$0xff]
    %v109 = vld [vmem:[%s1 + $0x258] sm:$0xff]
    %v110 = vld [vmem:[%s1 + $0x260] sm:$0xff]
    %v111 = vld [vmem:[%s1 + $0x268] sm:$0xff]
    %v112 = vld [vmem:[%s1 + $0x270] sm:$0xff]
    %v113 = vld [vmem:[%s1 + $0x278] sm:$0xff]
    %v114 = vld [vmem:[%s1 + $0x280] sm:$0xff]
    %v115 = vld [vmem:[%s1 + $0x288] sm:$0xff]
    %v116 = vld [vmem:[%s1 + $0x290] sm:$0xff]
    %v117 = vld [vmem:[%s1 + $0x298] sm:$0xff]
    %v118 = vld [vmem:[%s1 + $0x2a0] sm:$0xff]
    %v119 = vld [vmem:[%s1 + $0x2a8] sm:$0xff]
    %v120 = vld [vmem:[%s1 + $0x2b0] sm:$0xff]
    %v121 = vld [vmem:[%s1 + $0x2b8] sm:$0xff]
    %v122 = vld [vmem:[%s1 + $0x2c0] sm:$0xff]
    %v123 = vld [vmem:[%s1 + $0x2c8] sm:$0xff]
    %v124 = vld [vmem:[%s1 + $0x2d0] sm:$0xff]
    %v125 = vld [vmem:[%s1 + $0x2d8] sm:$0xff]
    %v126 = vld [vmem:[%s1 + $0x2e0] sm:$0xff]
    %v127 = vld [vmem:[%s1 + $0x2e8] sm:$0xff]
    %v128 = vld [vmem:[%s1 + $0x2f0] sm:$0xff]
    %v129 = vld [vmem:[%s1 + $0x2f8] sm:$0xff]
    %v130 = vld [vmem:[%s1 + $0x300] sm:$0xff]
    %v131 = vld [vmem:[%s1 + $0x308] sm:$0xff]
    %v132 = vld [vmem:[%s1 + $0x310] sm:$0xff]
    %v133 = vld [vmem:[%s1 + $0x318] sm:$0xff]
    %v134 = vld [vmem:[%s1 + $0x320] sm:$0xff]
    %v135 = vld [vmem:[%s1 + $0x328] sm:$0xff]
    %v136 = vld [vmem:[%s1 + $0x330] sm:$0xff]
    %v137 = vld [vmem:[%s1 + $0x338] sm:$0xff]
    %v138 = vld [vmem:[%s1 + $0x340] sm:$0xff]
    %v139 = vld [vmem:[%s1 + $0x348] sm:$0xff]
    %v140 = vld [vmem:[%s1 + $0x350] sm:$0xff]
    %v141 = vld [vmem:[%s1 + $0x358] sm:$0xff]
    %v142 = vld [vmem:[%s1 + $0x360] sm:$0xff]
    %v143 = vld [vmem:[%s1 + $0x368] sm:$0xff]
    %v144 = vld [vmem:[%s1 + $0x370] sm:$0xff]
    %v145 = vld [vmem:[%s1 + $0x378] sm:$0xff]
    %v146 = vld [vmem:[%s1 + $0x380] sm:$0xff]
    %v147 = vld [vmem:[%s1 + $0x388] sm:$0xff]
    %v148 = vld [vmem:[%s1 + $0x390] sm:$0xff]
    %v149 = vld [vmem:[%s1 + $0x398] sm:$0xff]
    %v150 = vld [vmem:[%s1 + $0x3a0] sm:$0xff]
    %v151 = vld [vmem:[%s1 + $0x3a8] sm:$0xff]
    %v152 = vld [vmem:[%s1 + $0x3b0] sm:$0xff]
    %v153 = vld [vmem:[%s1 + $0x3b8] sm:$0xff]
    %v154 = vld [vmem:[%s1 + $0x3c0] sm:$0xff]
    %v155 = vld [vmem:[%s1 + $0x3c8] sm:$0xff]
    %v156 = vld [vmem:[%s1 + $0x3d0] sm:$0xff]
    %v157 = vld [vmem:[%s1 + $0x3d8] sm:$0xff]
    %v158 = vld [vmem:[%s1 + $0x3e0] sm:$0xff]
    %v159 = vld [vmem:[%s1 + $0x3e8] sm:$0xff]
    %v160 = vld [vmem:[%s1 + $0x3f0] sm:$0xff]
    %v161 = vld [vmem:[%s1 + $0x3f8] sm:$0xff]
    %v162 = vld [vmem:[%s2] sm:$0x3]
    %v164 = vlaneseq
    %v165 = vshrl.u32 %v164, 7
    %v166 = vsub.s32 0, %v165
    %v167 = vrot.slane %v162, %v166
    %v168 = vlaneseq
    %v169 = vshrl.u32 %v168, 7
    %v170 = vsub.s32 1, %v169
    %v171 = vrot.slane %v162, %v170
    %v175 = vcombine.high %v33, %v33
    %v177 = vunpack.c.l.s4 1983009808
    %v178 = vunpack.c.0.s8 %v177
    %v179 = vlaneseq
    %v180 = vshrl.u32 %v179, 7
    %v181 = vsub.s32 %v178, %v180
    %v182 = vrot.slane %v33, %v181
    %v184 = vunpack.c.l.s4 1983009808
    %v185 = vunpack.c.0.s8 %v184
    %v186 = vlaneseq
    %v187 = vshrl.u32 %v186, 7
    %v188 = vsub.s32 %v185, %v187
    %v189 = vrot.slane %v175, %v188
    %v190 = vcombine.high %v182, %v182
    %v191 = vcombine.high %v189, %v189
    %196 = vmatprep.subr.mxu0 %v35
    %197 = vmatpush1.msra.mxu0 %v34
    %198 = vmatprep.subr.mxu0 %v37
    %199 = vmatpush1.msra.mxu0 %v36
    %200 = vmatprep.subr.mxu0 %v39
    %201 = vmatpush1.msra.mxu0 %v38
    %202 = vmatprep.subr.mxu0 %v41
    %203 = vmatpush1.msra.mxu0 %v40
    %204 = vmatprep.subr.mxu0 %v43
    %205 = vmatpush1.msra.mxu0 %v42
    %206 = vmatprep.subr.mxu0 %v45
    %207 = vmatpush1.msra.mxu0 %v44
    %208 = vmatprep.subr.mxu0 %v47
    %209 = vmatpush1.msra.mxu0 %v46
    %210 = vmatprep.subr.mxu0 %v49
    %211 = vmatpush1.msra.mxu0 %v48
    %212 = vmatprep.subr.mxu0 %v51
    %213 = vmatpush1.msra.mxu0 %v50
    %214 = vmatprep.subr.mxu0 %v53
    %215 = vmatpush1.msra.mxu0 %v52
    %216 = vmatprep.subr.mxu0 %v55
    %217 = vmatpush1.msra.mxu0 %v54
    %218 = vmatprep.subr.mxu0 %v57
    %219 = vmatpush1.msra.mxu0 %v56
    %220 = vmatprep.subr.mxu0 %v59
    %221 = vmatpush1.msra.mxu0 %v58
    %222 = vmatprep.subr.mxu0 %v61
    %223 = vmatpush1.msra.mxu0 %v60
    %224 = vmatprep.subr.mxu0 %v63
    %225 = vmatpush1.msra.mxu0 %v62
    %226 = vmatprep.subr.mxu0 %v65
    %227 = vmatpush1.msra.mxu0 %v64
    %228 = vmatprep.subr.mxu0 %v67
    %229 = vmatpush1.msra.mxu0 %v66
    %230 = vmatprep.subr.mxu0 %v69
    %231 = vmatpush1.msra.mxu0 %v68
    %232 = vmatprep.subr.mxu0 %v71
    %233 = vmatpush1.msra.mxu0 %v70
    %234 = vmatprep.subr.mxu0 %v73
    %235 = vmatpush1.msra.mxu0 %v72
    %236 = vmatprep.subr.mxu0 %v75
    %237 = vmatpush1.msra.mxu0 %v74
    %238 = vmatprep.subr.mxu0 %v77
    %239 = vmatpush1.msra.mxu0 %v76
    %240 = vmatprep.subr.mxu0 %v79
    %241 = vmatpush1.msra.mxu0 %v78
    %242 = vmatprep.subr.mxu0 %v81
    %243 = vmatpush1.msra.mxu0 %v80
    %244 = vmatprep.subr.mxu0 %v83
    %245 = vmatpush1.msra.mxu0 %v82
    %246 = vmatprep.subr.mxu0 %v85
    %247 = vmatpush1.msra.mxu0 %v84
    %248 = vmatprep.subr.mxu0 %v87
    %249 = vmatpush1.msra.mxu0 %v86
    %250 = vmatprep.subr.mxu0 %v89
    %251 = vmatpush1.msra.mxu0 %v88
    %252 = vmatprep.subr.mxu0 %v91
    %253 = vmatpush1.msra.mxu0 %v90
    %254 = vmatprep.subr.mxu0 %v93
    %255 = vmatpush1.msra.mxu0 %v92
    %256 = vmatprep.subr.mxu0 %v95
    %257 = vmatpush1.msra.mxu0 %v94
    %258 = vmatprep.subr.mxu0 %v97
    %259 = vmatpush1.msra.mxu0 %v96
    %260 = vmatprep.mubr.f32.mxu0 %v190
    %261 = vmatmul.mubr.f32.gmra.mrb[0].mxu0 %v182
    %v262 = vpop.f32.mrb[0].mxu0
    %v263 = vadd.f32 %v167, %v262
    %v264 = vpop.f32.mrb[0].mxu0
    %v265 = vadd.f32 %v171, %v264
    %266 = vdwg.mxu0
    %267 = vmatprep.subr.mxu0 %v99
    %268 = vmatpush1.msra.mxu0 %v98
    %269 = vmatprep.subr.mxu0 %v101
    %270 = vmatpush1.msra.mxu0 %v100
    %271 = vmatprep.subr.mxu0 %v103
    %272 = vmatpush1.msra.mxu0 %v102
    %273 = vmatprep.subr.mxu0 %v105
    %274 = vmatpush1.msra.mxu0 %v104
    %275 = vmatprep.subr.mxu0 %v107
    %276 = vmatpush1.msra.mxu0 %v106
    %277 = vmatprep.subr.mxu0 %v109
    %278 = vmatpush1.msra.mxu0 %v108
    %279 = vmatprep.subr.mxu0 %v111
    %280 = vmatpush1.msra.mxu0 %v110
    %281 = vmatprep.subr.mxu0 %v113
    %282 = vmatpush1.msra.mxu0 %v112
    %283 = vmatprep.subr.mxu0 %v115
    %284 = vmatpush1.msra.mxu0 %v114
    %285 = vmatprep.subr.mxu0 %v117
    %286 = vmatpush1.msra.mxu0 %v116
    %287 = vmatprep.subr.mxu0 %v119
    %288 = vmatpush1.msra.mxu0 %v118
    %289 = vmatprep.subr.mxu0 %v121
    %290 = vmatpush1.msra.mxu0 %v120
    %291 = vmatprep.subr.mxu0 %v123
    %292 = vmatpush1.msra.mxu0 %v122
    %293 = vmatprep.subr.mxu0 %v125
    %294 = vmatpush1.msra.mxu0 %v124
    %295 = vmatprep.subr.mxu0 %v127
    %296 = vmatpush1.msra.mxu0 %v126
    %297 = vmatprep.subr.mxu0 %v129
    %298 = vmatpush1.msra.mxu0 %v128
    %299 = vmatprep.subr.mxu0 %v131
    %300 = vmatpush1.msra.mxu0 %v130
    %301 = vmatprep.subr.mxu0 %v133
    %302 = vmatpush1.msra.mxu0 %v132
    %303 = vmatprep.subr.mxu0 %v135
    %304 = vmatpush1.msra.mxu0 %v134
    %305 = vmatprep.subr.mxu0 %v137
    %306 = vmatpush1.msra.mxu0 %v136
    %307 = vmatprep.subr.mxu0 %v139
    %308 = vmatpush1.msra.mxu0 %v138
    %309 = vmatprep.subr.mxu0 %v141
    %310 = vmatpush1.msra.mxu0 %v140
    %311 = vmatprep.subr.mxu0 %v143
    %312 = vmatpush1.msra.mxu0 %v142
    %313 = vmatprep.subr.mxu0 %v145
    %314 = vmatpush1.msra.mxu0 %v144
    %315 = vmatprep.subr.mxu0 %v147
    %316 = vmatpush1.msra.mxu0 %v146
    %317 = vmatprep.subr.mxu0 %v149
    %318 = vmatpush1.msra.mxu0 %v148
    %319 = vmatprep.subr.mxu0 %v151
    %320 = vmatpush1.msra.mxu0 %v150
    %321 = vmatprep.subr.mxu0 %v153
    %322 = vmatpush1.msra.mxu0 %v152
    %323 = vmatprep.subr.mxu0 %v155
    %324 = vmatpush1.msra.mxu0 %v154
    %325 = vmatprep.subr.mxu0 %v157
    %326 = vmatpush1.msra.mxu0 %v156
    %327 = vmatprep.subr.mxu0 %v159
    %328 = vmatpush1.msra.mxu0 %v158
    %329 = vmatprep.subr.mxu0 %v161
    %330 = vmatpush1.msra.mxu0 %v160
    %331 = vmatprep.mubr.f32.mxu0 %v191
    %332 = vmatmul.mubr.f32.gmra.mrb[0].mxu0 %v189
    %v333 = vpop.f32.mrb[0].mxu0
    %v334 = vadd.f32 %v263, %v333
    %v335 = vpop.f32.mrb[0].mxu0
    %v336 = vadd.f32 %v265, %v335
    %337 = vdwg.mxu0
    %v338 = vmax.f32 %v334, 0.0
    %v339 = vmax.f32 %v336, 0.0
    %v340 = vld [vmem:[%s3] sm:$0xff]
    %v341 = vld [vmem:[%s3 + $0x8] sm:$0xff]
    %v342 = vld [vmem:[%s3 + $0x10] sm:$0xff]
    %v343 = vld [vmem:[%s3 + $0x18] sm:$0xff]
    %v344 = vld [vmem:[%s3 + $0x20] sm:$0xff]
    %v345 = vld [vmem:[%s3 + $0x28] sm:$0xff]
    %v346 = vld [vmem:[%s3 + $0x30] sm:$0xff]
    %v347 = vld [vmem:[%s3 + $0x38] sm:$0xff]
    %v348 = vld [vmem:[%s3 + $0x40] sm:$0xff]
    %v349 = vld [vmem:[%s3 + $0x48] sm:$0xff]
    %v350 = vld [vmem:[%s3 + $0x50] sm:$0xff]
    %v351 = vld [vmem:[%s3 + $0x58] sm:$0xff]
    %v352 = vld [vmem:[%s3 + $0x60] sm:$0xff]
    %v353 = vld [vmem:[%s3 + $0x68] sm:$0xff]
    %v354 = vld [vmem:[%s3 + $0x70] sm:$0xff]
    %v355 = vld [vmem:[%s3 + $0x78] sm:$0xff]
    %v356 = vld [vmem:[%s3 + $0x80] sm:$0xff]
    %v357 = vld [vmem:[%s3 + $0x88] sm:$0xff]
    %v358 = vld [vmem:[%s3 + $0x90] sm:$0xff]
    %v359 = vld [vmem:[%s3 + $0x98] sm:$0xff]
    %v360 = vld [vmem:[%s3 + $0xa0] sm:$0xff]
    %v361 = vld [vmem:[%s3 + $0xa8] sm:$0xff]
    %v362 = vld [vmem:[%s3 + $0xb0] sm:$0xff]
    %v363 = vld [vmem:[%s3 + $0xb8] sm:$0xff]
    %v364 = vld [vmem:[%s3 + $0xc0] sm:$0xff]
    %v365 = vld [vmem:[%s3 + $0xc8] sm:$0xff]
    %v366 = vld [vmem:[%s3 + $0xd0] sm:$0xff]
    %v367 = vld [vmem:[%s3 + $0xd8] sm:$0xff]
    %v368 = vld [vmem:[%s3 + $0xe0] sm:$0xff]
    %v369 = vld [vmem:[%s3 + $0xe8] sm:$0xff]
    %v370 = vld [vmem:[%s3 + $0xf0] sm:$0xff]
    %v371 = vld [vmem:[%s3 + $0xf8] sm:$0xff]
    %v372 = vld [vmem:[%s3 + $0x100] sm:$0xff]
    %v373 = vld [vmem:[%s3 + $0x108] sm:$0xff]
    %v374 = vld [vmem:[%s3 + $0x110] sm:$0xff]
    %v375 = vld [vmem:[%s3 + $0x118] sm:$0xff]
    %v376 = vld [vmem:[%s3 + $0x120] sm:$0xff]
    %v377 = vld [vmem:[%s3 + $0x128] sm:$0xff]
    %v378 = vld [vmem:[%s3 + $0x130] sm:$0xff]
    %v379 = vld [vmem:[%s3 + $0x138] sm:$0xff]
    %v380 = vld [vmem:[%s3 + $0x140] sm:$0xff]
    %v381 = vld [vmem:[%s3 + $0x148] sm:$0xff]
    %v382 = vld [vmem:[%s3 + $0x150] sm:$0xff]
    %v383 = vld [vmem:[%s3 + $0x158] sm:$0xff]
    %v384 = vld [vmem:[%s3 + $0x160] sm:$0xff]
    %v385 = vld [vmem:[%s3 + $0x168] sm:$0xff]
    %v386 = vld [vmem:[%s3 + $0x170] sm:$0xff]
    %v387 = vld [vmem:[%s3 + $0x178] sm:$0xff]
    %v388 = vld [vmem:[%s3 + $0x180] sm:$0xff]
    %v389 = vld [vmem:[%s3 + $0x188] sm:$0xff]
    %v390 = vld [vmem:[%s3 + $0x190] sm:$0xff]
    %v391 = vld [vmem:[%s3 + $0x198] sm:$0xff]
    %v392 = vld [vmem:[%s3 + $0x1a0] sm:$0xff]
    %v393 = vld [vmem:[%s3 + $0x1a8] sm:$0xff]
    %v394 = vld [vmem:[%s3 + $0x1b0] sm:$0xff]
    %v395 = vld [vmem:[%s3 + $0x1b8] sm:$0xff]
    %v396 = vld [vmem:[%s3 + $0x1c0] sm:$0xff]
    %v397 = vld [vmem:[%s3 + $0x1c8] sm:$0xff]
    %v398 = vld [vmem:[%s3 + $0x1d0] sm:$0xff]
    %v399 = vld [vmem:[%s3 + $0x1d8] sm:$0xff]
    %v400 = vld [vmem:[%s3 + $0x1e0] sm:$0xff]
    %v401 = vld [vmem:[%s3 + $0x1e8] sm:$0xff]
    %v402 = vld [vmem:[%s3 + $0x1f0] sm:$0xff]
    %v403 = vld [vmem:[%s3 + $0x1f8] sm:$0xff]
    %v404 = vld [vmem:[%s0 + $0x8] sm:$0xff]
    %v406 = vcombine.high %v404, %v404
    %v408 = vunpack.c.l.s4 1983009808
    %v409 = vunpack.c.0.s8 %v408
    %v410 = vlaneseq
    %v411 = vshrl.u32 %v410, 7
    %v412 = vsub.s32 %v409, %v411
    %v413 = vrot.slane %v404, %v412
    %v415 = vunpack.c.l.s4 1983009808
    %v416 = vunpack.c.0.s8 %v415
    %v417 = vlaneseq
    %v418 = vshrl.u32 %v417, 7
    %v419 = vsub.s32 %v416, %v418
    %v420 = vrot.slane %v406, %v419
    %v421 = vcombine.high %v413, %v413
    %v422 = vcombine.high %v420, %v420
    %427 = vmatprep.subr.mxu0 %v35
    %428 = vmatpush1.msra.mxu0 %v34
    %429 = vmatprep.subr.mxu0 %v37
    %430 = vmatpush1.msra.mxu0 %v36
    %431 = vmatprep.subr.mxu0 %v39
    %432 = vmatpush1.msra.mxu0 %v38
    %433 = vmatprep.subr.mxu0 %v41
    %434 = vmatpush1.msra.mxu0 %v40
    %435 = vmatprep.subr.mxu0 %v43
    %436 = vmatpush1.msra.mxu0 %v42
    %437 = vmatprep.subr.mxu0 %v45
    %438 = vmatpush1.msra.mxu0 %v44
    %439 = vmatprep.subr.mxu0 %v47
    %440 = vmatpush1.msra.mxu0 %v46
    %441 = vmatprep.subr.mxu0 %v49
    %442 = vmatpush1.msra.mxu0 %v48
    %443 = vmatprep.subr.mxu0 %v51
    %444 = vmatpush1.msra.mxu0 %v50
    %445 = vmatprep.subr.mxu0 %v53
    %446 = vmatpush1.msra.mxu0 %v52
    %447 = vmatprep.subr.mxu0 %v55
    %448 = vmatpush1.msra.mxu0 %v54
    %449 = vmatprep.subr.mxu0 %v57
    %450 = vmatpush1.msra.mxu0 %v56
    %451 = vmatprep.subr.mxu0 %v59
    %452 = vmatpush1.msra.mxu0 %v58
    %453 = vmatprep.subr.mxu0 %v61
    %454 = vmatpush1.msra.mxu0 %v60
    %455 = vmatprep.subr.mxu0 %v63
    %456 = vmatpush1.msra.mxu0 %v62
    %457 = vmatprep.subr.mxu0 %v65
    %458 = vmatpush1.msra.mxu0 %v64
    %459 = vmatprep.subr.mxu0 %v67
    %460 = vmatpush1.msra.mxu0 %v66
    %461 = vmatprep.subr.mxu0 %v69
    %462 = vmatpush1.msra.mxu0 %v68
    %463 = vmatprep.subr.mxu0 %v71
    %464 = vmatpush1.msra.mxu0 %v70
    %465 = vmatprep.subr.mxu0 %v73
    %466 = vmatpush1.msra.mxu0 %v72
    %467 = vmatprep.subr.mxu0 %v75
    %468 = vmatpush1.msra.mxu0 %v74
    %469 = vmatprep.subr.mxu0 %v77
    %470 = vmatpush1.msra.mxu0 %v76
    %471 = vmatprep.subr.mxu0 %v79
    %472 = vmatpush1.msra.mxu0 %v78
    %473 = vmatprep.subr.mxu0 %v81
    %474 = vmatpush1.msra.mxu0 %v80
    %475 = vmatprep.subr.mxu0 %v83
    %476 = vmatpush1.msra.mxu0 %v82
    %477 = vmatprep.subr.mxu0 %v85
    %478 = vmatpush1.msra.mxu0 %v84
    %479 = vmatprep.subr.mxu0 %v87
    %480 = vmatpush1.msra.mxu0 %v86
    %481 = vmatprep.subr.mxu0 %v89
    %482 = vmatpush1.msra.mxu0 %v88
    %483 = vmatprep.subr.mxu0 %v91
    %484 = vmatpush1.msra.mxu0 %v90
    %485 = vmatprep.subr.mxu0 %v93
    %486 = vmatpush1.msra.mxu0 %v92
    %487 = vmatprep.subr.mxu0 %v95
    %488 = vmatpush1.msra.mxu0 %v94
    %489 = vmatprep.subr.mxu0 %v97
    %490 = vmatpush1.msra.mxu0 %v96
    %491 = vmatprep.mubr.f32.mxu0 %v421
    %492 = vmatmul.mubr.f32.gmra.mrb[0].mxu0 %v413
    %v493 = vpop.f32.mrb[0].mxu0
    %v494 = vadd.f32 %v167, %v493
    %v495 = vpop.f32.mrb[0].mxu0
    %v496 = vadd.f32 %v171, %v495
    %497 = vdwg.mxu0
    %498 = vmatprep.subr.mxu0 %v99
    %499 = vmatpush1.msra.mxu0 %v98
    %500 = vmatprep.subr.mxu0 %v101
    %501 = vmatpush1.msra.mxu0 %v100
    %502 = vmatprep.subr.mxu0 %v103
    %503 = vmatpush1.msra.mxu0 %v102
    %504 = vmatprep.subr.mxu0 %v105
    %505 = vmatpush1.msra.mxu0 %v104
    %506 = vmatprep.subr.mxu0 %v107
    %507 = vmatpush1.msra.mxu0 %v106
    %508 = vmatprep.subr.mxu0 %v109
    %509 = vmatpush1.msra.mxu0 %v108
    %510 = vmatprep.subr.mxu0 %v111
    %511 = vmatpush1.msra.mxu0 %v110
    %512 = vmatprep.subr.mxu0 %v113
    %513 = vmatpush1.msra.mxu0 %v112
    %514 = vmatprep.subr.mxu0 %v115
    %515 = vmatpush1.msra.mxu0 %v114
    %516 = vmatprep.subr.mxu0 %v117
    %517 = vmatpush1.msra.mxu0 %v116
    %518 = vmatprep.subr.mxu0 %v119
    %519 = vmatpush1.msra.mxu0 %v118
    %520 = vmatprep.subr.mxu0 %v121
    %521 = vmatpush1.msra.mxu0 %v120
    %522 = vmatprep.subr.mxu0 %v123
    %523 = vmatpush1.msra.mxu0 %v122
    %524 = vmatprep.subr.mxu0 %v125
    %525 = vmatpush1.msra.mxu0 %v124
    %526 = vmatprep.subr.mxu0 %v127
    %527 = vmatpush1.msra.mxu0 %v126
    %528 = vmatprep.subr.mxu0 %v129
    %529 = vmatpush1.msra.mxu0 %v128
    %530 = vmatprep.subr.mxu0 %v131
    %531 = vmatpush1.msra.mxu0 %v130
    %532 = vmatprep.subr.mxu0 %v133
    %533 = vmatpush1.msra.mxu0 %v132
    %534 = vmatprep.subr.mxu0 %v135
    %535 = vmatpush1.msra.mxu0 %v134
    %536 = vmatprep.subr.mxu0 %v137
    %537 = vmatpush1.msra.mxu0 %v136
    %538 = vmatprep.subr.mxu0 %v139
    %539 = vmatpush1.msra.mxu0 %v138
    %540 = vmatprep.subr.mxu0 %v141
    %541 = vmatpush1.msra.mxu0 %v140
    %542 = vmatprep.subr.mxu0 %v143
    %543 = vmatpush1.msra.mxu0 %v142
    %544 = vmatprep.subr.mxu0 %v145
    %545 = vmatpush1.msra.mxu0 %v144
    %546 = vmatprep.subr.mxu0 %v147
    %547 = vmatpush1.msra.mxu0 %v146
    %548 = vmatprep.subr.mxu0 %v149
    %549 = vmatpush1.msra.mxu0 %v148
    %550 = vmatprep.subr.mxu0 %v151
    %551 = vmatpush1.msra.mxu0 %v150
    %552 = vmatprep.subr.mxu0 %v153
    %553 = vmatpush1.msra.mxu0 %v152
    %554 = vmatprep.subr.mxu0 %v155
    %555 = vmatpush1.msra.mxu0 %v154
    %556 = vmatprep.subr.mxu0 %v157
    %557 = vmatpush1.msra.mxu0 %v156
    %558 = vmatprep.subr.mxu0 %v159
    %559 = vmatpush1.msra.mxu0 %v158
    %560 = vmatprep.subr.mxu0 %v161
    %561 = vmatpush1.msra.mxu0 %v160
    %562 = vmatprep.mubr.f32.mxu0 %v422
    %563 = vmatmul.mubr.f32.gmra.mrb[0].mxu0 %v420
    %v564 = vpop.f32.mrb[0].mxu0
    %v565 = vadd.f32 %v494, %v564
    %v566 = vpop.f32.mrb[0].mxu0
    %v567 = vadd.f32 %v496, %v566
    %568 = vdwg.mxu0
    %v569 = vmax.f32 %v565, 0.0
    %v570 = vmax.f32 %v567, 0.0
    %v571 = vld [vmem:[%s3 + $0x200] sm:$0xff]
    %v572 = vld [vmem:[%s3 + $0x208] sm:$0xff]
    %v573 = vld [vmem:[%s3 + $0x210] sm:$0xff]
    %v574 = vld [vmem:[%s3 + $0x218] sm:$0xff]
    %v575 = vld [vmem:[%s3 + $0x220] sm:$0xff]
    %v576 = vld [vmem:[%s3 + $0x228] sm:$0xff]
    %v577 = vld [vmem:[%s3 + $0x230] sm:$0xff]
    %v578 = vld [vmem:[%s3 + $0x238] sm:$0xff]
    %v579 = vld [vmem:[%s3 + $0x240] sm:$0xff]
    %v580 = vld [vmem:[%s3 + $0x248] sm:$0xff]
    %v581 = vld [vmem:[%s3 + $0x250] sm:$0xff]
    %v582 = vld [vmem:[%s3 + $0x258] sm:$0xff]
    %v583 = vld [vmem:[%s3 + $0x260] sm:$0xff]
    %v584 = vld [vmem:[%s3 + $0x268] sm:$0xff]
    %v585 = vld [vmem:[%s3 + $0x270] sm:$0xff]
    %v586 = vld [vmem:[%s3 + $0x278] sm:$0xff]
    %v587 = vld [vmem:[%s3 + $0x280] sm:$0xff]
    %v588 = vld [vmem:[%s3 + $0x288] sm:$0xff]
    %v589 = vld [vmem:[%s3 + $0x290] sm:$0xff]
    %v590 = vld [vmem:[%s3 + $0x298] sm:$0xff]
    %v591 = vld [vmem:[%s3 + $0x2a0] sm:$0xff]
    %v592 = vld [vmem:[%s3 + $0x2a8] sm:$0xff]
    %v593 = vld [vmem:[%s3 + $0x2b0] sm:$0xff]
    %v594 = vld [vmem:[%s3 + $0x2b8] sm:$0xff]
    %v595 = vld [vmem:[%s3 + $0x2c0] sm:$0xff]
    %v596 = vld [vmem:[%s3 + $0x2c8] sm:$0xff]
    %v597 = vld [vmem:[%s3 + $0x2d0] sm:$0xff]
    %v598 = vld [vmem:[%s3 + $0x2d8] sm:$0xff]
    %v599 = vld [vmem:[%s3 + $0x2e0] sm:$0xff]
    %v600 = vld [vmem:[%s3 + $0x2e8] sm:$0xff]
    %v601 = vld [vmem:[%s3 + $0x2f0] sm:$0xff]
    %v602 = vld [vmem:[%s3 + $0x2f8] sm:$0xff]
    %v603 = vld [vmem:[%s3 + $0x300] sm:$0xff]
    %v604 = vld [vmem:[%s3 + $0x308] sm:$0xff]
    %v605 = vld [vmem:[%s3 + $0x310] sm:$0xff]
    %v606 = vld [vmem:[%s3 + $0x318] sm:$0xff]
    %v607 = vld [vmem:[%s3 + $0x320] sm:$0xff]
    %v608 = vld [vmem:[%s3 + $0x328] sm:$0xff]
    %v609 = vld [vmem:[%s3 + $0x330] sm:$0xff]
    %v610 = vld [vmem:[%s3 + $0x338] sm:$0xff]
    %v611 = vld [vmem:[%s3 + $0x340] sm:$0xff]
    %v612 = vld [vmem:[%s3 + $0x348] sm:$0xff]
    %v613 = vld [vmem:[%s3 + $0x350] sm:$0xff]
    %v614 = vld [vmem:[%s3 + $0x358] sm:$0xff]
    %v615 = vld [vmem:[%s3 + $0x360] sm:$0xff]
    %v616 = vld [vmem:[%s3 + $0x368] sm:$0xff]
    %v617 = vld [vmem:[%s3 + $0x370] sm:$0xff]
    %v618 = vld [vmem:[%s3 + $0x378] sm:$0xff]
    %v619 = vld [vmem:[%s3 + $0x380] sm:$0xff]
    %v620 = vld [vmem:[%s3 + $0x388] sm:$0xff]
    %v621 = vld [vmem:[%s3 + $0x390] sm:$0xff]
    %v622 = vld [vmem:[%s3 + $0x398] sm:$0xff]
    %v623 = vld [vmem:[%s3 + $0x3a0] sm:$0xff]
    %v624 = vld [vmem:[%s3 + $0x3a8] sm:$0xff]
    %v625 = vld [vmem:[%s3 + $0x3b0] sm:$0xff]
    %v626 = vld [vmem:[%s3 + $0x3b8] sm:$0xff]
    %v627 = vld [vmem:[%s3 + $0x3c0] sm:$0xff]
    %v628 = vld [vmem:[%s3 + $0x3c8] sm:$0xff]
    %v629 = vld [vmem:[%s3 + $0x3d0] sm:$0xff]
    %v630 = vld [vmem:[%s3 + $0x3d8] sm:$0xff]
    %v631 = vld [vmem:[%s3 + $0x3e0] sm:$0xff]
    %v632 = vld [vmem:[%s3 + $0x3e8] sm:$0xff]
    %v633 = vld [vmem:[%s3 + $0x3f0] sm:$0xff]
    %v634 = vld [vmem:[%s3 + $0x3f8] sm:$0xff]
    %635 = vmatprep.subr.mxu0 %v572
    %636 = vmatpush1.msra.mxu0 %v571
    %637 = vmatprep.subr.mxu0 %v574
    %638 = vmatpush1.msra.mxu0 %v573
    %639 = vmatprep.subr.mxu0 %v576
    %640 = vmatpush1.msra.mxu0 %v575
    %641 = vmatprep.subr.mxu0 %v578
    %642 = vmatpush1.msra.mxu0 %v577
    %643 = vmatprep.subr.mxu0 %v580
    %644 = vmatpush1.msra.mxu0 %v579
    %645 = vmatprep.subr.mxu0 %v582
    %646 = vmatpush1.msra.mxu0 %v581
    %647 = vmatprep.subr.mxu0 %v584
    %648 = vmatpush1.msra.mxu0 %v583
    %649 = vmatprep.subr.mxu0 %v586
    %650 = vmatpush1.msra.mxu0 %v585
    %651 = vmatprep.subr.mxu0 %v588
    %652 = vmatpush1.msra.mxu0 %v587
    %653 = vmatprep.subr.mxu0 %v590
    %654 = vmatpush1.msra.mxu0 %v589
    %655 = vmatprep.subr.mxu0 %v592
    %656 = vmatpush1.msra.mxu0 %v591
    %657 = vmatprep.subr.mxu0 %v594
    %658 = vmatpush1.msra.mxu0 %v593
    %659 = vmatprep.subr.mxu0 %v596
    %660 = vmatpush1.msra.mxu0 %v595
    %661 = vmatprep.subr.mxu0 %v598
    %662 = vmatpush1.msra.mxu0 %v597
    %663 = vmatprep.subr.mxu0 %v600
    %664 = vmatpush1.msra.mxu0 %v599
    %665 = vmatprep.subr.mxu0 %v602
    %666 = vmatpush1.msra.mxu0 %v601
    %667 = vmatprep.subr.mxu0 %v604
    %668 = vmatpush1.msra.mxu0 %v603
    %669 = vmatprep.subr.mxu0 %v606
    %670 = vmatpush1.msra.mxu0 %v605
    %671 = vmatprep.subr.mxu0 %v608
    %672 = vmatpush1.msra.mxu0 %v607
    %673 = vmatprep.subr.mxu0 %v610
    %674 = vmatpush1.msra.mxu0 %v609
    %675 = vmatprep.subr.mxu0 %v612
    %676 = vmatpush1.msra.mxu0 %v611
    %677 = vmatprep.subr.mxu0 %v614
    %678 = vmatpush1.msra.mxu0 %v613
    %679 = vmatprep.subr.mxu0 %v616
    %680 = vmatpush1.msra.mxu0 %v615
    %681 = vmatprep.subr.mxu0 %v618
    %682 = vmatpush1.msra.mxu0 %v617
    %683 = vmatprep.subr.mxu0 %v620
    %684 = vmatpush1.msra.mxu0 %v619
    %685 = vmatprep.subr.mxu0 %v622
    %686 = vmatpush1.msra.mxu0 %v621
    %687 = vmatprep.subr.mxu0 %v624
    %688 = vmatpush1.msra.mxu0 %v623
    %689 = vmatprep.subr.mxu0 %v626
    %690 = vmatpush1.msra.mxu0 %v625
    %691 = vmatprep.subr.mxu0 %v628
    %692 = vmatpush1.msra.mxu0 %v627
    %693 = vmatprep.subr.mxu0 %v630
    %694 = vmatpush1.msra.mxu0 %v629
    %695 = vmatprep.subr.mxu0 %v632
    %696 = vmatpush1.msra.mxu0 %v631
    %697 = vmatprep.subr.mxu0 %v634
    %698 = vmatpush1.msra.mxu0 %v633
    %699 = vmatprep.mubr.f32.mxu0 %v570
    %700 = vmatmul.mubr.f32.gmra.mrb[0].mxu0 %v569
    %v701 = vpop.f32.mrb[0].mxu0
    %v702 = vadd.f32 0.0, %v701
    %v703 = vpop.f32.mrb[0].mxu0
    %v704 = vadd.f32 0.0, %v703
    %705 = vdwg.mxu0
    %706 = vmatprep.subr.mxu0 %v341
    %707 = vmatpush1.msra.mxu0 %v340
    %708 = vmatprep.subr.mxu0 %v343
    %709 = vmatpush1.msra.mxu0 %v342
    %710 = vmatprep.subr.mxu0 %v345
    %711 = vmatpush1.msra.mxu0 %v344
    %712 = vmatprep.subr.mxu0 %v347
    %713 = vmatpush1.msra.mxu0 %v346
    %714 = vmatprep.subr.mxu0 %v349
    %715 = vmatpush1.msra.mxu0 %v348
    %716 = vmatprep.subr.mxu0 %v351
    %717 = vmatpush1.msra.mxu0 %v350
    %718 = vmatprep.subr.mxu0 %v353
    %719 = vmatpush1.msra.mxu0 %v352
    %720 = vmatprep.subr.mxu0 %v355
    %721 = vmatpush1.msra.mxu0 %v354
    %722 = vmatprep.subr.mxu0 %v357
    %723 = vmatpush1.msra.mxu0 %v356
    %724 = vmatprep.subr.mxu0 %v359
    %725 = vmatpush1.msra.mxu0 %v358
    %726 = vmatprep.subr.mxu0 %v361
    %727 = vmatpush1.msra.mxu0 %v360
    %728 = vmatprep.subr.mxu0 %v363
    %729 = vmatpush1.msra.mxu0 %v362
    %730 = vmatprep.subr.mxu0 %v365
    %731 = vmatpush1.msra.mxu0 %v364
    %732 = vmatprep.subr.mxu0 %v367
    %733 = vmatpush1.msra.mxu0 %v366
    %734 = vmatprep.subr.mxu0 %v369
    %735 = vmatpush1.msra.mxu0 %v368
    %736 = vmatprep.subr.mxu0 %v371
    %737 = vmatpush1.msra.mxu0 %v370
    %738 = vmatprep.subr.mxu0 %v373
    %739 = vmatpush1.msra.mxu0 %v372
    %740 = vmatprep.subr.mxu0 %v375
    %741 = vmatpush1.msra.mxu0 %v374
    %742 = vmatprep.subr.mxu0 %v377
    %743 = vmatpush1.msra.mxu0 %v376
    %744 = vmatprep.subr.mxu0 %v379
    %745 = vmatpush1.msra.mxu0 %v378
    %746 = vmatprep.subr.mxu0 %v381
    %747 = vmatpush1.msra.mxu0 %v380
    %748 = vmatprep.subr.mxu0 %v383
    %749 = vmatpush1.msra.mxu0 %v382
    %750 = vmatprep.subr.mxu0 %v385
    %751 = vmatpush1.msra.mxu0 %v384
    %752 = vmatprep.subr.mxu0 %v387
    %753 = vmatpush1.msra.mxu0 %v386
    %754 = vmatprep.subr.mxu0 %v389
    %755 = vmatpush1.msra.mxu0 %v388
    %756 = vmatprep.subr.mxu0 %v391
    %757 = vmatpush1.msra.mxu0 %v390
    %758 = vmatprep.subr.mxu0 %v393
    %759 = vmatpush1.msra.mxu0 %v392
    %760 = vmatprep.subr.mxu0 %v395
    %761 = vmatpush1.msra.mxu0 %v394
    %762 = vmatprep.subr.mxu0 %v397
    %763 = vmatpush1.msra.mxu0 %v396
    %764 = vmatprep.subr.mxu0 %v399
    %765 = vmatpush1.msra.mxu0 %v398
    %766 = vmatprep.subr.mxu0 %v401
    %767 = vmatpush1.msra.mxu0 %v400
    %768 = vmatprep.subr.mxu0 %v403
    %769 = vmatpush1.msra.mxu0 %v402
    %770 = vmatprep.mubr.f32.mxu0 %v339
    %771 = vmatmul.mubr.f32.gmra.mrb[0].mxu0 %v338
    %v772 = vpop.f32.mrb[0].mxu0
    %v773 = vadd.f32 %v702, %v772
    %v774 = vpop.f32.mrb[0].mxu0
    %v775 = vadd.f32 %v704, %v774
    %776 = vdwg.mxu0
    %v777 = vld [vmem:[%s0 + $0x10] sm:$0xff]
    %v779 = vcombine.high %v777, %v777
    %v781 = vunpack.c.l.s4 1983009808
    %v782 = vunpack.c.0.s8 %v781
    %v783 = vlaneseq
    %v784 = vshrl.u32 %v783, 7
    %v785 = vsub.s32 %v782, %v784
    %v786 = vrot.slane %v777, %v785
    %v788 = vunpack.c.l.s4 1983009808
    %v789 = vunpack.c.0.s8 %v788
    %v790 = vlaneseq
    %v791 = vshrl.u32 %v790, 7
    %v792 = vsub.s32 %v789, %v791
    %v793 = vrot.slane %v779, %v792
    %v794 = vcombine.high %v786, %v786
    %v795 = vcombine.high %v793, %v793
    %800 = vmatprep.subr.mxu0 %v35
    %801 = vmatpush1.msra.mxu0 %v34
    %802 = vmatprep.subr.mxu0 %v37
    %803 = vmatpush1.msra.mxu0 %v36
    %804 = vmatprep.subr.mxu0 %v39
    %805 = vmatpush1.msra.mxu0 %v38
    %806 = vmatprep.subr.mxu0 %v41
    %807 = vmatpush1.msra.mxu0 %v40
    %808 = vmatprep.subr.mxu0 %v43
    %809 = vmatpush1.msra.mxu0 %v42
    %810 = vmatprep.subr.mxu0 %v45
    %811 = vmatpush1.msra.mxu0 %v44
    %812 = vmatprep.subr.mxu0 %v47
    %813 = vmatpush1.msra.mxu0 %v46
    %814 = vmatprep.subr.mxu0 %v49
    %815 = vmatpush1.msra.mxu0 %v48
    %816 = vmatprep.subr.mxu0 %v51
    %817 = vmatpush1.msra.mxu0 %v50
    %818 = vmatprep.subr.mxu0 %v53
    %819 = vmatpush1.msra.mxu0 %v52
    %820 = vmatprep.subr.mxu0 %v55
    %821 = vmatpush1.msra.mxu0 %v54
    %822 = vmatprep.subr.mxu0 %v57
    %823 = vmatpush1.msra.mxu0 %v56
    %824 = vmatprep.subr.mxu0 %v59
    %825 = vmatpush1.msra.mxu0 %v58
    %826 = vmatprep.subr.mxu0 %v61
    %827 = vmatpush1.msra.mxu0 %v60
    %828 = vmatprep.subr.mxu0 %v63
    %829 = vmatpush1.msra.mxu0 %v62
    %830 = vmatprep.subr.mxu0 %v65
    %831 = vmatpush1.msra.mxu0 %v64
    %832 = vmatprep.subr.mxu0 %v67
    %833 = vmatpush1.msra.mxu0 %v66
    %834 = vmatprep.subr.mxu0 %v69
    %835 = vmatpush1.msra.mxu0 %v68
    %836 = vmatprep.subr.mxu0 %v71
    %837 = vmatpush1.msra.mxu0 %v70
    %838 = vmatprep.subr.mxu0 %v73
    %839 = vmatpush1.msra.mxu0 %v72
    %840 = vmatprep.subr.mxu0 %v75
    %841 = vmatpush1.msra.mxu0 %v74
    %842 = vmatprep.subr.mxu0 %v77
    %843 = vmatpush1.msra.mxu0 %v76
    %844 = vmatprep.subr.mxu0 %v79
    %845 = vmatpush1.msra.mxu0 %v78
    %846 = vmatprep.subr.mxu0 %v81
    %847 = vmatpush1.msra.mxu0 %v80
    %848 = vmatprep.subr.mxu0 %v83
    %849 = vmatpush1.msra.mxu0 %v82
    %850 = vmatprep.subr.mxu0 %v85
    %851 = vmatpush1.msra.mxu0 %v84
    %852 = vmatprep.subr.mxu0 %v87
    %853 = vmatpush1.msra.mxu0 %v86
    %854 = vmatprep.subr.mxu0 %v89
    %855 = vmatpush1.msra.mxu0 %v88
    %856 = vmatprep.subr.mxu0 %v91
    %857 = vmatpush1.msra.mxu0 %v90
    %858 = vmatprep.subr.mxu0 %v93
    %859 = vmatpush1.msra.mxu0 %v92
    %860 = vmatprep.subr.mxu0 %v95
    %861 = vmatpush1.msra.mxu0 %v94
    %862 = vmatprep.subr.mxu0 %v97
    %863 = vmatpush1.msra.mxu0 %v96
    %864 = vmatprep.mubr.f32.mxu0 %v794
    %865 = vmatmul.mubr.f32.gmra.mrb[0].mxu0 %v786
    %v866 = vpop.f32.mrb[0].mxu0
    %v867 = vadd.f32 %v167, %v866
    %v868 = vpop.f32.mrb[0].mxu0
    %v869 = vadd.f32 %v171, %v868
    %870 = vdwg.mxu0
    %871 = vmatprep.subr.mxu0 %v99
    %872 = vmatpush1.msra.mxu0 %v98
    %873 = vmatprep.subr.mxu0 %v101
    %874 = vmatpush1.msra.mxu0 %v100
    %875 = vmatprep.subr.mxu0 %v103
    %876 = vmatpush1.msra.mxu0 %v102
    %877 = vmatprep.subr.mxu0 %v105
    %878 = vmatpush1.msra.mxu0 %v104
    %879 = vmatprep.subr.mxu0 %v107
    %880 = vmatpush1.msra.mxu0 %v106
    %881 = vmatprep.subr.mxu0 %v109
    %882 = vmatpush1.msra.mxu0 %v108
    %883 = vmatprep.subr.mxu0 %v111
    %884 = vmatpush1.msra.mxu0 %v110
    %885 = vmatprep.subr.mxu0 %v113
    %886 = vmatpush1.msra.mxu0 %v112
    %887 = vmatprep.subr.mxu0 %v115
    %888 = vmatpush1.msra.mxu0 %v114
    %889 = vmatprep.subr.mxu0 %v117
    %890 = vmatpush1.msra.mxu0 %v116
    %891 = vmatprep.subr.mxu0 %v119
    %892 = vmatpush1.msra.mxu0 %v118
    %893 = vmatprep.subr.mxu0 %v121
    %894 = vmatpush1.msra.mxu0 %v120
    %895 = vmatprep.subr.mxu0 %v123
    %896 = vmatpush1.msra.mxu0 %v122
    %897 = vmatprep.subr.mxu0 %v125
    %898 = vmatpush1.msra.mxu0 %v124
    %899 = vmatprep.subr.mxu0 %v127
    %900 = vmatpush1.msra.mxu0 %v126
    %901 = vmatprep.subr.mxu0 %v129
    %902 = vmatpush1.msra.mxu0 %v128
    %903 = vmatprep.subr.mxu0 %v131
    %904 = vmatpush1.msra.mxu0 %v130
    %905 = vmatprep.subr.mxu0 %v133
    %906 = vmatpush1.msra.mxu0 %v132
    %907 = vmatprep.subr.mxu0 %v135
    %908 = vmatpush1.msra.mxu0 %v134
    %909 = vmatprep.subr.mxu0 %v137
    %910 = vmatpush1.msra.mxu0 %v136
    %911 = vmatprep.subr.mxu0 %v139
    %912 = vmatpush1.msra.mxu0 %v138
    %913 = vmatprep.subr.mxu0 %v141
    %914 = vmatpush1.msra.mxu0 %v140
    %915 = vmatprep.subr.mxu0 %v143
    %916 = vmatpush1.msra.mxu0 %v142
    %917 = vmatprep.subr.mxu0 %v145
    %918 = vmatpush1.msra.mxu0 %v144
    %919 = vmatprep.subr.mxu0 %v147
    %920 = vmatpush1.msra.mxu0 %v146
    %921 = vmatprep.subr.mxu0 %v149
    %922 = vmatpush1.msra.mxu0 %v148
    %923 = vmatprep.subr.mxu0 %v151
    %924 = vmatpush1.msra.mxu0 %v150
    %925 = vmatprep.subr.mxu0 %v153
    %926 = vmatpush1.msra.mxu0 %v152
    %927 = vmatprep.subr.mxu0 %v155
    %928 = vmatpush1.msra.mxu0 %v154
    %929 = vmatprep.subr.mxu0 %v157
    %930 = vmatpush1.msra.mxu0 %v156
    %931 = vmatprep.subr.mxu0 %v159
    %932 = vmatpush1.msra.mxu0 %v158
    %933 = vmatprep.subr.mxu0 %v161
    %934 = vmatpush1.msra.mxu0 %v160
    %935 = vmatprep.mubr.f32.mxu0 %v795
    %936 = vmatmul.mubr.f32.gmra.mrb[0].mxu0 %v793
    %v937 = vpop.f32.mrb[0].mxu0
    %v938 = vadd.f32 %v867, %v937
    %v939 = vpop.f32.mrb[0].mxu0
    %v940 = vadd.f32 %v869, %v939
    %941 = vdwg.mxu0
    %v942 = vmax.f32 %v938, 0.0
    %v943 = vmax.f32 %v940, 0.0
    %v944 = vld [vmem:[%s3 + $0x400] sm:$0xff]
    %v945 = vld [vmem:[%s3 + $0x408] sm:$0xff]
    %v946 = vld [vmem:[%s3 + $0x410] sm:$0xff]
    %v947 = vld [vmem:[%s3 + $0x418] sm:$0xff]
    %v948 = vld [vmem:[%s3 + $0x420] sm:$0xff]
    %v949 = vld [vmem:[%s3 + $0x428] sm:$0xff]
    %v950 = vld [vmem:[%s3 + $0x430] sm:$0xff]
    %v951 = vld [vmem:[%s3 + $0x438] sm:$0xff]
    %v952 = vld [vmem:[%s3 + $0x440] sm:$0xff]
    %v953 = vld [vmem:[%s3 + $0x448] sm:$0xff]
    %v954 = vld [vmem:[%s3 + $0x450] sm:$0xff]
    %v955 = vld [vmem:[%s3 + $0x458] sm:$0xff]
    %v956 = vld [vmem:[%s3 + $0x460] sm:$0xff]
    %v957 = vld [vmem:[%s3 + $0x468] sm:$0xff]
    %v958 = vld [vmem:[%s3 + $0x470] sm:$0xff]
    %v959 = vld [vmem:[%s3 + $0x478] sm:$0xff]
    %v960 = vld [vmem:[%s3 + $0x480] sm:$0xff]
    %v961 = vld [vmem:[%s3 + $0x488] sm:$0xff]
    %v962 = vld [vmem:[%s3 + $0x490] sm:$0xff]
    %v963 = vld [vmem:[%s3 + $0x498] sm:$0xff]
    %v964 = vld [vmem:[%s3 + $0x4a0] sm:$0xff]
    %v965 = vld [vmem:[%s3 + $0x4a8] sm:$0xff]
    %v966 = vld [vmem:[%s3 + $0x4b0] sm:$0xff]
    %v967 = vld [vmem:[%s3 + $0x4b8] sm:$0xff]
    %v968 = vld [vmem:[%s3 + $0x4c0] sm:$0xff]
    %v969 = vld [vmem:[%s3 + $0x4c8] sm:$0xff]
    %v970 = vld [vmem:[%s3 + $0x4d0] sm:$0xff]
    %v971 = vld [vmem:[%s3 + $0x4d8] sm:$0xff]
    %v972 = vld [vmem:[%s3 + $0x4e0] sm:$0xff]
    %v973 = vld [vmem:[%s3 + $0x4e8] sm:$0xff]
    %v974 = vld [vmem:[%s3 + $0x4f0] sm:$0xff]
    %v975 = vld [vmem:[%s3 + $0x4f8] sm:$0xff]
    %v976 = vld [vmem:[%s3 + $0x500] sm:$0xff]
    %v977 = vld [vmem:[%s3 + $0x508] sm:$0xff]
    %v978 = vld [vmem:[%s3 + $0x510] sm:$0xff]
    %v979 = vld [vmem:[%s3 + $0x518] sm:$0xff]
    %v980 = vld [vmem:[%s3 + $0x520] sm:$0xff]
    %v981 = vld [vmem:[%s3 + $0x528] sm:$0xff]
    %v982 = vld [vmem:[%s3 + $0x530] sm:$0xff]
    %v983 = vld [vmem:[%s3 + $0x538] sm:$0xff]
    %v984 = vld [vmem:[%s3 + $0x540] sm:$0xff]
    %v985 = vld [vmem:[%s3 + $0x548] sm:$0xff]
    %v986 = vld [vmem:[%s3 + $0x550] sm:$0xff]
    %v987 = vld [vmem:[%s3 + $0x558] sm:$0xff]
    %v988 = vld [vmem:[%s3 + $0x560] sm:$0xff]
    %v989 = vld [vmem:[%s3 + $0x568] sm:$0xff]
    %v990 = vld [vmem:[%s3 + $0x570] sm:$0xff]
    %v991 = vld [vmem:[%s3 + $0x578] sm:$0xff]
    %v992 = vld [vmem:[%s3 + $0x580] sm:$0xff]
    %v993 = vld [vmem:[%s3 + $0x588] sm:$0xff]
    %v994 = vld [vmem:[%s3 + $0x590] sm:$0xff]
    %v995 = vld [vmem:[%s3 + $0x598] sm:$0xff]
    %v996 = vld [vmem:[%s3 + $0x5a0] sm:$0xff]
    %v997 = vld [vmem:[%s3 + $0x5a8] sm:$0xff]
    %v998 = vld [vmem:[%s3 + $0x5b0] sm:$0xff]
    %v999 = vld [vmem:[%s3 + $0x5b8] sm:$0xff]
    %v1000 = vld [vmem:[%s3 + $0x5c0] sm:$0xff]
    %v1001 = vld [vmem:[%s3 + $0x5c8] sm:$0xff]
    %v1002 = vld [vmem:[%s3 + $0x5d0] sm:$0xff]
    %v1003 = vld [vmem:[%s3 + $0x5d8] sm:$0xff]
    %v1004 = vld [vmem:[%s3 + $0x5e0] sm:$0xff]
    %v1005 = vld [vmem:[%s3 + $0x5e8] sm:$0xff]
    %v1006 = vld [vmem:[%s3 + $0x5f0] sm:$0xff]
    %v1007 = vld [vmem:[%s3 + $0x5f8] sm:$0xff]
    %1008 = vmatprep.subr.mxu0 %v945
    %1009 = vmatpush1.msra.mxu0 %v944
    %1010 = vmatprep.subr.mxu0 %v947
    %1011 = vmatpush1.msra.mxu0 %v946
    %1012 = vmatprep.subr.mxu0 %v949
    %1013 = vmatpush1.msra.mxu0 %v948
    %1014 = vmatprep.subr.mxu0 %v951
    %1015 = vmatpush1.msra.mxu0 %v950
    %1016 = vmatprep.subr.mxu0 %v953
    %1017 = vmatpush1.msra.mxu0 %v952
    %1018 = vmatprep.subr.mxu0 %v955
    %1019 = vmatpush1.msra.mxu0 %v954
    %1020 = vmatprep.subr.mxu0 %v957
    %1021 = vmatpush1.msra.mxu0 %v956
    %1022 = vmatprep.subr.mxu0 %v959
    %1023 = vmatpush1.msra.mxu0 %v958
    %1024 = vmatprep.subr.mxu0 %v961
    %1025 = vmatpush1.msra.mxu0 %v960
    %1026 = vmatprep.subr.mxu0 %v963
    %1027 = vmatpush1.msra.mxu0 %v962
    %1028 = vmatprep.subr.mxu0 %v965
    %1029 = vmatpush1.msra.mxu0 %v964
    %1030 = vmatprep.subr.mxu0 %v967
    %1031 = vmatpush1.msra.mxu0 %v966
    %1032 = vmatprep.subr.mxu0 %v969
    %1033 = vmatpush1.msra.mxu0 %v968
    %1034 = vmatprep.subr.mxu0 %v971
    %1035 = vmatpush1.msra.mxu0 %v970
    %1036 = vmatprep.subr.mxu0 %v973
    %1037 = vmatpush1.msra.mxu0 %v972
    %1038 = vmatprep.subr.mxu0 %v975
    %1039 = vmatpush1.msra.mxu0 %v974
    %1040 = vmatprep.subr.mxu0 %v977
    %1041 = vmatpush1.msra.mxu0 %v976
    %1042 = vmatprep.subr.mxu0 %v979
    %1043 = vmatpush1.msra.mxu0 %v978
    %1044 = vmatprep.subr.mxu0 %v981
    %1045 = vmatpush1.msra.mxu0 %v980
    %1046 = vmatprep.subr.mxu0 %v983
    %1047 = vmatpush1.msra.mxu0 %v982
    %1048 = vmatprep.subr.mxu0 %v985
    %1049 = vmatpush1.msra.mxu0 %v984
    %1050 = vmatprep.subr.mxu0 %v987
    %1051 = vmatpush1.msra.mxu0 %v986
    %1052 = vmatprep.subr.mxu0 %v989
    %1053 = vmatpush1.msra.mxu0 %v988
    %1054 = vmatprep.subr.mxu0 %v991
    %1055 = vmatpush1.msra.mxu0 %v990
    %1056 = vmatprep.subr.mxu0 %v993
    %1057 = vmatpush1.msra.mxu0 %v992
    %1058 = vmatprep.subr.mxu0 %v995
    %1059 = vmatpush1.msra.mxu0 %v994
    %1060 = vmatprep.subr.mxu0 %v997
    %1061 = vmatpush1.msra.mxu0 %v996
    %1062 = vmatprep.subr.mxu0 %v999
    %1063 = vmatpush1.msra.mxu0 %v998
    %1064 = vmatprep.subr.mxu0 %v1001
    %1065 = vmatpush1.msra.mxu0 %v1000
    %1066 = vmatprep.subr.mxu0 %v1003
    %1067 = vmatpush1.msra.mxu0 %v1002
    %1068 = vmatprep.subr.mxu0 %v1005
    %1069 = vmatpush1.msra.mxu0 %v1004
    %1070 = vmatprep.subr.mxu0 %v1007
    %1071 = vmatpush1.msra.mxu0 %v1006
    %1072 = vmatprep.mubr.f32.mxu0 %v943
    %1073 = vmatmul.mubr.f32.gmra.mrb[0].mxu0 %v942
    %v1074 = vpop.f32.mrb[0].mxu0
    %v1075 = vadd.f32 0.0, %v1074
    %v1076 = vpop.f32.mrb[0].mxu0
    %v1077 = vadd.f32 0.0, %v1076
    %1078 = vdwg.mxu0
    %v1079 = vadd.f32 %v773, %v1075
    %v1080 = vadd.f32 %v775, %v1077
    %v1081 = vld [vmem:[%s0 + $0x18] sm:$0xff]
    %v1083 = vcombine.high %v1081, %v1081
    %v1085 = vunpack.c.l.s4 1983009808
    %v1086 = vunpack.c.0.s8 %v1085
    %v1087 = vlaneseq
    %v1088 = vshrl.u32 %v1087, 7
    %v1089 = vsub.s32 %v1086, %v1088
    %v1090 = vrot.slane %v1081, %v1089
    %v1092 = vunpack.c.l.s4 1983009808
    %v1093 = vunpack.c.0.s8 %v1092
    %v1094 = vlaneseq
    %v1095 = vshrl.u32 %v1094, 7
    %v1096 = vsub.s32 %v1093, %v1095
    %v1097 = vrot.slane %v1083, %v1096
    %v1098 = vcombine.high %v1090, %v1090
    %v1099 = vcombine.high %v1097, %v1097
    %1104 = vmatprep.subr.mxu0 %v35
    %1105 = vmatpush1.msra.mxu0 %v34
    %1106 = vmatprep.subr.mxu0 %v37
    %1107 = vmatpush1.msra.mxu0 %v36
    %1108 = vmatprep.subr.mxu0 %v39
    %1109 = vmatpush1.msra.mxu0 %v38
    %1110 = vmatprep.subr.mxu0 %v41
    %1111 = vmatpush1.msra.mxu0 %v40
    %1112 = vmatprep.subr.mxu0 %v43
    %1113 = vmatpush1.msra.mxu0 %v42
    %1114 = vmatprep.subr.mxu0 %v45
    %1115 = vmatpush1.msra.mxu0 %v44
    %1116 = vmatprep.subr.mxu0 %v47
    %1117 = vmatpush1.msra.mxu0 %v46
    %1118 = vmatprep.subr.mxu0 %v49
    %1119 = vmatpush1.msra.mxu0 %v48
    %1120 = vmatprep.subr.mxu0 %v51
    %1121 = vmatpush1.msra.mxu0 %v50
    %1122 = vmatprep.subr.mxu0 %v53
    %1123 = vmatpush1.msra.mxu0 %v52
    %1124 = vmatprep.subr.mxu0 %v55
    %1125 = vmatpush1.msra.mxu0 %v54
    %1126 = vmatprep.subr.mxu0 %v57
    %1127 = vmatpush1.msra.mxu0 %v56
    %1128 = vmatprep.subr.mxu0 %v59
    %1129 = vmatpush1.msra.mxu0 %v58
    %1130 = vmatprep.subr.mxu0 %v61
    %1131 = vmatpush1.msra.mxu0 %v60
    %1132 = vmatprep.subr.mxu0 %v63
    %1133 = vmatpush1.msra.mxu0 %v62
    %1134 = vmatprep.subr.mxu0 %v65
    %1135 = vmatpush1.msra.mxu0 %v64
    %1136 = vmatprep.subr.mxu0 %v67
    %1137 = vmatpush1.msra.mxu0 %v66
    %1138 = vmatprep.subr.mxu0 %v69
    %1139 = vmatpush1.msra.mxu0 %v68
    %1140 = vmatprep.subr.mxu0 %v71
    %1141 = vmatpush1.msra.mxu0 %v70
    %1142 = vmatprep.subr.mxu0 %v73
    %1143 = vmatpush1.msra.mxu0 %v72
    %1144 = vmatprep.subr.mxu0 %v75
    %1145 = vmatpush1.msra.mxu0 %v74
    %1146 = vmatprep.subr.mxu0 %v77
    %1147 = vmatpush1.msra.mxu0 %v76
    %1148 = vmatprep.subr.mxu0 %v79
    %1149 = vmatpush1.msra.mxu0 %v78
    %1150 = vmatprep.subr.mxu0 %v81
    %1151 = vmatpush1.msra.mxu0 %v80
    %1152 = vmatprep.subr.mxu0 %v83
    %1153 = vmatpush1.msra.mxu0 %v82
    %1154 = vmatprep.subr.mxu0 %v85
    %1155 = vmatpush1.msra.mxu0 %v84
    %1156 = vmatprep.subr.mxu0 %v87
    %1157 = vmatpush1.msra.mxu0 %v86
    %1158 = vmatprep.subr.mxu0 %v89
    %1159 = vmatpush1.msra.mxu0 %v88
    %1160 = vmatprep.subr.mxu0 %v91
    %1161 = vmatpush1.msra.mxu0 %v90
    %1162 = vmatprep.subr.mxu0 %v93
    %1163 = vmatpush1.msra.mxu0 %v92
    %1164 = vmatprep.subr.mxu0 %v95
    %1165 = vmatpush1.msra.mxu0 %v94
    %1166 = vmatprep.subr.mxu0 %v97
    %1167 = vmatpush1.msra.mxu0 %v96
    %1168 = vmatprep.mubr.f32.mxu0 %v1098
    %1169 = vmatmul.mubr.f32.gmra.mrb[0].mxu0 %v1090
    %v1170 = vpop.f32.mrb[0].mxu0
    %v1171 = vadd.f32 %v167, %v1170
    %v1172 = vpop.f32.mrb[0].mxu0
    %v1173 = vadd.f32 %v171, %v1172
    %1174 = vdwg.mxu0
    %1175 = vmatprep.subr.mxu0 %v99
    %1176 = vmatpush1.msra.mxu0 %v98
    %1177 = vmatprep.subr.mxu0 %v101
    %1178 = vmatpush1.msra.mxu0 %v100
    %1179 = vmatprep.subr.mxu0 %v103
    %1180 = vmatpush1.msra.mxu0 %v102
    %1181 = vmatprep.subr.mxu0 %v105
    %1182 = vmatpush1.msra.mxu0 %v104
    %1183 = vmatprep.subr.mxu0 %v107
    %1184 = vmatpush1.msra.mxu0 %v106
    %1185 = vmatprep.subr.mxu0 %v109
    %1186 = vmatpush1.msra.mxu0 %v108
    %1187 = vmatprep.subr.mxu0 %v111
    %1188 = vmatpush1.msra.mxu0 %v110
    %1189 = vmatprep.subr.mxu0 %v113
    %1190 = vmatpush1.msra.mxu0 %v112
    %1191 = vmatprep.subr.mxu0 %v115
    %1192 = vmatpush1.msra.mxu0 %v114
    %1193 = vmatprep.subr.mxu0 %v117
    %1194 = vmatpush1.msra.mxu0 %v116
    %1195 = vmatprep.subr.mxu0 %v119
    %1196 = vmatpush1.msra.mxu0 %v118
    %1197 = vmatprep.subr.mxu0 %v121
    %1198 = vmatpush1.msra.mxu0 %v120
    %1199 = vmatprep.subr.mxu0 %v123
    %1200 = vmatpush1.msra.mxu0 %v122
    %1201 = vmatprep.subr.mxu0 %v125
    %1202 = vmatpush1.msra.mxu0 %v124
    %1203 = vmatprep.subr.mxu0 %v127
    %1204 = vmatpush1.msra.mxu0 %v126
    %1205 = vmatprep.subr.mxu0 %v129
    %1206 = vmatpush1.msra.mxu0 %v128
    %1207 = vmatprep.subr.mxu0 %v131
    %1208 = vmatpush1.msra.mxu0 %v130
    %1209 = vmatprep.subr.mxu0 %v133
    %1210 = vmatpush1.msra.mxu0 %v132
    %1211 = vmatprep.subr.mxu0 %v135
    %1212 = vmatpush1.msra.mxu0 %v134
    %1213 = vmatprep.subr.mxu0 %v137
    %1214 = vmatpush1.msra.mxu0 %v136
    %1215 = vmatprep.subr.mxu0 %v139
    %1216 = vmatpush1.msra.mxu0 %v138
    %1217 = vmatprep.subr.mxu0 %v141
    %1218 = vmatpush1.msra.mxu0 %v140
    %1219 = vmatprep.subr.mxu0 %v143
    %1220 = vmatpush1.msra.mxu0 %v142
    %1221 = vmatprep.subr.mxu0 %v145
    %1222 = vmatpush1.msra.mxu0 %v144
    %1223 = vmatprep.subr.mxu0 %v147
    %1224 = vmatpush1.msra.mxu0 %v146
    %1225 = vmatprep.subr.mxu0 %v149
    %1226 = vmatpush1.msra.mxu0 %v148
    %1227 = vmatprep.subr.mxu0 %v151
    %1228 = vmatpush1.msra.mxu0 %v150
    %1229 = vmatprep.subr.mxu0 %v153
    %1230 = vmatpush1.msra.mxu0 %v152
    %1231 = vmatprep.subr.mxu0 %v155
    %1232 = vmatpush1.msra.mxu0 %v154
    %1233 = vmatprep.subr.mxu0 %v157
    %1234 = vmatpush1.msra.mxu0 %v156
    %1235 = vmatprep.subr.mxu0 %v159
    %1236 = vmatpush1.msra.mxu0 %v158
    %1237 = vmatprep.subr.mxu0 %v161
    %1238 = vmatpush1.msra.mxu0 %v160
    %1239 = vmatprep.mubr.f32.mxu0 %v1099
    %1240 = vmatmul.mubr.f32.gmra.mrb[0].mxu0 %v1097
    %v1241 = vpop.f32.mrb[0].mxu0
    %v1242 = vadd.f32 %v1171, %v1241
    %v1243 = vpop.f32.mrb[0].mxu0
    %v1244 = vadd.f32 %v1173, %v1243
    %1245 = vdwg.mxu0
    %v1246 = vmax.f32 %v1242, 0.0
    %v1247 = vmax.f32 %v1244, 0.0
    %v1248 = vld [vmem:[%s3 + $0x600] sm:$0xff]
    %v1249 = vld [vmem:[%s3 + $0x608] sm:$0xff]
    %v1250 = vld [vmem:[%s3 + $0x610] sm:$0xff]
    %v1251 = vld [vmem:[%s3 + $0x618] sm:$0xff]
    %v1252 = vld [vmem:[%s3 + $0x620] sm:$0xff]
    %v1253 = vld [vmem:[%s3 + $0x628] sm:$0xff]
    %v1254 = vld [vmem:[%s3 + $0x630] sm:$0xff]
    %v1255 = vld [vmem:[%s3 + $0x638] sm:$0xff]
    %v1256 = vld [vmem:[%s3 + $0x640] sm:$0xff]
    %v1257 = vld [vmem:[%s3 + $0x648] sm:$0xff]
    %v1258 = vld [vmem:[%s3 + $0x650] sm:$0xff]
    %v1259 = vld [vmem:[%s3 + $0x658] sm:$0xff]
    %v1260 = vld [vmem:[%s3 + $0x660] sm:$0xff]
    %v1261 = vld [vmem:[%s3 + $0x668] sm:$0xff]
    %v1262 = vld [vmem:[%s3 + $0x670] sm:$0xff]
    %v1263 = vld [vmem:[%s3 + $0x678] sm:$0xff]
    %v1264 = vld [vmem:[%s3 + $0x680] sm:$0xff]
    %v1265 = vld [vmem:[%s3 + $0x688] sm:$0xff]
    %v1266 = vld [vmem:[%s3 + $0x690] sm:$0xff]
    %v1267 = vld [vmem:[%s3 + $0x698] sm:$0xff]
    %v1268 = vld [vmem:[%s3 + $0x6a0] sm:$0xff]
    %v1269 = vld [vmem:[%s3 + $0x6a8] sm:$0xff]
    %v1270 = vld [vmem:[%s3 + $0x6b0] sm:$0xff]
    %v1271 = vld [vmem:[%s3 + $0x6b8] sm:$0xff]
    %v1272 = vld [vmem:[%s3 + $0x6c0] sm:$0xff]
    %v1273 = vld [vmem:[%s3 + $0x6c8] sm:$0xff]
    %v1274 = vld [vmem:[%s3 + $0x6d0] sm:$0xff]
    %v1275 = vld [vmem:[%s3 + $0x6d8] sm:$0xff]
    %v1276 = vld [vmem:[%s3 + $0x6e0] sm:$0xff]
    %v1277 = vld [vmem:[%s3 + $0x6e8] sm:$0xff]
    %v1278 = vld [vmem:[%s3 + $0x6f0] sm:$0xff]
    %v1279 = vld [vmem:[%s3 + $0x6f8] sm:$0xff]
    %v1280 = vld [vmem:[%s3 + $0x700] sm:$0xff]
    %v1281 = vld [vmem:[%s3 + $0x708] sm:$0xff]
    %v1282 = vld [vmem:[%s3 + $0x710] sm:$0xff]
    %v1283 = vld [vmem:[%s3 + $0x718] sm:$0xff]
    %v1284 = vld [vmem:[%s3 + $0x720] sm:$0xff]
    %v1285 = vld [vmem:[%s3 + $0x728] sm:$0xff]
    %v1286 = vld [vmem:[%s3 + $0x730] sm:$0xff]
    %v1287 = vld [vmem:[%s3 + $0x738] sm:$0xff]
    %v1288 = vld [vmem:[%s3 + $0x740] sm:$0xff]
    %v1289 = vld [vmem:[%s3 + $0x748] sm:$0xff]
    %v1290 = vld [vmem:[%s3 + $0x750] sm:$0xff]
    %v1291 = vld [vmem:[%s3 + $0x758] sm:$0xff]
    %v1292 = vld [vmem:[%s3 + $0x760] sm:$0xff]
    %v1293 = vld [vmem:[%s3 + $0x768] sm:$0xff]
    %v1294 = vld [vmem:[%s3 + $0x770] sm:$0xff]
    %v1295 = vld [vmem:[%s3 + $0x778] sm:$0xff]
    %v1296 = vld [vmem:[%s3 + $0x780] sm:$0xff]
    %v1297 = vld [vmem:[%s3 + $0x788] sm:$0xff]
    %v1298 = vld [vmem:[%s3 + $0x790] sm:$0xff]
    %v1299 = vld [vmem:[%s3 + $0x798] sm:$0xff]
    %v1300 = vld [vmem:[%s3 + $0x7a0] sm:$0xff]
    %v1301 = vld [vmem:[%s3 + $0x7a8] sm:$0xff]
    %v1302 = vld [vmem:[%s3 + $0x7b0] sm:$0xff]
    %v1303 = vld [vmem:[%s3 + $0x7b8] sm:$0xff]
    %v1304 = vld [vmem:[%s3 + $0x7c0] sm:$0xff]
    %v1305 = vld [vmem:[%s3 + $0x7c8] sm:$0xff]
    %v1306 = vld [vmem:[%s3 + $0x7d0] sm:$0xff]
    %v1307 = vld [vmem:[%s3 + $0x7d8] sm:$0xff]
    %v1308 = vld [vmem:[%s3 + $0x7e0] sm:$0xff]
    %v1309 = vld [vmem:[%s3 + $0x7e8] sm:$0xff]
    %v1310 = vld [vmem:[%s3 + $0x7f0] sm:$0xff]
    %v1311 = vld [vmem:[%s3 + $0x7f8] sm:$0xff]
    %1312 = vmatprep.subr.mxu0 %v1249
    %1313 = vmatpush1.msra.mxu0 %v1248
    %1314 = vmatprep.subr.mxu0 %v1251
    %1315 = vmatpush1.msra.mxu0 %v1250
    %1316 = vmatprep.subr.mxu0 %v1253
    %1317 = vmatpush1.msra.mxu0 %v1252
    %1318 = vmatprep.subr.mxu0 %v1255
    %1319 = vmatpush1.msra.mxu0 %v1254
    %1320 = vmatprep.subr.mxu0 %v1257
    %1321 = vmatpush1.msra.mxu0 %v1256
    %1322 = vmatprep.subr.mxu0 %v1259
    %1323 = vmatpush1.msra.mxu0 %v1258
    %1324 = vmatprep.subr.mxu0 %v1261
    %1325 = vmatpush1.msra.mxu0 %v1260
    %1326 = vmatprep.subr.mxu0 %v1263
    %1327 = vmatpush1.msra.mxu0 %v1262
    %1328 = vmatprep.subr.mxu0 %v1265
    %1329 = vmatpush1.msra.mxu0 %v1264
    %1330 = vmatprep.subr.mxu0 %v1267
    %1331 = vmatpush1.msra.mxu0 %v1266
    %1332 = vmatprep.subr.mxu0 %v1269
    %1333 = vmatpush1.msra.mxu0 %v1268
    %1334 = vmatprep.subr.mxu0 %v1271
    %1335 = vmatpush1.msra.mxu0 %v1270
    %1336 = vmatprep.subr.mxu0 %v1273
    %1337 = vmatpush1.msra.mxu0 %v1272
    %1338 = vmatprep.subr.mxu0 %v1275
    %1339 = vmatpush1.msra.mxu0 %v1274
    %1340 = vmatprep.subr.mxu0 %v1277
    %1341 = vmatpush1.msra.mxu0 %v1276
    %1342 = vmatprep.subr.mxu0 %v1279
    %1343 = vmatpush1.msra.mxu0 %v1278
    %1344 = vmatprep.subr.mxu0 %v1281
    %1345 = vmatpush1.msra.mxu0 %v1280
    %1346 = vmatprep.subr.mxu0 %v1283
    %1347 = vmatpush1.msra.mxu0 %v1282
    %1348 = vmatprep.subr.mxu0 %v1285
    %1349 = vmatpush1.msra.mxu0 %v1284
    %1350 = vmatprep.subr.mxu0 %v1287
    %1351 = vmatpush1.msra.mxu0 %v1286
    %1352 = vmatprep.subr.mxu0 %v1289
    %1353 = vmatpush1.msra.mxu0 %v1288
    %1354 = vmatprep.subr.mxu0 %v1291
    %1355 = vmatpush1.msra.mxu0 %v1290
    %1356 = vmatprep.subr.mxu0 %v1293
    %1357 = vmatpush1.msra.mxu0 %v1292
    %1358 = vmatprep.subr.mxu0 %v1295
    %1359 = vmatpush1.msra.mxu0 %v1294
    %1360 = vmatprep.subr.mxu0 %v1297
    %1361 = vmatpush1.msra.mxu0 %v1296
    %1362 = vmatprep.subr.mxu0 %v1299
    %1363 = vmatpush1.msra.mxu0 %v1298
    %1364 = vmatprep.subr.mxu0 %v1301
    %1365 = vmatpush1.msra.mxu0 %v1300
    %1366 = vmatprep.subr.mxu0 %v1303
    %1367 = vmatpush1.msra.mxu0 %v1302
    %1368 = vmatprep.subr.mxu0 %v1305
    %1369 = vmatpush1.msra.mxu0 %v1304
    %1370 = vmatprep.subr.mxu0 %v1307
    %1371 = vmatpush1.msra.mxu0 %v1306
    %1372 = vmatprep.subr.mxu0 %v1309
    %1373 = vmatpush1.msra.mxu0 %v1308
    %1374 = vmatprep.subr.mxu0 %v1311
    %1375 = vmatpush1.msra.mxu0 %v1310
    %1376 = vmatprep.mubr.f32.mxu0 %v1247
    %1377 = vmatmul.mubr.f32.gmra.mrb[0].mxu0 %v1246
    %v1378 = vpop.f32.mrb[0].mxu0
    %v1379 = vadd.f32 0.0, %v1378
    %v1380 = vpop.f32.mrb[0].mxu0
    %v1381 = vadd.f32 0.0, %v1380
    %1382 = vdwg.mxu0
    %v1383 = vadd.f32 %v1079, %v1379
    %v1384 = vadd.f32 %v1080, %v1381
    %v1385 = vld [vmem:[%s4] sm:$0x3]
    %v1387 = vlaneseq
    %v1388 = vshrl.u32 %v1387, 7
    %v1389 = vsub.s32 0, %v1388
    %v1390 = vrot.slane %v1385, %v1389
    %v1391 = vlaneseq
    %v1392 = vshrl.u32 %v1391, 7
    %v1393 = vsub.s32 1, %v1392
    %v1394 = vrot.slane %v1385, %v1393
    %v1397 = vadd.f32 %v1383, %v1390
    %v1398 = vadd.f32 %v1384, %v1394
    %v1399 = vmax.f32 %v1397, 0.0
    %v1400 = vmax.f32 %v1398, 0.0
    %v1401 = vld [vmem:[%s5] sm:$0xff]
    %v1402 = vld [vmem:[%s5 + $0x8] sm:$0xff]
    %v1403 = vld [vmem:[%s5 + $0x10] sm:$0xff]
    %v1404 = vld [vmem:[%s5 + $0x18] sm:$0xff]
    %v1405 = vld [vmem:[%s5 + $0x20] sm:$0xff]
    %v1406 = vld [vmem:[%s5 + $0x28] sm:$0xff]
    %v1407 = vld [vmem:[%s5 + $0x30] sm:$0xff]
    %v1408 = vld [vmem:[%s5 + $0x38] sm:$0xff]
    %v1409 = vld [vmem:[%s5 + $0x40] sm:$0xff]
    %v1410 = vld [vmem:[%s5 + $0x48] sm:$0xff]
    %v1411 = vld [vmem:[%s5 + $0x50] sm:$0xff]
    %v1412 = vld [vmem:[%s5 + $0x58] sm:$0xff]
    %v1413 = vld [vmem:[%s5 + $0x60] sm:$0xff]
    %v1414 = vld [vmem:[%s5 + $0x68] sm:$0xff]
    %v1415 = vld [vmem:[%s5 + $0x70] sm:$0xff]
    %v1416 = vld [vmem:[%s5 + $0x78] sm:$0xff]
    %v1417 = vld [vmem:[%s5 + $0x80] sm:$0xff]
    %v1418 = vld [vmem:[%s5 + $0x88] sm:$0xff]
    %v1419 = vld [vmem:[%s5 + $0x90] sm:$0xff]
    %v1420 = vld [vmem:[%s5 + $0x98] sm:$0xff]
    %v1421 = vld [vmem:[%s5 + $0xa0] sm:$0xff]
    %v1422 = vld [vmem:[%s5 + $0xa8] sm:$0xff]
    %v1423 = vld [vmem:[%s5 + $0xb0] sm:$0xff]
    %v1424 = vld [vmem:[%s5 + $0xb8] sm:$0xff]
    %v1425 = vld [vmem:[%s5 + $0xc0] sm:$0xff]
    %v1426 = vld [vmem:[%s5 + $0xc8] sm:$0xff]
    %v1427 = vld [vmem:[%s5 + $0xd0] sm:$0xff]
    %v1428 = vld [vmem:[%s5 + $0xd8] sm:$0xff]
    %v1429 = vld [vmem:[%s5 + $0xe0] sm:$0xff]
    %v1430 = vld [vmem:[%s5 + $0xe8] sm:$0xff]
    %v1431 = vld [vmem:[%s5 + $0xf0] sm:$0xff]
    %v1432 = vld [vmem:[%s5 + $0xf8] sm:$0xff]
    %v1433 = vld [vmem:[%s6] sm:$0x1]
    %v1435 = vlaneseq
    %v1436 = vshrl.u32 %v1435, 7
    %v1437 = vsub.s32 0, %v1436
    %v1438 = vrot.slane %v1433, %v1437
    %1440 = vmatprep.subr.mxu0 0.0
    %1441 = vmatpush1.msra.mxu0 %v1401
    %1442 = vmatprep.subr.mxu0 0.0
    %1443 = vmatpush1.msra.mxu0 %v1402
    %1444 = vmatprep.subr.mxu0 0.0
    %1445 = vmatpush1.msra.mxu0 %v1403
    %1446 = vmatprep.subr.mxu0 0.0
    %1447 = vmatpush1.msra.mxu0 %v1404
    %1448 = vmatprep.subr.mxu0 0.0
    %1449 = vmatpush1.msra.mxu0 %v1405
    %1450 = vmatprep.subr.mxu0 0.0
    %1451 = vmatpush1.msra.mxu0 %v1406
    %1452 = vmatprep.subr.mxu0 0.0
    %1453 = vmatpush1.msra.mxu0 %v1407
    %1454 = vmatprep.subr.mxu0 0.0
    %1455 = vmatpush1.msra.mxu0 %v1408
    %1456 = vmatprep.subr.mxu0 0.0
    %1457 = vmatpush1.msra.mxu0 %v1409
    %1458 = vmatprep.subr.mxu0 0.0
    %1459 = vmatpush1.msra.mxu0 %v1410
    %1460 = vmatprep.subr.mxu0 0.0
    %1461 = vmatpush1.msra.mxu0 %v1411
    %1462 = vmatprep.subr.mxu0 0.0
    %1463 = vmatpush1.msra.mxu0 %v1412
    %1464 = vmatprep.subr.mxu0 0.0
    %1465 = vmatpush1.msra.mxu0 %v1413
    %1466 = vmatprep.subr.mxu0 0.0
    %1467 = vmatpush1.msra.mxu0 %v1414
    %1468 = vmatprep.subr.mxu0 0.0
    %1469 = vmatpush1.msra.mxu0 %v1415
    %1470 = vmatprep.subr.mxu0 0.0
    %1471 = vmatpush1.msra.mxu0 %v1416
    %1472 = vmatprep.subr.mxu0 0.0
    %1473 = vmatpush1.msra.mxu0 %v1417
    %1474 = vmatprep.subr.mxu0 0.0
    %1475 = vmatpush1.msra.mxu0 %v1418
    %1476 = vmatprep.subr.mxu0 0.0
    %1477 = vmatpush1.msra.mxu0 %v1419
    %1478 = vmatprep.subr.mxu0 0.0
    %1479 = vmatpush1.msra.mxu0 %v1420
    %1480 = vmatprep.subr.mxu0 0.0
    %1481 = vmatpush1.msra.mxu0 %v1421
    %1482 = vmatprep.subr.mxu0 0.0
    %1483 = vmatpush1.msra.mxu0 %v1422
    %1484 = vmatprep.subr.mxu0 0.0
    %1485 = vmatpush1.msra.mxu0 %v1423
    %1486 = vmatprep.subr.mxu0 0.0
    %1487 = vmatpush1.msra.mxu0 %v1424
    %1488 = vmatprep.subr.mxu0 0.0
    %1489 = vmatpush1.msra.mxu0 %v1425
    %1490 = vmatprep.subr.mxu0 0.0
    %1491 = vmatpush1.msra.mxu0 %v1426
    %1492 = vmatprep.subr.mxu0 0.0
    %1493 = vmatpush1.msra.mxu0 %v1427
    %1494 = vmatprep.subr.mxu0 0.0
    %1495 = vmatpush1.msra.mxu0 %v1428
    %1496 = vmatprep.subr.mxu0 0.0
    %1497 = vmatpush1.msra.mxu0 %v1429
    %1498 = vmatprep.subr.mxu0 0.0
    %1499 = vmatpush1.msra.mxu0 %v1430
    %1500 = vmatprep.subr.mxu0 0.0
    %1501 = vmatpush1.msra.mxu0 %v1431
    %1502 = vmatprep.subr.mxu0 0.0
    %1503 = vmatpush1.msra.mxu0 %v1432
    %1504 = vmatprep.mubr.f32.mxu0 %v1400
    %1505 = vmatmul.mubr.f32.gmra.mrb[0].mxu0 %v1399
    %v1506 = vpop.f32.mrb[0].mxu0
    %v1507 = vadd.f32 %v1438, %v1506
    %v1508 = vpop.f32.mrb[0].mxu0
    %1509 = vdwg.mxu0
    %v1510 = vtanh.pop %v1507
    %v1511 = vld [vmem:[%s7] sm:$0x1]
    %v1513 = vlaneseq
    %v1514 = vshrl.u32 %v1513, 7
    %v1515 = vsub.s32 0, %v1514
    %v1516 = vrot.slane %v1511, %v1515
    %v1518 = vmax.f32 %v1510, %v1516
    %v1519 = vld [vmem:[%s8] sm:$0x1]
    %v1521 = vlaneseq
    %v1522 = vshrl.u32 %v1521, 7
    %v1523 = vsub.s32 0, %v1522
    %v1524 = vrot.slane %v1519, %v1523
    %v1526 = vmin.f32 %v1518, %v1524
    %vm1527 = vcmask 25600
    %1528 = vst.msk [vmem:[#allocation2] sm:$0x3] %vm1527, %v1526
    // Predicated region
    $region38: #{conv_policy_forward.7} parent=1 // pred_check
      _
    $region39: #{conv_policy_forward.7} parent=1 // pred_check_branch
      %1530 = sbr.rel (0) target = $region41
    $region40: #{conv_policy_forward.7} parent=1 // pred_region
      %s1532 = ssub.s32 32, 32
      %1533 = vsyncadd [#allocation3], %s1532
      %s1535 = sshll.u32 [#allocation2], 4
      %s1536 = int_to_ptr.vmem [resolvable:$true] %s1535
      %1538 = dma.vmem_to_hbm [thread:$0]  %s1536, 32, %s9, [#allocation3]
    $region41: #{conv_policy_forward.7} parent=1 // pred_fallthru
      _
    // Predicated region
    $region42: #{conv_policy_forward.7} parent=1 // pred_check
      _
    $region43: #{conv_policy_forward.7} parent=1 // pred_check_branch
      %1540 = sbr.rel (0) target = $region45
    $region44: #{conv_policy_forward.7} parent=1 // pred_region
      %1541 = dma.done [#allocation3], 32
    $region45: #{conv_policy_forward.7} parent=1 // pred_fallthru
      _
    %1542 = vsyncpa [#allocation3], 1

</llo_original>
